<compile_context>
chip_gen: v7x
topology: tpu7x:2x2x1
jax: 0.10.0
libtpu: 0.0.40
codegen_flags: <defaults>
</compile_context>

<pallas_src>
import math

import numpy as np
import jax
import jax.numpy as jnp
from jax.experimental import pallas as pl
from jax.experimental.pallas import tpu as pltpu

# ---------------------------------------------------------------------------
# Static network dimensions
# ---------------------------------------------------------------------------
H0 = W0 = 16   # conv1 spatial
C0 = 4         # conv1 in-channels
C1 = 8         # conv1 out-channels
H1 = W1 = 8    # after pool1
C2 = 16        # conv2 out-channels
H2 = W2 = 4    # after pool2
FC_HID = 32
NUM_CLASSES = 10


# ---------------------------------------------------------------------------
# Constant-matrix builders (run once at init, NumPy, outside the hot path)
# Activation layout invariant:  A[n*H + h, w*C + c] == feature[n, c, h, w]
# ---------------------------------------------------------------------------
def _shift_rows(n, hdim, kh):
    """[n*hdim, n*hdim]: out row (i,h) gathers in row (i, h+kh-1); zero outside."""
    m = np.zeros((n * hdim, n * hdim), np.float32)
    for i in range(n):
        for h in range(hdim):
            hs = h + kh - 1
            if 0 <= hs < hdim:
                m[i * hdim + h, i * hdim + hs] = 1.0
    return m


def _conv_cols(w_slice, wdim, kw):
    """[wdim*cin, wdim*cout]: w-shift by kw-1 (zero pad) fused with Cin->Cout mix."""
    cout, cin = w_slice.shape
    m = np.zeros((wdim * cin, wdim * cout), np.float32)
    for w in range(wdim):
        ws = w + kw - 1
        if 0 <= ws < wdim:
            m[ws * cin:(ws + 1) * cin, w * cout:(w + 1) * cout] = w_slice.T
    return m


def _pool_rows(n, hin, a):
    """[n*hin/2, n*hin]: selects input row 2*ho + a per image."""
    hout = hin // 2
    m = np.zeros((n * hout, n * hin), np.float32)
    for i in range(n):
        for ho in range(hout):
            m[i * hout + ho, i * hin + 2 * ho + a] = 1.0
    return m


def _pool_cols(win, c, b):
    """[win*c, win/2*c]: selects input column (2*wo + b, c) per output (wo, c)."""
    wout = win // 2
    m = np.zeros((win * c, wout * c), np.float32)
    for wo in range(wout):
        for ch in range(c):
            m[(2 * wo + b) * c + ch, wo * c + ch] = 1.0
    return m


def _fc_rows(n, hdim, h):
    """[n, n*hdim]: selects activation row (i, h) for each image i."""
    m = np.zeros((n, n * hdim), np.float32)
    for i in range(n):
        m[i, i * hdim + h] = 1.0
    return m


def _fc1_cols(fc1_w, h, hdim, wdim, c):
    """[wdim*c, out]: fc1 columns for spatial row h, reordered to (w, c) lane order.

    Folds PyTorch's x.view(N, -1) flatten (NCHW order: index = c*H*W + h*W + w)
    and the weight transpose into a constant.
    """
    out_f = fc1_w.shape[0]
    m = np.zeros((wdim * c, out_f), np.float32)
    for w in range(wdim):
        for ch in range(c):
            m[w * c + ch, :] = fc1_w[:, ch * hdim * wdim + h * wdim + w]
    return m


def prepare_constants(params, batch):
    """Build all VMEM-resident constants (shifts, pool selections, folded weights)."""
    n = batch
    w1 = np.asarray(params["conv1_w"], np.float32)
    b1 = np.asarray(params["conv1_b"], np.float32)
    w2 = np.asarray(params["conv2_w"], np.float32)
    b2 = np.asarray(params["conv2_b"], np.float32)
    f1w = np.asarray(params["fc1_w"], np.float32)
    f1b = np.asarray(params["fc1_b"], np.float32)
    f2w = np.asarray(params["fc2_w"], np.float32)
    f2b = np.asarray(params["fc2_b"], np.float32)

    sh1 = np.stack([_shift_rows(n, H0, kh) for kh in range(3)])
    r1 = np.stack([_conv_cols(w1[:, :, kh, kw], W0, kw)
                   for kh in range(3) for kw in range(3)])
    b1row = np.tile(b1, W0)[None, :]                    # [1, W0*C1] = [1, 128]

    ph1 = np.stack([_pool_rows(n, H0, a) for a in range(2)])
    pw1 = np.stack([_pool_cols(W0, C1, b) for b in range(2)])

    sh2 = np.stack([_shift_rows(n, H1, kh) for kh in range(3)])
    r2 = np.stack([_conv_cols(w2[:, :, kh, kw], W1, kw)
                   for kh in range(3) for kw in range(3)])
    b2row = np.tile(b2, W1)[None, :]                    # [1, W1*C2] = [1, 128]

    ph2 = np.stack([_pool_rows(n, H1, a) for a in range(2)])
    pw2 = np.stack([_pool_cols(W1, C2, b) for b in range(2)])

    lh = np.stack([_fc_rows(n, H2, h) for h in range(H2)])
    wf1 = np.stack([_fc1_cols(f1w, h, H2, W2, C2) for h in range(H2)])
    bf1 = f1b[None, :]

    wfc2 = f2w.T.copy()                                 # [32, 10], pre-transposed
    bfc2 = f2b[None, :]

    arrs = (sh1, r1, b1row, ph1, pw1, sh2, r2, b2row, ph2, pw2,
            lh, wf1, bf1, wfc2, bfc2)
    return tuple(jnp.asarray(a, jnp.float32) for a in arrs)


# ---------------------------------------------------------------------------
# The single fused Pallas kernel
# ---------------------------------------------------------------------------
def _vgg_fused_kernel(x_ref, sh1_ref, r1_ref, b1_ref, ph1_ref, pw1_ref,
                      sh2_ref, r2_ref, b2_ref, ph2_ref, pw2_ref,
                      lh_ref, wf1_ref, bf1_ref, wfc2_ref, bfc2_ref, o_ref):
    f32 = jnp.float32

    def mm(a, b):
        return jnp.dot(a, b, preferred_element_type=f32)

    x0 = x_ref[...]                                       # [N*H0, W0*C0] = [32, 64]

    # ---- conv1 3x3 pad1 + ReLU (shift + channel mix folded into constant matmuls)
    acc = None
    for kh in range(3):
        rows = mm(sh1_ref[kh], x0)                        # h-shift with zero pad
        for kw in range(3):
            term = mm(rows, r1_ref[kh * 3 + kw])          # w-shift + Cin->Cout mix
            acc = term if acc is None else acc + term
    a1 = jnp.maximum(acc + b1_ref[...], 0.0)              # [32, 128]  (lane-dense)

    # ---- 2x2 max-pool, stride 2 (4 selected grids, elementwise max)
    p1 = None
    for a in range(2):
        rows = mm(ph1_ref[a], a1)
        for b in range(2):
            cand = mm(rows, pw1_ref[b])
            p1 = cand if p1 is None else jnp.maximum(p1, cand)
    # p1: [N*H1, W1*C1] = [16, 64]

    # ---- conv2 3x3 pad1 + ReLU
    acc = None
    for kh in range(3):
        rows = mm(sh2_ref[kh], p1)
        for kw in range(3):
            term = mm(rows, r2_ref[kh * 3 + kw])
            acc = term if acc is None else acc + term
    a2 = jnp.maximum(acc + b2_ref[...], 0.0)              # [16, 128]  (lane-dense)

    # ---- 2x2 max-pool, stride 2
    p2 = None
    for a in range(2):
        rows = mm(ph2_ref[a], a2)
        for b in range(2):
            cand = mm(rows, pw2_ref[b])
            p2 = cand if p2 is None else jnp.maximum(p2, cand)
    # p2: [N*H2, W2*C2] = [8, 64]

    # ---- classifier: Linear(256->32)+ReLU, Dropout(identity), Linear(32->10)
    # The NCHW flatten permutation is folded into wf1 at init.
    y = None
    for h in range(lh_ref.shape[0]):
        rows = mm(lh_ref[h], p2)                          # [N, W2*C2]
        term = mm(rows, wf1_ref[h])                       # [N, 32]
        y = term if y is None else y + term
    y = jnp.maximum(y + bf1_ref[...], 0.0)
    # TODO(synk): nn.Dropout treated as eval-mode identity (train-mode stochastic drop not modeled).
    out = mm(y, wfc2_ref[...]) + bfc2_ref[...]            # [N, 10]
    o_ref[...] = out.astype(o_ref.dtype)


def _full_spec(a):
    nd = a.ndim
    return pl.BlockSpec(a.shape, lambda i, _nd=nd: (0,) * _nd)


def vgg_compressed_forward(x_nchw, consts):
    """Full VGGCompressed forward in one pallas_call (all intermediates in VMEM)."""
    n = x_nchw.shape[0]
    # Lay the input out as A0[n*H + h, w*C + c]; the only XLA op per forward is this
    # tiny (2,4,16,16) input relayout.
    x0 = jnp.transpose(x_nchw, (0, 2, 3, 1)).reshape(n * H0, W0 * C0)
    x0 = x0.astype(jnp.float32)

    args = (x0,) + tuple(consts)
    in_specs = [_full_spec(a) for a in args]
    out_specs = pl.BlockSpec((n, NUM_CLASSES), lambda i: (0, 0))

    return pl.pallas_call(
        _vgg_fused_kernel,
        grid=(1,),
        out_shape=jax.ShapeDtypeStruct((n, NUM_CLASSES), jnp.float32),
        in_specs=in_specs,
        out_specs=out_specs,
        compiler_params=pltpu.CompilerParams(dimension_semantics=("arbitrary",)),
    )(*args)


# ---------------------------------------------------------------------------
# Deterministic parameter init matching VGGCompressed._initialize_weights
# ---------------------------------------------------------------------------
def init_params(key):
    k1, k2, k3, k4 = jax.random.split(key, 4)
    ch0 = C2 * H2 * W2            # 256
    params = {
        # Conv2d: normal(0, sqrt(2 / (kh*kw*out_channels))), bias = 0
        "conv1_w": jax.random.normal(k1, (C1, C0, 3, 3), jnp.float32)
        * math.sqrt(2.0 / (3 * 3 * C1)),
        "conv1_b": jnp.zeros((C1,), jnp.float32),
        "conv2_w": jax.random.normal(k2, (C2, C1, 3, 3), jnp.float32)
        * math.sqrt(2.0 / (3 * 3 * C2)),
        "conv2_b": jnp.zeros((C2,), jnp.float32),
        # Linear: normal(0, 0.01), bias = 0 (torch layout: [out, in])
        "fc1_w": jax.random.normal(k3, (FC_HID, ch0), jnp.float32) * 0.01,
        "fc1_b": jnp.zeros((FC_HID,), jnp.float32),
        "fc2_w": jax.random.normal(k4, (NUM_CLASSES, FC_HID), jnp.float32) * 0.01,
        "fc2_b": jnp.zeros((NUM_CLASSES,), jnp.float32),
    }
    return params


# ---------------------------------------------------------------------------
# Plain NumPy (float64) reference with exact PyTorch VGGCompressed semantics
# ---------------------------------------------------------------------------
def _reference_forward_np(x_nchw, params):
    x = np.asarray(x_nchw, np.float64)
    w1 = np.asarray(params["conv1_w"], np.float64)
    b1 = np.asarray(params["conv1_b"], np.float64)
    w2 = np.asarray(params["conv2_w"], np.float64)
    b2 = np.asarray(params["conv2_b"], np.float64)
    f1w = np.asarray(params["fc1_w"], np.float64)
    f1b = np.asarray(params["fc1_b"], np.float64)
    f2w = np.asarray(params["fc2_w"], np.float64)
    f2b = np.asarray(params["fc2_b"], np.float64)

    def conv3x3_relu(xin, w, b):
        n, cin, hh, ww = xin.shape
        cout = w.shape[0]
        xp = np.pad(xin, ((0, 0), (0, 0), (1, 1), (1, 1)))
        out = np.zeros((n, cout, hh, ww))
        for kh in range(3):
            for kw in range(3):
                patch = xp[:, :, kh:kh + hh, kw:kw + ww]
                out += np.einsum("nihw,oi->nohw", patch, w[:, :, kh, kw])
        out += b[None, :, None, None]
        return np.maximum(out, 0.0)

    def pool2x2(xin):
        return np.maximum(
            np.maximum(xin[:, :, 0::2, 0::2], xin[:, :, 0::2, 1::2]),
            np.maximum(xin[:, :, 1::2, 0::2], xin[:, :, 1::2, 1::2]))

    f = pool2x2(conv3x3_relu(x, w1, b1))
    f = pool2x2(conv3x3_relu(f, w2, b2))
    flat = f.reshape(f.shape[0], -1)                     # PyTorch x.view(N, -1) on NCHW
    y = np.maximum(flat @ f1w.T + f1b, 0.0)
    return y @ f2w.T + f2b


if __name__ == "__main__":
    key = jax.random.PRNGKey(0)
    pkey, xkey = jax.random.split(key)
    params = init_params(pkey)
    x = jax.random.normal(xkey, (2, C0, H0, W0), jnp.float32)   # NCHW input

    consts = prepare_constants(params, batch=2)                 # one-time folding
    fwd = jax.jit(vgg_compressed_forward)
    out = jax.block_until_ready(fwd(x, consts))
    assert out.shape == (2, NUM_CLASSES), out.shape

    # Sanity check against an exact NumPy reference (loose tol: MXU f32 rounding).
    ref = _reference_forward_np(np.asarray(x), params)
    assert np.allclose(np.asarray(out), ref, atol=2e-2, rtol=2e-2), (
        float(np.max(np.abs(np.asarray(out) - ref))))

    print("KERNEL_OK")
</pallas_src>

<mosaic_0001>
module attributes {stable_mosaic.version = 11 : i64} {
  func.func @_vgg_fused_kernel(%arg0: i32, %arg1: memref<32x64xf32, #tpu.memory_space<vmem>>, %arg2: memref<3x32x32xf32, #tpu.memory_space<vmem>>, %arg3: memref<9x64x128xf32, #tpu.memory_space<vmem>>, %arg4: memref<1x128xf32, #tpu.memory_space<vmem>>, %arg5: memref<2x16x32xf32, #tpu.memory_space<vmem>>, %arg6: memref<2x128x64xf32, #tpu.memory_space<vmem>>, %arg7: memref<3x16x16xf32, #tpu.memory_space<vmem>>, %arg8: memref<9x64x128xf32, #tpu.memory_space<vmem>>, %arg9: memref<1x128xf32, #tpu.memory_space<vmem>>, %arg10: memref<2x8x16xf32, #tpu.memory_space<vmem>>, %arg11: memref<2x128x64xf32, #tpu.memory_space<vmem>>, %arg12: memref<4x2x8xf32, #tpu.memory_space<vmem>>, %arg13: memref<4x64x32xf32, #tpu.memory_space<vmem>>, %arg14: memref<1x32xf32, #tpu.memory_space<vmem>>, %arg15: memref<32x10xf32, #tpu.memory_space<vmem>>, %arg16: memref<1x10xf32, #tpu.memory_space<vmem>>, %arg17: memref<2x10xf32, #tpu.memory_space<vmem>>) attributes {dimension_semantics = [#tpu.dimension_semantics<arbitrary>], iteration_bounds = array<i64: 1>, scalar_prefetch = 0 : i64, scratch_operands = 0 : i64, tpu.core_type = #tpu.core_type<tc>, window_params = [{pipeline_mode = #tpu.pipeline_mode<synchronous>, transform_indices = @transform_0, window_bounds = array<i64: 32, 64>}, {pipeline_mode = #tpu.pipeline_mode<synchronous>, transform_indices = @transform_1, window_bounds = array<i64: 3, 32, 32>}, {pipeline_mode = #tpu.pipeline_mode<synchronous>, transform_indices = @transform_2, window_bounds = array<i64: 9, 64, 128>}, {pipeline_mode = #tpu.pipeline_mode<synchronous>, transform_indices = @transform_3, window_bounds = array<i64: 1, 128>}, {pipeline_mode = #tpu.pipeline_mode<synchronous>, transform_indices = @transform_4, window_bounds = array<i64: 2, 16, 32>}, {pipeline_mode = #tpu.pipeline_mode<synchronous>, transform_indices = @transform_5, window_bounds = array<i64: 2, 128, 64>}, {pipeline_mode = #tpu.pipeline_mode<synchronous>, transform_indices = @transform_6, window_bounds = array<i64: 3, 16, 16>}, {pipeline_mode = #tpu.pipeline_mode<synchronous>, transform_indices = @transform_7, window_bounds = array<i64: 9, 64, 128>}, {pipeline_mode = #tpu.pipeline_mode<synchronous>, transform_indices = @transform_8, window_bounds = array<i64: 1, 128>}, {pipeline_mode = #tpu.pipeline_mode<synchronous>, transform_indices = @transform_9, window_bounds = array<i64: 2, 8, 16>}, {pipeline_mode = #tpu.pipeline_mode<synchronous>, transform_indices = @transform_10, window_bounds = array<i64: 2, 128, 64>}, {pipeline_mode = #tpu.pipeline_mode<synchronous>, transform_indices = @transform_11, window_bounds = array<i64: 4, 2, 8>}, {pipeline_mode = #tpu.pipeline_mode<synchronous>, transform_indices = @transform_12, window_bounds = array<i64: 4, 64, 32>}, {pipeline_mode = #tpu.pipeline_mode<synchronous>, transform_indices = @transform_13, window_bounds = array<i64: 1, 32>}, {pipeline_mode = #tpu.pipeline_mode<synchronous>, transform_indices = @transform_14, window_bounds = array<i64: 32, 10>}, {pipeline_mode = #tpu.pipeline_mode<synchronous>, transform_indices = @transform_15, window_bounds = array<i64: 1, 10>}, {pipeline_mode = #tpu.pipeline_mode<synchronous>, transform_indices = @transform_16, window_bounds = array<i64: 2, 10>}]} {
    %c0 = arith.constant 0 : index
    %c0_0 = arith.constant 0 : index
    %0 = vector.load %arg1[%c0, %c0_0] : memref<32x64xf32, #tpu.memory_space<vmem>>, vector<32x64xf32>
    %c0_1 = arith.constant 0 : index
    %c0_2 = arith.constant 0 : index
    %c0_3 = arith.constant 0 : index
    %1 = vector.load %arg2[%c0_1, %c0_2, %c0_3] : memref<3x32x32xf32, #tpu.memory_space<vmem>>, vector<1x32x32xf32>
    %2 = vector.shape_cast %1 : vector<1x32x32xf32> to vector<32x32xf32>
    %cst = arith.constant dense<0.000000e+00> : vector<32x64xf32>
    %3 = tpu.matmul %2, %0, %cst {dimension_numbers = #tpu.dot_dimension_numbers<[1], [0], [0], [1], [0, 0, 1, 1], [], []>} : vector<32x32xf32>, vector<32x64xf32>, vector<32x64xf32> -> vector<32x64xf32>
    %c0_4 = arith.constant 0 : index
    %c0_5 = arith.constant 0 : index
    %c0_6 = arith.constant 0 : index
    %4 = vector.load %arg3[%c0_4, %c0_5, %c0_6] : memref<9x64x128xf32, #tpu.memory_space<vmem>>, vector<1x64x128xf32>
    %5 = vector.shape_cast %4 : vector<1x64x128xf32> to vector<64x128xf32>
    %cst_7 = arith.constant dense<0.000000e+00> : vector<32x128xf32>
    %6 = tpu.matmul %3, %5, %cst_7 {dimension_numbers = #tpu.dot_dimension_numbers<[1], [0], [0], [1], [0, 0, 1, 1], [], []>} : vector<32x64xf32>, vector<64x128xf32>, vector<32x128xf32> -> vector<32x128xf32>
    %c1 = arith.constant 1 : index
    %c0_8 = arith.constant 0 : index
    %c0_9 = arith.constant 0 : index
    %7 = vector.load %arg3[%c1, %c0_8, %c0_9] : memref<9x64x128xf32, #tpu.memory_space<vmem>>, vector<1x64x128xf32>
    %8 = vector.shape_cast %7 : vector<1x64x128xf32> to vector<64x128xf32>
    %cst_10 = arith.constant dense<0.000000e+00> : vector<32x128xf32>
    %9 = tpu.matmul %3, %8, %cst_10 {dimension_numbers = #tpu.dot_dimension_numbers<[1], [0], [0], [1], [0, 0, 1, 1], [], []>} : vector<32x64xf32>, vector<64x128xf32>, vector<32x128xf32> -> vector<32x128xf32>
    %10 = arith.addf %6, %9 : vector<32x128xf32>
    %c2 = arith.constant 2 : index
    %c0_11 = arith.constant 0 : index
    %c0_12 = arith.constant 0 : index
    %11 = vector.load %arg3[%c2, %c0_11, %c0_12] : memref<9x64x128xf32, #tpu.memory_space<vmem>>, vector<1x64x128xf32>
    %12 = vector.shape_cast %11 : vector<1x64x128xf32> to vector<64x128xf32>
    %cst_13 = arith.constant dense<0.000000e+00> : vector<32x128xf32>
    %13 = tpu.matmul %3, %12, %cst_13 {dimension_numbers = #tpu.dot_dimension_numbers<[1], [0], [0], [1], [0, 0, 1, 1], [], []>} : vector<32x64xf32>, vector<64x128xf32>, vector<32x128xf32> -> vector<32x128xf32>
    %14 = arith.addf %10, %13 : vector<32x128xf32>
    %c1_14 = arith.constant 1 : index
    %c0_15 = arith.constant 0 : index
    %c0_16 = arith.constant 0 : index
    %15 = vector.load %arg2[%c1_14, %c0_15, %c0_16] : memref<3x32x32xf32, #tpu.memory_space<vmem>>, vector<1x32x32xf32>
    %16 = vector.shape_cast %15 : vector<1x32x32xf32> to vector<32x32xf32>
    %cst_17 = arith.constant dense<0.000000e+00> : vector<32x64xf32>
    %17 = tpu.matmul %16, %0, %cst_17 {dimension_numbers = #tpu.dot_dimension_numbers<[1], [0], [0], [1], [0, 0, 1, 1], [], []>} : vector<32x32xf32>, vector<32x64xf32>, vector<32x64xf32> -> vector<32x64xf32>
    %c3 = arith.constant 3 : index
    %c0_18 = arith.constant 0 : index
    %c0_19 = arith.constant 0 : index
    %18 = vector.load %arg3[%c3, %c0_18, %c0_19] : memref<9x64x128xf32, #tpu.memory_space<vmem>>, vector<1x64x128xf32>
    %19 = vector.shape_cast %18 : vector<1x64x128xf32> to vector<64x128xf32>
    %cst_20 = arith.constant dense<0.000000e+00> : vector<32x128xf32>
    %20 = tpu.matmul %17, %19, %cst_20 {dimension_numbers = #tpu.dot_dimension_numbers<[1], [0], [0], [1], [0, 0, 1, 1], [], []>} : vector<32x64xf32>, vector<64x128xf32>, vector<32x128xf32> -> vector<32x128xf32>
    %21 = arith.addf %14, %20 : vector<32x128xf32>
    %c4 = arith.constant 4 : index
    %c0_21 = arith.constant 0 : index
    %c0_22 = arith.constant 0 : index
    %22 = vector.load %arg3[%c4, %c0_21, %c0_22] : memref<9x64x128xf32, #tpu.memory_space<vmem>>, vector<1x64x128xf32>
    %23 = vector.shape_cast %22 : vector<1x64x128xf32> to vector<64x128xf32>
    %cst_23 = arith.constant dense<0.000000e+00> : vector<32x128xf32>
    %24 = tpu.matmul %17, %23, %cst_23 {dimension_numbers = #tpu.dot_dimension_numbers<[1], [0], [0], [1], [0, 0, 1, 1], [], []>} : vector<32x64xf32>, vector<64x128xf32>, vector<32x128xf32> -> vector<32x128xf32>
    %25 = arith.addf %21, %24 : vector<32x128xf32>
    %c5 = arith.constant 5 : index
    %c0_24 = arith.constant 0 : index
    %c0_25 = arith.constant 0 : index
    %26 = vector.load %arg3[%c5, %c0_24, %c0_25] : memref<9x64x128xf32, #tpu.memory_space<vmem>>, vector<1x64x128xf32>
    %27 = vector.shape_cast %26 : vector<1x64x128xf32> to vector<64x128xf32>
    %cst_26 = arith.constant dense<0.000000e+00> : vector<32x128xf32>
    %28 = tpu.matmul %17, %27, %cst_26 {dimension_numbers = #tpu.dot_dimension_numbers<[1], [0], [0], [1], [0, 0, 1, 1], [], []>} : vector<32x64xf32>, vector<64x128xf32>, vector<32x128xf32> -> vector<32x128xf32>
    %29 = arith.addf %25, %28 : vector<32x128xf32>
    %c2_27 = arith.constant 2 : index
    %c0_28 = arith.constant 0 : index
    %c0_29 = arith.constant 0 : index
    %30 = vector.load %arg2[%c2_27, %c0_28, %c0_29] : memref<3x32x32xf32, #tpu.memory_space<vmem>>, vector<1x32x32xf32>
    %31 = vector.shape_cast %30 : vector<1x32x32xf32> to vector<32x32xf32>
    %cst_30 = arith.constant dense<0.000000e+00> : vector<32x64xf32>
    %32 = tpu.matmul %31, %0, %cst_30 {dimension_numbers = #tpu.dot_dimension_numbers<[1], [0], [0], [1], [0, 0, 1, 1], [], []>} : vector<32x32xf32>, vector<32x64xf32>, vector<32x64xf32> -> vector<32x64xf32>
    %c6 = arith.constant 6 : index
    %c0_31 = arith.constant 0 : index
    %c0_32 = arith.constant 0 : index
    %33 = vector.load %arg3[%c6, %c0_31, %c0_32] : memref<9x64x128xf32, #tpu.memory_space<vmem>>, vector<1x64x128xf32>
    %34 = vector.shape_cast %33 : vector<1x64x128xf32> to vector<64x128xf32>
    %cst_33 = arith.constant dense<0.000000e+00> : vector<32x128xf32>
    %35 = tpu.matmul %32, %34, %cst_33 {dimension_numbers = #tpu.dot_dimension_numbers<[1], [0], [0], [1], [0, 0, 1, 1], [], []>} : vector<32x64xf32>, vector<64x128xf32>, vector<32x128xf32> -> vector<32x128xf32>
    %36 = arith.addf %29, %35 : vector<32x128xf32>
    %c7 = arith.constant 7 : index
    %c0_34 = arith.constant 0 : index
    %c0_35 = arith.constant 0 : index
    %37 = vector.load %arg3[%c7, %c0_34, %c0_35] : memref<9x64x128xf32, #tpu.memory_space<vmem>>, vector<1x64x128xf32>
    %38 = vector.shape_cast %37 : vector<1x64x128xf32> to vector<64x128xf32>
    %cst_36 = arith.constant dense<0.000000e+00> : vector<32x128xf32>
    %39 = tpu.matmul %32, %38, %cst_36 {dimension_numbers = #tpu.dot_dimension_numbers<[1], [0], [0], [1], [0, 0, 1, 1], [], []>} : vector<32x64xf32>, vector<64x128xf32>, vector<32x128xf32> -> vector<32x128xf32>
    %40 = arith.addf %36, %39 : vector<32x128xf32>
    %c8 = arith.constant 8 : index
    %c0_37 = arith.constant 0 : index
    %c0_38 = arith.constant 0 : index
    %41 = vector.load %arg3[%c8, %c0_37, %c0_38] : memref<9x64x128xf32, #tpu.memory_space<vmem>>, vector<1x64x128xf32>
    %42 = vector.shape_cast %41 : vector<1x64x128xf32> to vector<64x128xf32>
    %cst_39 = arith.constant dense<0.000000e+00> : vector<32x128xf32>
    %43 = tpu.matmul %32, %42, %cst_39 {dimension_numbers = #tpu.dot_dimension_numbers<[1], [0], [0], [1], [0, 0, 1, 1], [], []>} : vector<32x64xf32>, vector<64x128xf32>, vector<32x128xf32> -> vector<32x128xf32>
    %44 = arith.addf %40, %43 : vector<32x128xf32>
    %c0_40 = arith.constant 0 : index
    %c0_41 = arith.constant 0 : index
    %45 = vector.load %arg4[%c0_40, %c0_41] : memref<1x128xf32, #tpu.memory_space<vmem>>, vector<1x128xf32>
    %46 = vector.broadcast %45 : vector<1x128xf32> to vector<32x128xf32>
    %47 = arith.addf %44, %46 : vector<32x128xf32>
    %cst_42 = arith.constant 0.000000e+00 : f32
    %48 = vector.broadcast %cst_42 : f32 to vector<32x128xf32>
    %49 = arith.maximumf %47, %48 : vector<32x128xf32>
    %c0_43 = arith.constant 0 : index
    %c0_44 = arith.constant 0 : index
    %c0_45 = arith.constant 0 : index
    %50 = vector.load %arg5[%c0_43, %c0_44, %c0_45] : memref<2x16x32xf32, #tpu.memory_space<vmem>>, vector<1x16x32xf32>
    %51 = vector.shape_cast %50 : vector<1x16x32xf32> to vector<16x32xf32>
    %cst_46 = arith.constant dense<0.000000e+00> : vector<16x128xf32>
    %52 = tpu.matmul %51, %49, %cst_46 {dimension_numbers = #tpu.dot_dimension_numbers<[1], [0], [0], [1], [0, 0, 1, 1], [], []>} : vector<16x32xf32>, vector<32x128xf32>, vector<16x128xf32> -> vector<16x128xf32>
    %c0_47 = arith.constant 0 : index
    %c0_48 = arith.constant 0 : index
    %c0_49 = arith.constant 0 : index
    %53 = vector.load %arg6[%c0_47, %c0_48, %c0_49] : memref<2x128x64xf32, #tpu.memory_space<vmem>>, vector<1x128x64xf32>
    %54 = vector.shape_cast %53 : vector<1x128x64xf32> to vector<128x64xf32>
    %cst_50 = arith.constant dense<0.000000e+00> : vector<16x64xf32>
    %55 = tpu.matmul %52, %54, %cst_50 {dimension_numbers = #tpu.dot_dimension_numbers<[1], [0], [0], [1], [0, 0, 1, 1], [], []>} : vector<16x128xf32>, vector<128x64xf32>, vector<16x64xf32> -> vector<16x64xf32>
    %c1_51 = arith.constant 1 : index
    %c0_52 = arith.constant 0 : index
    %c0_53 = arith.constant 0 : index
    %56 = vector.load %arg6[%c1_51, %c0_52, %c0_53] : memref<2x128x64xf32, #tpu.memory_space<vmem>>, vector<1x128x64xf32>
    %57 = vector.shape_cast %56 : vector<1x128x64xf32> to vector<128x64xf32>
    %cst_54 = arith.constant dense<0.000000e+00> : vector<16x64xf32>
    %58 = tpu.matmul %52, %57, %cst_54 {dimension_numbers = #tpu.dot_dimension_numbers<[1], [0], [0], [1], [0, 0, 1, 1], [], []>} : vector<16x128xf32>, vector<128x64xf32>, vector<16x64xf32> -> vector<16x64xf32>
    %59 = arith.maximumf %55, %58 : vector<16x64xf32>
    %c1_55 = arith.constant 1 : index
    %c0_56 = arith.constant 0 : index
    %c0_57 = arith.constant 0 : index
    %60 = vector.load %arg5[%c1_55, %c0_56, %c0_57] : memref<2x16x32xf32, #tpu.memory_space<vmem>>, vector<1x16x32xf32>
    %61 = vector.shape_cast %60 : vector<1x16x32xf32> to vector<16x32xf32>
    %cst_58 = arith.constant dense<0.000000e+00> : vector<16x128xf32>
    %62 = tpu.matmul %61, %49, %cst_58 {dimension_numbers = #tpu.dot_dimension_numbers<[1], [0], [0], [1], [0, 0, 1, 1], [], []>} : vector<16x32xf32>, vector<32x128xf32>, vector<16x128xf32> -> vector<16x128xf32>
    %c0_59 = arith.constant 0 : index
    %c0_60 = arith.constant 0 : index
    %c0_61 = arith.constant 0 : index
    %63 = vector.load %arg6[%c0_59, %c0_60, %c0_61] : memref<2x128x64xf32, #tpu.memory_space<vmem>>, vector<1x128x64xf32>
    %64 = vector.shape_cast %63 : vector<1x128x64xf32> to vector<128x64xf32>
    %cst_62 = arith.constant dense<0.000000e+00> : vector<16x64xf32>
    %65 = tpu.matmul %62, %64, %cst_62 {dimension_numbers = #tpu.dot_dimension_numbers<[1], [0], [0], [1], [0, 0, 1, 1], [], []>} : vector<16x128xf32>, vector<128x64xf32>, vector<16x64xf32> -> vector<16x64xf32>
    %66 = arith.maximumf %59, %65 : vector<16x64xf32>
    %c1_63 = arith.constant 1 : index
    %c0_64 = arith.constant 0 : index
    %c0_65 = arith.constant 0 : index
    %67 = vector.load %arg6[%c1_63, %c0_64, %c0_65] : memref<2x128x64xf32, #tpu.memory_space<vmem>>, vector<1x128x64xf32>
    %68 = vector.shape_cast %67 : vector<1x128x64xf32> to vector<128x64xf32>
    %cst_66 = arith.constant dense<0.000000e+00> : vector<16x64xf32>
    %69 = tpu.matmul %62, %68, %cst_66 {dimension_numbers = #tpu.dot_dimension_numbers<[1], [0], [0], [1], [0, 0, 1, 1], [], []>} : vector<16x128xf32>, vector<128x64xf32>, vector<16x64xf32> -> vector<16x64xf32>
    %70 = arith.maximumf %66, %69 : vector<16x64xf32>
    %c0_67 = arith.constant 0 : index
    %c0_68 = arith.constant 0 : index
    %c0_69 = arith.constant 0 : index
    %71 = vector.load %arg7[%c0_67, %c0_68, %c0_69] : memref<3x16x16xf32, #tpu.memory_space<vmem>>, vector<1x16x16xf32>
    %72 = vector.shape_cast %71 : vector<1x16x16xf32> to vector<16x16xf32>
    %cst_70 = arith.constant dense<0.000000e+00> : vector<16x64xf32>
    %73 = tpu.matmul %72, %70, %cst_70 {dimension_numbers = #tpu.dot_dimension_numbers<[1], [0], [0], [1], [0, 0, 1, 1], [], []>} : vector<16x16xf32>, vector<16x64xf32>, vector<16x64xf32> -> vector<16x64xf32>
    %c0_71 = arith.constant 0 : index
    %c0_72 = arith.constant 0 : index
    %c0_73 = arith.constant 0 : index
    %74 = vector.load %arg8[%c0_71, %c0_72, %c0_73] : memref<9x64x128xf32, #tpu.memory_space<vmem>>, vector<1x64x128xf32>
    %75 = vector.shape_cast %74 : vector<1x64x128xf32> to vector<64x128xf32>
    %cst_74 = arith.constant dense<0.000000e+00> : vector<16x128xf32>
    %76 = tpu.matmul %73, %75, %cst_74 {dimension_numbers = #tpu.dot_dimension_numbers<[1], [0], [0], [1], [0, 0, 1, 1], [], []>} : vector<16x64xf32>, vector<64x128xf32>, vector<16x128xf32> -> vector<16x128xf32>
    %c1_75 = arith.constant 1 : index
    %c0_76 = arith.constant 0 : index
    %c0_77 = arith.constant 0 : index
    %77 = vector.load %arg8[%c1_75, %c0_76, %c0_77] : memref<9x64x128xf32, #tpu.memory_space<vmem>>, vector<1x64x128xf32>
    %78 = vector.shape_cast %77 : vector<1x64x128xf32> to vector<64x128xf32>
    %cst_78 = arith.constant dense<0.000000e+00> : vector<16x128xf32>
    %79 = tpu.matmul %73, %78, %cst_78 {dimension_numbers = #tpu.dot_dimension_numbers<[1], [0], [0], [1], [0, 0, 1, 1], [], []>} : vector<16x64xf32>, vector<64x128xf32>, vector<16x128xf32> -> vector<16x128xf32>
    %80 = arith.addf %76, %79 : vector<16x128xf32>
    %c2_79 = arith.constant 2 : index
    %c0_80 = arith.constant 0 : index
    %c0_81 = arith.constant 0 : index
    %81 = vector.load %arg8[%c2_79, %c0_80, %c0_81] : memref<9x64x128xf32, #tpu.memory_space<vmem>>, vector<1x64x128xf32>
    %82 = vector.shape_cast %81 : vector<1x64x128xf32> to vector<64x128xf32>
    %cst_82 = arith.constant dense<0.000000e+00> : vector<16x128xf32>
    %83 = tpu.matmul %73, %82, %cst_82 {dimension_numbers = #tpu.dot_dimension_numbers<[1], [0], [0], [1], [0, 0, 1, 1], [], []>} : vector<16x64xf32>, vector<64x128xf32>, vector<16x128xf32> -> vector<16x128xf32>
    %84 = arith.addf %80, %83 : vector<16x128xf32>
    %c1_83 = arith.constant 1 : index
    %c0_84 = arith.constant 0 : index
    %c0_85 = arith.constant 0 : index
    %85 = vector.load %arg7[%c1_83, %c0_84, %c0_85] : memref<3x16x16xf32, #tpu.memory_space<vmem>>, vector<1x16x16xf32>
    %86 = vector.shape_cast %85 : vector<1x16x16xf32> to vector<16x16xf32>
    %cst_86 = arith.constant dense<0.000000e+00> : vector<16x64xf32>
    %87 = tpu.matmul %86, %70, %cst_86 {dimension_numbers = #tpu.dot_dimension_numbers<[1], [0], [0], [1], [0, 0, 1, 1], [], []>} : vector<16x16xf32>, vector<16x64xf32>, vector<16x64xf32> -> vector<16x64xf32>
    %c3_87 = arith.constant 3 : index
    %c0_88 = arith.constant 0 : index
    %c0_89 = arith.constant 0 : index
    %88 = vector.load %arg8[%c3_87, %c0_88, %c0_89] : memref<9x64x128xf32, #tpu.memory_space<vmem>>, vector<1x64x128xf32>
    %89 = vector.shape_cast %88 : vector<1x64x128xf32> to vector<64x128xf32>
    %cst_90 = arith.constant dense<0.000000e+00> : vector<16x128xf32>
    %90 = tpu.matmul %87, %89, %cst_90 {dimension_numbers = #tpu.dot_dimension_numbers<[1], [0], [0], [1], [0, 0, 1, 1], [], []>} : vector<16x64xf32>, vector<64x128xf32>, vector<16x128xf32> -> vector<16x128xf32>
    %91 = arith.addf %84, %90 : vector<16x128xf32>
    %c4_91 = arith.constant 4 : index
    %c0_92 = arith.constant 0 : index
    %c0_93 = arith.constant 0 : index
    %92 = vector.load %arg8[%c4_91, %c0_92, %c0_93] : memref<9x64x128xf32, #tpu.memory_space<vmem>>, vector<1x64x128xf32>
    %93 = vector.shape_cast %92 : vector<1x64x128xf32> to vector<64x128xf32>
    %cst_94 = arith.constant dense<0.000000e+00> : vector<16x128xf32>
    %94 = tpu.matmul %87, %93, %cst_94 {dimension_numbers = #tpu.dot_dimension_numbers<[1], [0], [0], [1], [0, 0, 1, 1], [], []>} : vector<16x64xf32>, vector<64x128xf32>, vector<16x128xf32> -> vector<16x128xf32>
    %95 = arith.addf %91, %94 : vector<16x128xf32>
    %c5_95 = arith.constant 5 : index
    %c0_96 = arith.constant 0 : index
    %c0_97 = arith.constant 0 : index
    %96 = vector.load %arg8[%c5_95, %c0_96, %c0_97] : memref<9x64x128xf32, #tpu.memory_space<vmem>>, vector<1x64x128xf32>
    %97 = vector.shape_cast %96 : vector<1x64x128xf32> to vector<64x128xf32>
    %cst_98 = arith.constant dense<0.000000e+00> : vector<16x128xf32>
    %98 = tpu.matmul %87, %97, %cst_98 {dimension_numbers = #tpu.dot_dimension_numbers<[1], [0], [0], [1], [0, 0, 1, 1], [], []>} : vector<16x64xf32>, vector<64x128xf32>, vector<16x128xf32> -> vector<16x128xf32>
    %99 = arith.addf %95, %98 : vector<16x128xf32>
    %c2_99 = arith.constant 2 : index
    %c0_100 = arith.constant 0 : index
    %c0_101 = arith.constant 0 : index
    %100 = vector.load %arg7[%c2_99, %c0_100, %c0_101] : memref<3x16x16xf32, #tpu.memory_space<vmem>>, vector<1x16x16xf32>
    %101 = vector.shape_cast %100 : vector<1x16x16xf32> to vector<16x16xf32>
    %cst_102 = arith.constant dense<0.000000e+00> : vector<16x64xf32>
    %102 = tpu.matmul %101, %70, %cst_102 {dimension_numbers = #tpu.dot_dimension_numbers<[1], [0], [0], [1], [0, 0, 1, 1], [], []>} : vector<16x16xf32>, vector<16x64xf32>, vector<16x64xf32> -> vector<16x64xf32>
    %c6_103 = arith.constant 6 : index
    %c0_104 = arith.constant 0 : index
    %c0_105 = arith.constant 0 : index
    %103 = vector.load %arg8[%c6_103, %c0_104, %c0_105] : memref<9x64x128xf32, #tpu.memory_space<vmem>>, vector<1x64x128xf32>
    %104 = vector.shape_cast %103 : vector<1x64x128xf32> to vector<64x128xf32>
    %cst_106 = arith.constant dense<0.000000e+00> : vector<16x128xf32>
    %105 = tpu.matmul %102, %104, %cst_106 {dimension_numbers = #tpu.dot_dimension_numbers<[1], [0], [0], [1], [0, 0, 1, 1], [], []>} : vector<16x64xf32>, vector<64x128xf32>, vector<16x128xf32> -> vector<16x128xf32>
    %106 = arith.addf %99, %105 : vector<16x128xf32>
    %c7_107 = arith.constant 7 : index
    %c0_108 = arith.constant 0 : index
    %c0_109 = arith.constant 0 : index
    %107 = vector.load %arg8[%c7_107, %c0_108, %c0_109] : memref<9x64x128xf32, #tpu.memory_space<vmem>>, vector<1x64x128xf32>
    %108 = vector.shape_cast %107 : vector<1x64x128xf32> to vector<64x128xf32>
    %cst_110 = arith.constant dense<0.000000e+00> : vector<16x128xf32>
    %109 = tpu.matmul %102, %108, %cst_110 {dimension_numbers = #tpu.dot_dimension_numbers<[1], [0], [0], [1], [0, 0, 1, 1], [], []>} : vector<16x64xf32>, vector<64x128xf32>, vector<16x128xf32> -> vector<16x128xf32>
    %110 = arith.addf %106, %109 : vector<16x128xf32>
    %c8_111 = arith.constant 8 : index
    %c0_112 = arith.constant 0 : index
    %c0_113 = arith.constant 0 : index
    %111 = vector.load %arg8[%c8_111, %c0_112, %c0_113] : memref<9x64x128xf32, #tpu.memory_space<vmem>>, vector<1x64x128xf32>
    %112 = vector.shape_cast %111 : vector<1x64x128xf32> to vector<64x128xf32>
    %cst_114 = arith.constant dense<0.000000e+00> : vector<16x128xf32>
    %113 = tpu.matmul %102, %112, %cst_114 {dimension_numbers = #tpu.dot_dimension_numbers<[1], [0], [0], [1], [0, 0, 1, 1], [], []>} : vector<16x64xf32>, vector<64x128xf32>, vector<16x128xf32> -> vector<16x128xf32>
    %114 = arith.addf %110, %113 : vector<16x128xf32>
    %c0_115 = arith.constant 0 : index
    %c0_116 = arith.constant 0 : index
    %115 = vector.load %arg9[%c0_115, %c0_116] : memref<1x128xf32, #tpu.memory_space<vmem>>, vector<1x128xf32>
    %116 = vector.broadcast %115 : vector<1x128xf32> to vector<16x128xf32>
    %117 = arith.addf %114, %116 : vector<16x128xf32>
    %cst_117 = arith.constant 0.000000e+00 : f32
    %118 = vector.broadcast %cst_117 : f32 to vector<16x128xf32>
    %119 = arith.maximumf %117, %118 : vector<16x128xf32>
    %c0_118 = arith.constant 0 : index
    %c0_119 = arith.constant 0 : index
    %c0_120 = arith.constant 0 : index
    %120 = vector.load %arg10[%c0_118, %c0_119, %c0_120] : memref<2x8x16xf32, #tpu.memory_space<vmem>>, vector<1x8x16xf32>
    %121 = vector.shape_cast %120 : vector<1x8x16xf32> to vector<8x16xf32>
    %cst_121 = arith.constant dense<0.000000e+00> : vector<8x128xf32>
    %122 = tpu.matmul %121, %119, %cst_121 {dimension_numbers = #tpu.dot_dimension_numbers<[1], [0], [0], [1], [0, 0, 1, 1], [], []>} : vector<8x16xf32>, vector<16x128xf32>, vector<8x128xf32> -> vector<8x128xf32>
    %c0_122 = arith.constant 0 : index
    %c0_123 = arith.constant 0 : index
    %c0_124 = arith.constant 0 : index
    %123 = vector.load %arg11[%c0_122, %c0_123, %c0_124] : memref<2x128x64xf32, #tpu.memory_space<vmem>>, vector<1x128x64xf32>
    %124 = vector.shape_cast %123 : vector<1x128x64xf32> to vector<128x64xf32>
    %cst_125 = arith.constant dense<0.000000e+00> : vector<8x64xf32>
    %125 = tpu.matmul %122, %124, %cst_125 {dimension_numbers = #tpu.dot_dimension_numbers<[1], [0], [0], [1], [0, 0, 1, 1], [], []>} : vector<8x128xf32>, vector<128x64xf32>, vector<8x64xf32> -> vector<8x64xf32>
    %c1_126 = arith.constant 1 : index
    %c0_127 = arith.constant 0 : index
    %c0_128 = arith.constant 0 : index
    %126 = vector.load %arg11[%c1_126, %c0_127, %c0_128] : memref<2x128x64xf32, #tpu.memory_space<vmem>>, vector<1x128x64xf32>
    %127 = vector.shape_cast %126 : vector<1x128x64xf32> to vector<128x64xf32>
    %cst_129 = arith.constant dense<0.000000e+00> : vector<8x64xf32>
    %128 = tpu.matmul %122, %127, %cst_129 {dimension_numbers = #tpu.dot_dimension_numbers<[1], [0], [0], [1], [0, 0, 1, 1], [], []>} : vector<8x128xf32>, vector<128x64xf32>, vector<8x64xf32> -> vector<8x64xf32>
    %129 = arith.maximumf %125, %128 : vector<8x64xf32>
    %c1_130 = arith.constant 1 : index
    %c0_131 = arith.constant 0 : index
    %c0_132 = arith.constant 0 : index
    %130 = vector.load %arg10[%c1_130, %c0_131, %c0_132] : memref<2x8x16xf32, #tpu.memory_space<vmem>>, vector<1x8x16xf32>
    %131 = vector.shape_cast %130 : vector<1x8x16xf32> to vector<8x16xf32>
    %cst_133 = arith.constant dense<0.000000e+00> : vector<8x128xf32>
    %132 = tpu.matmul %131, %119, %cst_133 {dimension_numbers = #tpu.dot_dimension_numbers<[1], [0], [0], [1], [0, 0, 1, 1], [], []>} : vector<8x16xf32>, vector<16x128xf32>, vector<8x128xf32> -> vector<8x128xf32>
    %c0_134 = arith.constant 0 : index
    %c0_135 = arith.constant 0 : index
    %c0_136 = arith.constant 0 : index
    %133 = vector.load %arg11[%c0_134, %c0_135, %c0_136] : memref<2x128x64xf32, #tpu.memory_space<vmem>>, vector<1x128x64xf32>
    %134 = vector.shape_cast %133 : vector<1x128x64xf32> to vector<128x64xf32>
    %cst_137 = arith.constant dense<0.000000e+00> : vector<8x64xf32>
    %135 = tpu.matmul %132, %134, %cst_137 {dimension_numbers = #tpu.dot_dimension_numbers<[1], [0], [0], [1], [0, 0, 1, 1], [], []>} : vector<8x128xf32>, vector<128x64xf32>, vector<8x64xf32> -> vector<8x64xf32>
    %136 = arith.maximumf %129, %135 : vector<8x64xf32>
    %c1_138 = arith.constant 1 : index
    %c0_139 = arith.constant 0 : index
    %c0_140 = arith.constant 0 : index
    %137 = vector.load %arg11[%c1_138, %c0_139, %c0_140] : memref<2x128x64xf32, #tpu.memory_space<vmem>>, vector<1x128x64xf32>
    %138 = vector.shape_cast %137 : vector<1x128x64xf32> to vector<128x64xf32>
    %cst_141 = arith.constant dense<0.000000e+00> : vector<8x64xf32>
    %139 = tpu.matmul %132, %138, %cst_141 {dimension_numbers = #tpu.dot_dimension_numbers<[1], [0], [0], [1], [0, 0, 1, 1], [], []>} : vector<8x128xf32>, vector<128x64xf32>, vector<8x64xf32> -> vector<8x64xf32>
    %140 = arith.maximumf %136, %139 : vector<8x64xf32>
    %c0_142 = arith.constant 0 : index
    %c0_143 = arith.constant 0 : index
    %c0_144 = arith.constant 0 : index
    %141 = vector.load %arg12[%c0_142, %c0_143, %c0_144] : memref<4x2x8xf32, #tpu.memory_space<vmem>>, vector<1x2x8xf32>
    %142 = vector.shape_cast %141 : vector<1x2x8xf32> to vector<2x8xf32>
    %cst_145 = arith.constant dense<0.000000e+00> : vector<2x64xf32>
    %143 = tpu.matmul %142, %140, %cst_145 {dimension_numbers = #tpu.dot_dimension_numbers<[1], [0], [0], [1], [0, 0, 1, 1], [], []>} : vector<2x8xf32>, vector<8x64xf32>, vector<2x64xf32> -> vector<2x64xf32>
    %c0_146 = arith.constant 0 : index
    %c0_147 = arith.constant 0 : index
    %c0_148 = arith.constant 0 : index
    %144 = vector.load %arg13[%c0_146, %c0_147, %c0_148] : memref<4x64x32xf32, #tpu.memory_space<vmem>>, vector<1x64x32xf32>
    %145 = vector.shape_cast %144 : vector<1x64x32xf32> to vector<64x32xf32>
    %cst_149 = arith.constant dense<0.000000e+00> : vector<2x32xf32>
    %146 = tpu.matmul %143, %145, %cst_149 {dimension_numbers = #tpu.dot_dimension_numbers<[1], [0], [0], [1], [0, 0, 1, 1], [], []>} : vector<2x64xf32>, vector<64x32xf32>, vector<2x32xf32> -> vector<2x32xf32>
    %c1_150 = arith.constant 1 : index
    %c0_151 = arith.constant 0 : index
    %c0_152 = arith.constant 0 : index
    %147 = vector.load %arg12[%c1_150, %c0_151, %c0_152] : memref<4x2x8xf32, #tpu.memory_space<vmem>>, vector<1x2x8xf32>
    %148 = vector.shape_cast %147 : vector<1x2x8xf32> to vector<2x8xf32>
    %cst_153 = arith.constant dense<0.000000e+00> : vector<2x64xf32>
    %149 = tpu.matmul %148, %140, %cst_153 {dimension_numbers = #tpu.dot_dimension_numbers<[1], [0], [0], [1], [0, 0, 1, 1], [], []>} : vector<2x8xf32>, vector<8x64xf32>, vector<2x64xf32> -> vector<2x64xf32>
    %c1_154 = arith.constant 1 : index
    %c0_155 = arith.constant 0 : index
    %c0_156 = arith.constant 0 : index
    %150 = vector.load %arg13[%c1_154, %c0_155, %c0_156] : memref<4x64x32xf32, #tpu.memory_space<vmem>>, vector<1x64x32xf32>
    %151 = vector.shape_cast %150 : vector<1x64x32xf32> to vector<64x32xf32>
    %cst_157 = arith.constant dense<0.000000e+00> : vector<2x32xf32>
    %152 = tpu.matmul %149, %151, %cst_157 {dimension_numbers = #tpu.dot_dimension_numbers<[1], [0], [0], [1], [0, 0, 1, 1], [], []>} : vector<2x64xf32>, vector<64x32xf32>, vector<2x32xf32> -> vector<2x32xf32>
    %153 = arith.addf %146, %152 : vector<2x32xf32>
    %c2_158 = arith.constant 2 : index
    %c0_159 = arith.constant 0 : index
    %c0_160 = arith.constant 0 : index
    %154 = vector.load %arg12[%c2_158, %c0_159, %c0_160] : memref<4x2x8xf32, #tpu.memory_space<vmem>>, vector<1x2x8xf32>
    %155 = vector.shape_cast %154 : vector<1x2x8xf32> to vector<2x8xf32>
    %cst_161 = arith.constant dense<0.000000e+00> : vector<2x64xf32>
    %156 = tpu.matmul %155, %140, %cst_161 {dimension_numbers = #tpu.dot_dimension_numbers<[1], [0], [0], [1], [0, 0, 1, 1], [], []>} : vector<2x8xf32>, vector<8x64xf32>, vector<2x64xf32> -> vector<2x64xf32>
    %c2_162 = arith.constant 2 : index
    %c0_163 = arith.constant 0 : index
    %c0_164 = arith.constant 0 : index
    %157 = vector.load %arg13[%c2_162, %c0_163, %c0_164] : memref<4x64x32xf32, #tpu.memory_space<vmem>>, vector<1x64x32xf32>
    %158 = vector.shape_cast %157 : vector<1x64x32xf32> to vector<64x32xf32>
    %cst_165 = arith.constant dense<0.000000e+00> : vector<2x32xf32>
    %159 = tpu.matmul %156, %158, %cst_165 {dimension_numbers = #tpu.dot_dimension_numbers<[1], [0], [0], [1], [0, 0, 1, 1], [], []>} : vector<2x64xf32>, vector<64x32xf32>, vector<2x32xf32> -> vector<2x32xf32>
    %160 = arith.addf %153, %159 : vector<2x32xf32>
    %c3_166 = arith.constant 3 : index
    %c0_167 = arith.constant 0 : index
    %c0_168 = arith.constant 0 : index
    %161 = vector.load %arg12[%c3_166, %c0_167, %c0_168] : memref<4x2x8xf32, #tpu.memory_space<vmem>>, vector<1x2x8xf32>
    %162 = vector.shape_cast %161 : vector<1x2x8xf32> to vector<2x8xf32>
    %cst_169 = arith.constant dense<0.000000e+00> : vector<2x64xf32>
    %163 = tpu.matmul %162, %140, %cst_169 {dimension_numbers = #tpu.dot_dimension_numbers<[1], [0], [0], [1], [0, 0, 1, 1], [], []>} : vector<2x8xf32>, vector<8x64xf32>, vector<2x64xf32> -> vector<2x64xf32>
    %c3_170 = arith.constant 3 : index
    %c0_171 = arith.constant 0 : index
    %c0_172 = arith.constant 0 : index
    %164 = vector.load %arg13[%c3_170, %c0_171, %c0_172] : memref<4x64x32xf32, #tpu.memory_space<vmem>>, vector<1x64x32xf32>
    %165 = vector.shape_cast %164 : vector<1x64x32xf32> to vector<64x32xf32>
    %cst_173 = arith.constant dense<0.000000e+00> : vector<2x32xf32>
    %166 = tpu.matmul %163, %165, %cst_173 {dimension_numbers = #tpu.dot_dimension_numbers<[1], [0], [0], [1], [0, 0, 1, 1], [], []>} : vector<2x64xf32>, vector<64x32xf32>, vector<2x32xf32> -> vector<2x32xf32>
    %167 = arith.addf %160, %166 : vector<2x32xf32>
    %c0_174 = arith.constant 0 : index
    %c0_175 = arith.constant 0 : index
    %168 = vector.load %arg14[%c0_174, %c0_175] : memref<1x32xf32, #tpu.memory_space<vmem>>, vector<1x32xf32>
    %169 = vector.broadcast %168 : vector<1x32xf32> to vector<2x32xf32>
    %170 = arith.addf %167, %169 : vector<2x32xf32>
    %cst_176 = arith.constant 0.000000e+00 : f32
    %171 = vector.broadcast %cst_176 : f32 to vector<2x32xf32>
    %172 = arith.maximumf %170, %171 : vector<2x32xf32>
    %c0_177 = arith.constant 0 : index
    %c0_178 = arith.constant 0 : index
    %173 = vector.load %arg15[%c0_177, %c0_178] : memref<32x10xf32, #tpu.memory_space<vmem>>, vector<32x10xf32>
    %cst_179 = arith.constant dense<0.000000e+00> : vector<2x10xf32>
    %174 = tpu.matmul %172, %173, %cst_179 {dimension_numbers = #tpu.dot_dimension_numbers<[1], [0], [0], [1], [0, 0, 1, 1], [], []>} : vector<2x32xf32>, vector<32x10xf32>, vector<2x10xf32> -> vector<2x10xf32>
    %c0_180 = arith.constant 0 : index
    %c0_181 = arith.constant 0 : index
    %175 = vector.load %arg16[%c0_180, %c0_181] : memref<1x10xf32, #tpu.memory_space<vmem>>, vector<1x10xf32>
    %176 = vector.broadcast %175 : vector<1x10xf32> to vector<2x10xf32>
    %177 = arith.addf %174, %176 : vector<2x10xf32>
    %c0_182 = arith.constant 0 : index
    %c0_183 = arith.constant 0 : index
    %178 = vector.load %arg17[%c0_182, %c0_183] : memref<2x10xf32, #tpu.memory_space<vmem>>, vector<2x10xf32>
    tpu.vector_store %arg17[%c0_182, %c0_183], %177 {strides = array<i32>} : memref<2x10xf32, #tpu.memory_space<vmem>>, vector<2x10xf32>,
    return
  }
  func.func @transform_0(%arg0: i32) -> (i32, i32) {
    %c0_i32 = arith.constant 0 : i32
    %c0_i32_0 = arith.constant 0 : i32
    %c0_i32_1 = arith.constant 0 : i32
    return %c0_i32, %c0_i32_0 : i32, i32
  }
  func.func @transform_1(%arg0: i32) -> (i32, i32, i32) {
    %c0_i32 = arith.constant 0 : i32
    %c0_i32_0 = arith.constant 0 : i32
    %c0_i32_1 = arith.constant 0 : i32
    %c0_i32_2 = arith.constant 0 : i32
    return %c0_i32, %c0_i32_0, %c0_i32_1 : i32, i32, i32
  }
  func.func @transform_2(%arg0: i32) -> (i32, i32, i32) {
    %c0_i32 = arith.constant 0 : i32
    %c0_i32_0 = arith.constant 0 : i32
    %c0_i32_1 = arith.constant 0 : i32
    %c0_i32_2 = arith.constant 0 : i32
    return %c0_i32, %c0_i32_0, %c0_i32_1 : i32, i32, i32
  }
  func.func @transform_3(%arg0: i32) -> (i32, i32) {
    %c0_i32 = arith.constant 0 : i32
    %c0_i32_0 = arith.constant 0 : i32
    %c0_i32_1 = arith.constant 0 : i32
    return %c0_i32, %c0_i32_0 : i32, i32
  }
  func.func @transform_4(%arg0: i32) -> (i32, i32, i32) {
    %c0_i32 = arith.constant 0 : i32
    %c0_i32_0 = arith.constant 0 : i32
    %c0_i32_1 = arith.constant 0 : i32
    %c0_i32_2 = arith.constant 0 : i32
    return %c0_i32, %c0_i32_0, %c0_i32_1 : i32, i32, i32
  }
  func.func @transform_5(%arg0: i32) -> (i32, i32, i32) {
    %c0_i32 = arith.constant 0 : i32
    %c0_i32_0 = arith.constant 0 : i32
    %c0_i32_1 = arith.constant 0 : i32
    %c0_i32_2 = arith.constant 0 : i32
    return %c0_i32, %c0_i32_0, %c0_i32_1 : i32, i32, i32
  }
  func.func @transform_6(%arg0: i32) -> (i32, i32, i32) {
    %c0_i32 = arith.constant 0 : i32
    %c0_i32_0 = arith.constant 0 : i32
    %c0_i32_1 = arith.constant 0 : i32
    %c0_i32_2 = arith.constant 0 : i32
    return %c0_i32, %c0_i32_0, %c0_i32_1 : i32, i32, i32
  }
  func.func @transform_7(%arg0: i32) -> (i32, i32, i32) {
    %c0_i32 = arith.constant 0 : i32
    %c0_i32_0 = arith.constant 0 : i32
    %c0_i32_1 = arith.constant 0 : i32
    %c0_i32_2 = arith.constant 0 : i32
    return %c0_i32, %c0_i32_0, %c0_i32_1 : i32, i32, i32
  }
  func.func @transform_8(%arg0: i32) -> (i32, i32) {
    %c0_i32 = arith.constant 0 : i32
    %c0_i32_0 = arith.constant 0 : i32
    %c0_i32_1 = arith.constant 0 : i32
    return %c0_i32, %c0_i32_0 : i32, i32
  }
  func.func @transform_9(%arg0: i32) -> (i32, i32, i32) {
    %c0_i32 = arith.constant 0 : i32
    %c0_i32_0 = arith.constant 0 : i32
    %c0_i32_1 = arith.constant 0 : i32
    %c0_i32_2 = arith.constant 0 : i32
    return %c0_i32, %c0_i32_0, %c0_i32_1 : i32, i32, i32
  }
  func.func @transform_10(%arg0: i32) -> (i32, i32, i32) {
    %c0_i32 = arith.constant 0 : i32
    %c0_i32_0 = arith.constant 0 : i32
    %c0_i32_1 = arith.constant 0 : i32
    %c0_i32_2 = arith.constant 0 : i32
    return %c0_i32, %c0_i32_0, %c0_i32_1 : i32, i32, i32
  }
  func.func @transform_11(%arg0: i32) -> (i32, i32, i32) {
    %c0_i32 = arith.constant 0 : i32
    %c0_i32_0 = arith.constant 0 : i32
    %c0_i32_1 = arith.constant 0 : i32
    %c0_i32_2 = arith.constant 0 : i32
    return %c0_i32, %c0_i32_0, %c0_i32_1 : i32, i32, i32
  }
  func.func @transform_12(%arg0: i32) -> (i32, i32, i32) {
    %c0_i32 = arith.constant 0 : i32
    %c0_i32_0 = arith.constant 0 : i32
    %c0_i32_1 = arith.constant 0 : i32
    %c0_i32_2 = arith.constant 0 : i32
    return %c0_i32, %c0_i32_0, %c0_i32_1 : i32, i32, i32
  }
  func.func @transform_13(%arg0: i32) -> (i32, i32) {
    %c0_i32 = arith.constant 0 : i32
    %c0_i32_0 = arith.constant 0 : i32
    %c0_i32_1 = arith.constant 0 : i32
    return %c0_i32, %c0_i32_0 : i32, i32
  }
  func.func @transform_14(%arg0: i32) -> (i32, i32) {
    %c0_i32 = arith.constant 0 : i32
    %c0_i32_0 = arith.constant 0 : i32
    %c0_i32_1 = arith.constant 0 : i32
    return %c0_i32, %c0_i32_0 : i32, i32
  }
  func.func @transform_15(%arg0: i32) -> (i32, i32) {
    %c0_i32 = arith.constant 0 : i32
    %c0_i32_0 = arith.constant 0 : i32
    %c0_i32_1 = arith.constant 0 : i32
    return %c0_i32, %c0_i32_0 : i32, i32
  }
  func.func @transform_16(%arg0: i32) -> (i32, i32) {
    %c0_i32 = arith.constant 0 : i32
    %c0_i32_0 = arith.constant 0 : i32
    %c0_i32_1 = arith.constant 0 : i32
    return %c0_i32, %c0_i32_0 : i32, i32
  }
}

</mosaic_0001>

<llo_original>
// kernel: vgg_compressed_forward.1
$region0: #{vgg_compressed_forward.1}
  #allocation0 [shape = 'u32[]', space=smem, size = 0x4, offset = 0x4, fixed_abs, tag = 'smem constant byte address 0x4 - core index']
  #allocation1 [shape = 'u32[144,128]{1,0:T(1,128)}', space=vmem, size = 0x12000, scoped, tag = 'internal scratch']
  %s0 = inlined_call_operand.vmem [shape: f32[32,64], index: 0, kind: input, shape index: {}]
  %s1 = inlined_call_operand.vmem [shape: f32[3,32,32], index: 1, kind: input, shape index: {}]
  %s2 = inlined_call_operand.vmem [shape: f32[9,64,128], index: 2, kind: input, shape index: {}]
  %s3 = inlined_call_operand.vmem [shape: f32[1,128], index: 3, kind: input, shape index: {}]
  %s4 = inlined_call_operand.vmem [shape: f32[2,16,32], index: 4, kind: input, shape index: {}]
  %s5 = inlined_call_operand.vmem [shape: f32[2,128,64], index: 5, kind: input, shape index: {}]
  %s6 = inlined_call_operand.vmem [shape: f32[3,16,16], index: 6, kind: input, shape index: {}]
  %s7 = inlined_call_operand.vmem [shape: f32[9,64,128], index: 7, kind: input, shape index: {}]
  %s8 = inlined_call_operand.vmem [shape: f32[1,128], index: 8, kind: input, shape index: {}]
  %s9 = inlined_call_operand.vmem [shape: f32[2,8,16], index: 9, kind: input, shape index: {}]
  %s10 = inlined_call_operand.vmem [shape: f32[2,128,64], index: 10, kind: input, shape index: {}]
  %s11 = inlined_call_operand.vmem [shape: f32[4,2,8], index: 11, kind: input, shape index: {}]
  %s12 = inlined_call_operand.vmem [shape: f32[4,64,32], index: 12, kind: input, shape index: {}]
  %s13 = inlined_call_operand.vmem [shape: f32[1,32], index: 13, kind: input, shape index: {}]
  %s14 = inlined_call_operand.vmem [shape: f32[32,10], index: 14, kind: input, shape index: {}]
  %s15 = inlined_call_operand.vmem [shape: f32[1,10], index: 15, kind: input, shape index: {}]
  %s16 = inlined_call_operand.hbm [shape: f32[2,10], index: 16, kind: output, shape index: {}]
  %s17 = sld [smem:[#allocation0]]
  $region74: #{vgg_compressed_forward.1} parent=0
    _
  %s19 = ssub.s32 1, %s17
  %s20 = scalar_select 0, %s19, %s17
  $region1: #{vgg_compressed_forward.1} parent=0
    #allocation2 [shape = 'u8[1024]{0}', space=vmem, size = 0x400, scoped, tag = 'output window, operand 0, single buffered']
    #allocation3 [shape = 's32[1]{0}', space=sflag, size = 0x4, scoped, tag = 'scoped memory for vgg_compressed_forward.1']
    %21 = vsyncpa [#allocation3], 0
    // Predicated region
    $region2: #{vgg_compressed_forward.1} parent=1 // pred_check
      _
    $region3: #{vgg_compressed_forward.1} parent=1 // pred_check_branch
      %23 = sbr.rel (0) target = $region5
    $region4: #{vgg_compressed_forward.1} parent=1 // pred_region
      _
    $region5: #{vgg_compressed_forward.1} parent=1 // pred_fallthru
      _
    // Predicated region
    $region6: #{vgg_compressed_forward.1} parent=1 // pred_check
      _
    $region7: #{vgg_compressed_forward.1} parent=1 // pred_check_branch
      %25 = sbr.rel (0) target = $region9
    $region8: #{vgg_compressed_forward.1} parent=1 // pred_region
      _
    $region9: #{vgg_compressed_forward.1} parent=1 // pred_fallthru
      _
    // Predicated region
    $region10: #{vgg_compressed_forward.1} parent=1 // pred_check
      _
    $region11: #{vgg_compressed_forward.1} parent=1 // pred_check_branch
      %27 = sbr.rel (0) target = $region13
    $region12: #{vgg_compressed_forward.1} parent=1 // pred_region
      _
    $region13: #{vgg_compressed_forward.1} parent=1 // pred_fallthru
      _
    // Predicated region
    $region14: #{vgg_compressed_forward.1} parent=1 // pred_check
      _
    $region15: #{vgg_compressed_forward.1} parent=1 // pred_check_branch
      %29 = sbr.rel (0) target = $region17
    $region16: #{vgg_compressed_forward.1} parent=1 // pred_region
      _
    $region17: #{vgg_compressed_forward.1} parent=1 // pred_fallthru
      _
    // Predicated region
    $region18: #{vgg_compressed_forward.1} parent=1 // pred_check
      _
    $region19: #{vgg_compressed_forward.1} parent=1 // pred_check_branch
      %31 = sbr.rel (0) target = $region21
    $region20: #{vgg_compressed_forward.1} parent=1 // pred_region
      _
    $region21: #{vgg_compressed_forward.1} parent=1 // pred_fallthru
      _
    // Predicated region
    $region22: #{vgg_compressed_forward.1} parent=1 // pred_check
      _
    $region23: #{vgg_compressed_forward.1} parent=1 // pred_check_branch
      %33 = sbr.rel (0) target = $region25
    $region24: #{vgg_compressed_forward.1} parent=1 // pred_region
      _
    $region25: #{vgg_compressed_forward.1} parent=1 // pred_fallthru
      _
    // Predicated region
    $region26: #{vgg_compressed_forward.1} parent=1 // pred_check
      _
    $region27: #{vgg_compressed_forward.1} parent=1 // pred_check_branch
      %35 = sbr.rel (0) target = $region29
    $region28: #{vgg_compressed_forward.1} parent=1 // pred_region
      _
    $region29: #{vgg_compressed_forward.1} parent=1 // pred_fallthru
      _
    // Predicated region
    $region30: #{vgg_compressed_forward.1} parent=1 // pred_check
      _
    $region31: #{vgg_compressed_forward.1} parent=1 // pred_check_branch
      %37 = sbr.rel (0) target = $region33
    $region32: #{vgg_compressed_forward.1} parent=1 // pred_region
      _
    $region33: #{vgg_compressed_forward.1} parent=1 // pred_fallthru
      _
    // Predicated region
    $region34: #{vgg_compressed_forward.1} parent=1 // pred_check
      _
    $region35: #{vgg_compressed_forward.1} parent=1 // pred_check_branch
      %39 = sbr.rel (0) target = $region37
    $region36: #{vgg_compressed_forward.1} parent=1 // pred_region
      _
    $region37: #{vgg_compressed_forward.1} parent=1 // pred_fallthru
      _
    // Predicated region
    $region38: #{vgg_compressed_forward.1} parent=1 // pred_check
      _
    $region39: #{vgg_compressed_forward.1} parent=1 // pred_check_branch
      %41 = sbr.rel (0) target = $region41
    $region40: #{vgg_compressed_forward.1} parent=1 // pred_region
      _
    $region41: #{vgg_compressed_forward.1} parent=1 // pred_fallthru
      _
    // Predicated region
    $region42: #{vgg_compressed_forward.1} parent=1 // pred_check
      _
    $region43: #{vgg_compressed_forward.1} parent=1 // pred_check_branch
      %43 = sbr.rel (0) target = $region45
    $region44: #{vgg_compressed_forward.1} parent=1 // pred_region
      _
    $region45: #{vgg_compressed_forward.1} parent=1 // pred_fallthru
      _
    // Predicated region
    $region46: #{vgg_compressed_forward.1} parent=1 // pred_check
      _
    $region47: #{vgg_compressed_forward.1} parent=1 // pred_check_branch
      %45 = sbr.rel (0) target = $region49
    $region48: #{vgg_compressed_forward.1} parent=1 // pred_region
      _
    $region49: #{vgg_compressed_forward.1} parent=1 // pred_fallthru
      _
    // Predicated region
    $region50: #{vgg_compressed_forward.1} parent=1 // pred_check
      _
    $region51: #{vgg_compressed_forward.1} parent=1 // pred_check_branch
      %47 = sbr.rel (0) target = $region53
    $region52: #{vgg_compressed_forward.1} parent=1 // pred_region
      _
    $region53: #{vgg_compressed_forward.1} parent=1 // pred_fallthru
      _
    // Predicated region
    $region54: #{vgg_compressed_forward.1} parent=1 // pred_check
      _
    $region55: #{vgg_compressed_forward.1} parent=1 // pred_check_branch
      %49 = sbr.rel (0) target = $region57
    $region56: #{vgg_compressed_forward.1} parent=1 // pred_region
      _
    $region57: #{vgg_compressed_forward.1} parent=1 // pred_fallthru
      _
    // Predicated region
    $region58: #{vgg_compressed_forward.1} parent=1 // pred_check
      _
    $region59: #{vgg_compressed_forward.1} parent=1 // pred_check_branch
      %51 = sbr.rel (0) target = $region61
    $region60: #{vgg_compressed_forward.1} parent=1 // pred_region
      _
    $region61: #{vgg_compressed_forward.1} parent=1 // pred_fallthru
      _
    // Predicated region
    $region62: #{vgg_compressed_forward.1} parent=1 // pred_check
      _
    $region63: #{vgg_compressed_forward.1} parent=1 // pred_check_branch
      %53 = sbr.rel (0) target = $region65
    $region64: #{vgg_compressed_forward.1} parent=1 // pred_region
      _
    $region65: #{vgg_compressed_forward.1} parent=1 // pred_fallthru
      _
    %v54 = vld [vmem:[%s0] sm:$0xff]
    %v55 = vld [vmem:[%s0 + $0x8] sm:$0xff]
    %v56 = vld [vmem:[%s0 + $0x10] sm:$0xff]
    %v57 = vld [vmem:[%s0 + $0x18] sm:$0xff]
    %v58 = vld [vmem:[%s1] sm:$0xff]
    %v59 = vld [vmem:[%s1 + $0x8] sm:$0xff]
    %v60 = vld [vmem:[%s1 + $0x10] sm:$0xff]
    %v61 = vld [vmem:[%s1 + $0x18] sm:$0xff]
    %vm62 = vcmask 261120
    %v64 = vsel %vm62, %v58, 0
    %v67 = vsel %vm62, %v59, 0
    %v70 = vsel %vm62, %v60, 0
    %v73 = vsel %vm62, %v61, 0
    %75 = vmatprep.subr.mxu0 0.0
    %76 = vmatpush1.msra.mxu0 %v54
    %77 = vmatprep.subr.mxu0 0.0
    %78 = vmatpush1.msra.mxu0 %v55
    %79 = vmatprep.subr.mxu0 0.0
    %80 = vmatpush1.msra.mxu0 %v56
    %81 = vmatprep.subr.mxu0 0.0
    %82 = vmatpush1.msra.mxu0 %v57
    %83 = vmatprep.subr.mxu0 0.0
    %84 = vmatpush1.msra.mxu0 0.0
    %85 = vmatprep.subr.mxu0 0.0
    %86 = vmatpush1.msra.mxu0 0.0
    %87 = vmatprep.subr.mxu0 0.0
    %88 = vmatpush1.msra.mxu0 0.0
    %89 = vmatprep.subr.mxu0 0.0
    %90 = vmatpush1.msra.mxu0 0.0
    %91 = vmatprep.subr.mxu0 0.0
    %92 = vmatpush1.msra.mxu0 0.0
    %93 = vmatprep.subr.mxu0 0.0
    %94 = vmatpush1.msra.mxu0 0.0
    %95 = vmatprep.subr.mxu0 0.0
    %96 = vmatpush1.msra.mxu0 0.0
    %97 = vmatprep.subr.mxu0 0.0
    %98 = vmatpush1.msra.mxu0 0.0
    %99 = vmatprep.subr.mxu0 0.0
    %100 = vmatpush1.msra.mxu0 0.0
    %101 = vmatprep.subr.mxu0 0.0
    %102 = vmatpush1.msra.mxu0 0.0
    %103 = vmatprep.subr.mxu0 0.0
    %104 = vmatpush1.msra.mxu0 0.0
    %105 = vmatprep.subr.mxu0 0.0
    %106 = vmatpush1.msra.mxu0 0.0
    %107 = vmatprep.subr.mxu0 0.0
    %108 = vmatpush1.msra.mxu0 0.0
    %109 = vmatprep.subr.mxu0 0.0
    %110 = vmatpush1.msra.mxu0 0.0
    %111 = vmatprep.subr.mxu0 0.0
    %112 = vmatpush1.msra.mxu0 0.0
    %113 = vmatprep.subr.mxu0 0.0
    %114 = vmatpush1.msra.mxu0 0.0
    %115 = vmatprep.subr.mxu0 0.0
    %116 = vmatpush1.msra.mxu0 0.0
    %117 = vmatprep.subr.mxu0 0.0
    %118 = vmatpush1.msra.mxu0 0.0
    %119 = vmatprep.subr.mxu0 0.0
    %120 = vmatpush1.msra.mxu0 0.0
    %121 = vmatprep.subr.mxu0 0.0
    %122 = vmatpush1.msra.mxu0 0.0
    %123 = vmatprep.subr.mxu0 0.0
    %124 = vmatpush1.msra.mxu0 0.0
    %125 = vmatprep.subr.mxu0 0.0
    %126 = vmatpush1.msra.mxu0 0.0
    %127 = vmatprep.subr.mxu0 0.0
    %128 = vmatpush1.msra.mxu0 0.0
    %129 = vmatprep.subr.mxu0 0.0
    %130 = vmatpush1.msra.mxu0 0.0
    %131 = vmatprep.subr.mxu0 0.0
    %132 = vmatpush1.msra.mxu0 0.0
    %133 = vmatprep.subr.mxu0 0.0
    %134 = vmatpush1.msra.mxu0 0.0
    %135 = vmatprep.subr.mxu0 0.0
    %136 = vmatpush1.msra.mxu0 0.0
    %137 = vmatprep.subr.mxu0 0.0
    %138 = vmatpush1.msra.mxu0 0.0
    %139 = vmatprep.mubr.f32.mxu0 0.0
    %140 = vmatmul.mubr.f32.gmra.mrb[0].mxu0 %v64
    %v141 = vpop.f32.mrb[0].mxu0
    %v142 = vadd.f32 0.0, %v141
    %v143 = vpop.f32.mrb[0].mxu0
    %144 = vmatprep.mubr.f32.mxu0 0.0
    %145 = vmatmul.mubr.f32.gmra.mrb[0].mxu0 %v67
    %v146 = vpop.f32.mrb[0].mxu0
    %v147 = vadd.f32 0.0, %v146
    %v148 = vpop.f32.mrb[0].mxu0
    %149 = vmatprep.mubr.f32.mxu0 0.0
    %150 = vmatmul.mubr.f32.gmra.mrb[0].mxu0 %v70
    %v151 = vpop.f32.mrb[0].mxu0
    %v152 = vadd.f32 0.0, %v151
    %v153 = vpop.f32.mrb[0].mxu0
    %154 = vmatprep.mubr.f32.mxu0 0.0
    %155 = vmatmul.mubr.f32.gmra.mrb[0].mxu0 %v73
    %v156 = vpop.f32.mrb[0].mxu0
    %v157 = vadd.f32 0.0, %v156
    %v158 = vpop.f32.mrb[0].mxu0
    %159 = vdwg.mxu0
    %v160 = vld [vmem:[%s2] sm:$0xff]
    %v161 = vld [vmem:[%s2 + $0x8] sm:$0xff]
    %v162 = vld [vmem:[%s2 + $0x10] sm:$0xff]
    %v163 = vld [vmem:[%s2 + $0x18] sm:$0xff]
    %v164 = vld [vmem:[%s2 + $0x20] sm:$0xff]
    %v165 = vld [vmem:[%s2 + $0x28] sm:$0xff]
    %v166 = vld [vmem:[%s2 + $0x30] sm:$0xff]
    %v167 = vld [vmem:[%s2 + $0x38] sm:$0xff]
    %s168 = scalar_lea.vmem %s2, 64
    %v169 = vld [vmem:[%s168] sm:$0xff]
    %v170 = vld [vmem:[%s168 + $0x8] sm:$0xff]
    %v171 = vld [vmem:[%s168 + $0x10] sm:$0xff]
    %v172 = vld [vmem:[%s168 + $0x18] sm:$0xff]
    %v173 = vld [vmem:[%s168 + $0x20] sm:$0xff]
    %v174 = vld [vmem:[%s168 + $0x28] sm:$0xff]
    %v175 = vld [vmem:[%s168 + $0x30] sm:$0xff]
    %v176 = vld [vmem:[%s168 + $0x38] sm:$0xff]
    %vm177 = vcmask 523264
    %v179 = vsel %vm177, %v142, 0
    %v182 = vsel %vm177, %v147, 0
    %v185 = vsel %vm177, %v152, 0
    %v188 = vsel %vm177, %v157, 0
    %190 = vmatprep.subr.mxu0 0.0
    %191 = vmatpush1.msra.mxu0 %v169
    %192 = vmatprep.subr.mxu0 0.0
    %193 = vmatpush1.msra.mxu0 %v170
    %194 = vmatprep.subr.mxu0 0.0
    %195 = vmatpush1.msra.mxu0 %v171
    %196 = vmatprep.subr.mxu0 0.0
    %197 = vmatpush1.msra.mxu0 %v172
    %198 = vmatprep.subr.mxu0 0.0
    %199 = vmatpush1.msra.mxu0 %v173
    %200 = vmatprep.subr.mxu0 0.0
    %201 = vmatpush1.msra.mxu0 %v174
    %202 = vmatprep.subr.mxu0 0.0
    %203 = vmatpush1.msra.mxu0 %v175
    %204 = vmatprep.subr.mxu0 0.0
    %205 = vmatpush1.msra.mxu0 %v176
    %206 = vmatprep.subr.mxu0 0.0
    %207 = vmatpush1.msra.mxu0 0.0
    %208 = vmatprep.subr.mxu0 0.0
    %209 = vmatpush1.msra.mxu0 0.0
    %210 = vmatprep.subr.mxu0 0.0
    %211 = vmatpush1.msra.mxu0 0.0
    %212 = vmatprep.subr.mxu0 0.0
    %213 = vmatpush1.msra.mxu0 0.0
    %214 = vmatprep.subr.mxu0 0.0
    %215 = vmatpush1.msra.mxu0 0.0
    %216 = vmatprep.subr.mxu0 0.0
    %217 = vmatpush1.msra.mxu0 0.0
    %218 = vmatprep.subr.mxu0 0.0
    %219 = vmatpush1.msra.mxu0 0.0
    %220 = vmatprep.subr.mxu0 0.0
    %221 = vmatpush1.msra.mxu0 0.0
    %222 = vmatprep.subr.mxu0 0.0
    %223 = vmatpush1.msra.mxu0 0.0
    %224 = vmatprep.subr.mxu0 0.0
    %225 = vmatpush1.msra.mxu0 0.0
    %226 = vmatprep.subr.mxu0 0.0
    %227 = vmatpush1.msra.mxu0 0.0
    %228 = vmatprep.subr.mxu0 0.0
    %229 = vmatpush1.msra.mxu0 0.0
    %230 = vmatprep.subr.mxu0 0.0
    %231 = vmatpush1.msra.mxu0 0.0
    %232 = vmatprep.subr.mxu0 0.0
    %233 = vmatpush1.msra.mxu0 0.0
    %234 = vmatprep.subr.mxu0 0.0
    %235 = vmatpush1.msra.mxu0 0.0
    %236 = vmatprep.subr.mxu0 0.0
    %237 = vmatpush1.msra.mxu0 0.0
    %238 = vmatprep.subr.mxu0 0.0
    %239 = vmatpush1.msra.mxu0 0.0
    %240 = vmatprep.subr.mxu0 0.0
    %241 = vmatpush1.msra.mxu0 0.0
    %242 = vmatprep.subr.mxu0 0.0
    %243 = vmatpush1.msra.mxu0 0.0
    %244 = vmatprep.subr.mxu0 0.0
    %245 = vmatpush1.msra.mxu0 0.0
    %246 = vmatprep.subr.mxu0 0.0
    %247 = vmatpush1.msra.mxu0 0.0
    %248 = vmatprep.subr.mxu0 0.0
    %249 = vmatpush1.msra.mxu0 0.0
    %250 = vmatprep.subr.mxu0 0.0
    %251 = vmatpush1.msra.mxu0 0.0
    %252 = vmatprep.subr.mxu0 0.0
    %253 = vmatpush1.msra.mxu0 0.0
    %254 = vmatprep.mubr.f32.mxu0 0.0
    %255 = vmatmul.mubr.f32.gmra.mrb[0].mxu0 %v179
    %v256 = vpop.f32.mrb[0].mxu0
    %v257 = vadd.f32 0.0, %v256
    %v258 = vpop.f32.mrb[0].mxu0
    %259 = vmatprep.mubr.f32.mxu0 0.0
    %260 = vmatmul.mubr.f32.gmra.mrb[0].mxu0 %v182
    %v261 = vpop.f32.mrb[0].mxu0
    %v262 = vadd.f32 0.0, %v261
    %v263 = vpop.f32.mrb[0].mxu0
    %264 = vmatprep.mubr.f32.mxu0 0.0
    %265 = vmatmul.mubr.f32.gmra.mrb[0].mxu0 %v185
    %v266 = vpop.f32.mrb[0].mxu0
    %v267 = vadd.f32 0.0, %v266
    %v268 = vpop.f32.mrb[0].mxu0
    %269 = vmatprep.mubr.f32.mxu0 0.0
    %270 = vmatmul.mubr.f32.gmra.mrb[0].mxu0 %v188
    %v271 = vpop.f32.mrb[0].mxu0
    %v272 = vadd.f32 0.0, %v271
    %v273 = vpop.f32.mrb[0].mxu0
    %274 = vdwg.mxu0
    %275 = vmatprep.subr.mxu0 0.0
    %276 = vmatpush1.msra.mxu0 %v160
    %277 = vmatprep.subr.mxu0 0.0
    %278 = vmatpush1.msra.mxu0 %v161
    %279 = vmatprep.subr.mxu0 0.0
    %280 = vmatpush1.msra.mxu0 %v162
    %281 = vmatprep.subr.mxu0 0.0
    %282 = vmatpush1.msra.mxu0 %v163
    %283 = vmatprep.subr.mxu0 0.0
    %284 = vmatpush1.msra.mxu0 %v164
    %285 = vmatprep.subr.mxu0 0.0
    %286 = vmatpush1.msra.mxu0 %v165
    %287 = vmatprep.subr.mxu0 0.0
    %288 = vmatpush1.msra.mxu0 %v166
    %289 = vmatprep.subr.mxu0 0.0
    %290 = vmatpush1.msra.mxu0 %v167
    %291 = vmatprep.subr.mxu0 0.0
    %292 = vmatpush1.msra.mxu0 0.0
    %293 = vmatprep.subr.mxu0 0.0
    %294 = vmatpush1.msra.mxu0 0.0
    %295 = vmatprep.subr.mxu0 0.0
    %296 = vmatpush1.msra.mxu0 0.0
    %297 = vmatprep.subr.mxu0 0.0
    %298 = vmatpush1.msra.mxu0 0.0
    %299 = vmatprep.subr.mxu0 0.0
    %300 = vmatpush1.msra.mxu0 0.0
    %301 = vmatprep.subr.mxu0 0.0
    %302 = vmatpush1.msra.mxu0 0.0
    %303 = vmatprep.subr.mxu0 0.0
    %304 = vmatpush1.msra.mxu0 0.0
    %305 = vmatprep.subr.mxu0 0.0
    %306 = vmatpush1.msra.mxu0 0.0
    %307 = vmatprep.subr.mxu0 0.0
    %308 = vmatpush1.msra.mxu0 0.0
    %309 = vmatprep.subr.mxu0 0.0
    %310 = vmatpush1.msra.mxu0 0.0
    %311 = vmatprep.subr.mxu0 0.0
    %312 = vmatpush1.msra.mxu0 0.0
    %313 = vmatprep.subr.mxu0 0.0
    %314 = vmatpush1.msra.mxu0 0.0
    %315 = vmatprep.subr.mxu0 0.0
    %316 = vmatpush1.msra.mxu0 0.0
    %317 = vmatprep.subr.mxu0 0.0
    %318 = vmatpush1.msra.mxu0 0.0
    %319 = vmatprep.subr.mxu0 0.0
    %320 = vmatpush1.msra.mxu0 0.0
    %321 = vmatprep.subr.mxu0 0.0
    %322 = vmatpush1.msra.mxu0 0.0
    %323 = vmatprep.subr.mxu0 0.0
    %324 = vmatpush1.msra.mxu0 0.0
    %325 = vmatprep.subr.mxu0 0.0
    %326 = vmatpush1.msra.mxu0 0.0
    %327 = vmatprep.subr.mxu0 0.0
    %328 = vmatpush1.msra.mxu0 0.0
    %329 = vmatprep.subr.mxu0 0.0
    %330 = vmatpush1.msra.mxu0 0.0
    %331 = vmatprep.subr.mxu0 0.0
    %332 = vmatpush1.msra.mxu0 0.0
    %333 = vmatprep.subr.mxu0 0.0
    %334 = vmatpush1.msra.mxu0 0.0
    %335 = vmatprep.subr.mxu0 0.0
    %336 = vmatpush1.msra.mxu0 0.0
    %337 = vmatprep.subr.mxu0 0.0
    %338 = vmatpush1.msra.mxu0 0.0
    %339 = vmatprep.mubr.f32.mxu0 0.0
    %340 = vmatmul.mubr.f32.gmra.mrb[0].mxu0 %v179
    %v341 = vpop.f32.mrb[0].mxu0
    %v342 = vadd.f32 %v257, %v341
    %v343 = vpop.f32.mrb[0].mxu0
    %344 = vmatprep.mubr.f32.mxu0 0.0
    %345 = vmatmul.mubr.f32.gmra.mrb[0].mxu0 %v182
    %v346 = vpop.f32.mrb[0].mxu0
    %v347 = vadd.f32 %v262, %v346
    %v348 = vpop.f32.mrb[0].mxu0
    %349 = vmatprep.mubr.f32.mxu0 0.0
    %350 = vmatmul.mubr.f32.gmra.mrb[0].mxu0 %v185
    %v351 = vpop.f32.mrb[0].mxu0
    %v352 = vadd.f32 %v267, %v351
    %v353 = vpop.f32.mrb[0].mxu0
    %354 = vmatprep.mubr.f32.mxu0 0.0
    %355 = vmatmul.mubr.f32.gmra.mrb[0].mxu0 %v188
    %v356 = vpop.f32.mrb[0].mxu0
    %v357 = vadd.f32 %v272, %v356
    %v358 = vpop.f32.mrb[0].mxu0
    %359 = vdwg.mxu0
    %s360 = scalar_lea.vmem %s2, 128
    %v361 = vld [vmem:[%s360] sm:$0xff]
    %v362 = vld [vmem:[%s360 + $0x8] sm:$0xff]
    %v363 = vld [vmem:[%s360 + $0x10] sm:$0xff]
    %v364 = vld [vmem:[%s360 + $0x18] sm:$0xff]
    %v365 = vld [vmem:[%s360 + $0x20] sm:$0xff]
    %v366 = vld [vmem:[%s360 + $0x28] sm:$0xff]
    %v367 = vld [vmem:[%s360 + $0x30] sm:$0xff]
    %v368 = vld [vmem:[%s360 + $0x38] sm:$0xff]
    %369 = vmatprep.subr.mxu0 0.0
    %370 = vmatpush1.msra.mxu0 %v361
    %371 = vmatprep.subr.mxu0 0.0
    %372 = vmatpush1.msra.mxu0 %v362
    %373 = vmatprep.subr.mxu0 0.0
    %374 = vmatpush1.msra.mxu0 %v363
    %375 = vmatprep.subr.mxu0 0.0
    %376 = vmatpush1.msra.mxu0 %v364
    %377 = vmatprep.subr.mxu0 0.0
    %378 = vmatpush1.msra.mxu0 %v365
    %379 = vmatprep.subr.mxu0 0.0
    %380 = vmatpush1.msra.mxu0 %v366
    %381 = vmatprep.subr.mxu0 0.0
    %382 = vmatpush1.msra.mxu0 %v367
    %383 = vmatprep.subr.mxu0 0.0
    %384 = vmatpush1.msra.mxu0 %v368
    %385 = vmatprep.subr.mxu0 0.0
    %386 = vmatpush1.msra.mxu0 0.0
    %387 = vmatprep.subr.mxu0 0.0
    %388 = vmatpush1.msra.mxu0 0.0
    %389 = vmatprep.subr.mxu0 0.0
    %390 = vmatpush1.msra.mxu0 0.0
    %391 = vmatprep.subr.mxu0 0.0
    %392 = vmatpush1.msra.mxu0 0.0
    %393 = vmatprep.subr.mxu0 0.0
    %394 = vmatpush1.msra.mxu0 0.0
    %395 = vmatprep.subr.mxu0 0.0
    %396 = vmatpush1.msra.mxu0 0.0
    %397 = vmatprep.subr.mxu0 0.0
    %398 = vmatpush1.msra.mxu0 0.0
    %399 = vmatprep.subr.mxu0 0.0
    %400 = vmatpush1.msra.mxu0 0.0
    %401 = vmatprep.subr.mxu0 0.0
    %402 = vmatpush1.msra.mxu0 0.0
    %403 = vmatprep.subr.mxu0 0.0
    %404 = vmatpush1.msra.mxu0 0.0
    %405 = vmatprep.subr.mxu0 0.0
    %406 = vmatpush1.msra.mxu0 0.0
    %407 = vmatprep.subr.mxu0 0.0
    %408 = vmatpush1.msra.mxu0 0.0
    %409 = vmatprep.subr.mxu0 0.0
    %410 = vmatpush1.msra.mxu0 0.0
    %411 = vmatprep.subr.mxu0 0.0
    %412 = vmatpush1.msra.mxu0 0.0
    %413 = vmatprep.subr.mxu0 0.0
    %414 = vmatpush1.msra.mxu0 0.0
    %415 = vmatprep.subr.mxu0 0.0
    %416 = vmatpush1.msra.mxu0 0.0
    %417 = vmatprep.subr.mxu0 0.0
    %418 = vmatpush1.msra.mxu0 0.0
    %419 = vmatprep.subr.mxu0 0.0
    %420 = vmatpush1.msra.mxu0 0.0
    %421 = vmatprep.subr.mxu0 0.0
    %422 = vmatpush1.msra.mxu0 0.0
    %423 = vmatprep.subr.mxu0 0.0
    %424 = vmatpush1.msra.mxu0 0.0
    %425 = vmatprep.subr.mxu0 0.0
    %426 = vmatpush1.msra.mxu0 0.0
    %427 = vmatprep.subr.mxu0 0.0
    %428 = vmatpush1.msra.mxu0 0.0
    %429 = vmatprep.subr.mxu0 0.0
    %430 = vmatpush1.msra.mxu0 0.0
    %431 = vmatprep.subr.mxu0 0.0
    %432 = vmatpush1.msra.mxu0 0.0
    %433 = vmatprep.mubr.f32.mxu0 0.0
    %434 = vmatmul.mubr.f32.gmra.mrb[0].mxu0 %v179
    %v435 = vpop.f32.mrb[0].mxu0
    %v436 = vadd.f32 0.0, %v435
    %v437 = vpop.f32.mrb[0].mxu0
    %438 = vmatprep.mubr.f32.mxu0 0.0
    %439 = vmatmul.mubr.f32.gmra.mrb[0].mxu0 %v182
    %v440 = vpop.f32.mrb[0].mxu0
    %v441 = vadd.f32 0.0, %v440
    %v442 = vpop.f32.mrb[0].mxu0
    %443 = vmatprep.mubr.f32.mxu0 0.0
    %444 = vmatmul.mubr.f32.gmra.mrb[0].mxu0 %v185
    %v445 = vpop.f32.mrb[0].mxu0
    %v446 = vadd.f32 0.0, %v445
    %v447 = vpop.f32.mrb[0].mxu0
    %448 = vmatprep.mubr.f32.mxu0 0.0
    %449 = vmatmul.mubr.f32.gmra.mrb[0].mxu0 %v188
    %v450 = vpop.f32.mrb[0].mxu0
    %v451 = vadd.f32 0.0, %v450
    %v452 = vpop.f32.mrb[0].mxu0
    %453 = vdwg.mxu0
    %v454 = vadd.f32 %v342, %v436
    %v455 = vadd.f32 %v347, %v441
    %v456 = vadd.f32 %v352, %v446
    %v457 = vadd.f32 %v357, %v451
    %s458 = scalar_lea.vmem %s1, 32
    %v459 = vld [vmem:[%s458] sm:$0xff]
    %v460 = vld [vmem:[%s458 + $0x8] sm:$0xff]
    %v461 = vld [vmem:[%s458 + $0x10] sm:$0xff]
    %v462 = vld [vmem:[%s458 + $0x18] sm:$0xff]
    %v464 = vsel %vm62, %v459, 0
    %v467 = vsel %vm62, %v460, 0
    %v470 = vsel %vm62, %v461, 0
    %v473 = vsel %vm62, %v462, 0
    %475 = vmatprep.subr.mxu0 0.0
    %476 = vmatpush1.msra.mxu0 %v54
    %477 = vmatprep.subr.mxu0 0.0
    %478 = vmatpush1.msra.mxu0 %v55
    %479 = vmatprep.subr.mxu0 0.0
    %480 = vmatpush1.msra.mxu0 %v56
    %481 = vmatprep.subr.mxu0 0.0
    %482 = vmatpush1.msra.mxu0 %v57
    %483 = vmatprep.subr.mxu0 0.0
    %484 = vmatpush1.msra.mxu0 0.0
    %485 = vmatprep.subr.mxu0 0.0
    %486 = vmatpush1.msra.mxu0 0.0
    %487 = vmatprep.subr.mxu0 0.0
    %488 = vmatpush1.msra.mxu0 0.0
    %489 = vmatprep.subr.mxu0 0.0
    %490 = vmatpush1.msra.mxu0 0.0
    %491 = vmatprep.subr.mxu0 0.0
    %492 = vmatpush1.msra.mxu0 0.0
    %493 = vmatprep.subr.mxu0 0.0
    %494 = vmatpush1.msra.mxu0 0.0
    %495 = vmatprep.subr.mxu0 0.0
    %496 = vmatpush1.msra.mxu0 0.0
    %497 = vmatprep.subr.mxu0 0.0
    %498 = vmatpush1.msra.mxu0 0.0
    %499 = vmatprep.subr.mxu0 0.0
    %500 = vmatpush1.msra.mxu0 0.0
    %501 = vmatprep.subr.mxu0 0.0
    %502 = vmatpush1.msra.mxu0 0.0
    %503 = vmatprep.subr.mxu0 0.0
    %504 = vmatpush1.msra.mxu0 0.0
    %505 = vmatprep.subr.mxu0 0.0
    %506 = vmatpush1.msra.mxu0 0.0
    %507 = vmatprep.subr.mxu0 0.0
    %508 = vmatpush1.msra.mxu0 0.0
    %509 = vmatprep.subr.mxu0 0.0
    %510 = vmatpush1.msra.mxu0 0.0
    %511 = vmatprep.subr.mxu0 0.0
    %512 = vmatpush1.msra.mxu0 0.0
    %513 = vmatprep.subr.mxu0 0.0
    %514 = vmatpush1.msra.mxu0 0.0
    %515 = vmatprep.subr.mxu0 0.0
    %516 = vmatpush1.msra.mxu0 0.0
    %517 = vmatprep.subr.mxu0 0.0
    %518 = vmatpush1.msra.mxu0 0.0
    %519 = vmatprep.subr.mxu0 0.0
    %520 = vmatpush1.msra.mxu0 0.0
    %521 = vmatprep.subr.mxu0 0.0
    %522 = vmatpush1.msra.mxu0 0.0
    %523 = vmatprep.subr.mxu0 0.0
    %524 = vmatpush1.msra.mxu0 0.0
    %525 = vmatprep.subr.mxu0 0.0
    %526 = vmatpush1.msra.mxu0 0.0
    %527 = vmatprep.subr.mxu0 0.0
    %528 = vmatpush1.msra.mxu0 0.0
    %529 = vmatprep.subr.mxu0 0.0
    %530 = vmatpush1.msra.mxu0 0.0
    %531 = vmatprep.subr.mxu0 0.0
    %532 = vmatpush1.msra.mxu0 0.0
    %533 = vmatprep.subr.mxu0 0.0
    %534 = vmatpush1.msra.mxu0 0.0
    %535 = vmatprep.subr.mxu0 0.0
    %536 = vmatpush1.msra.mxu0 0.0
    %537 = vmatprep.subr.mxu0 0.0
    %538 = vmatpush1.msra.mxu0 0.0
    %539 = vmatprep.mubr.f32.mxu0 0.0
    %540 = vmatmul.mubr.f32.gmra.mrb[0].mxu0 %v464
    %v541 = vpop.f32.mrb[0].mxu0
    %v542 = vadd.f32 0.0, %v541
    %v543 = vpop.f32.mrb[0].mxu0
    %544 = vmatprep.mubr.f32.mxu0 0.0
    %545 = vmatmul.mubr.f32.gmra.mrb[0].mxu0 %v467
    %v546 = vpop.f32.mrb[0].mxu0
    %v547 = vadd.f32 0.0, %v546
    %v548 = vpop.f32.mrb[0].mxu0
    %549 = vmatprep.mubr.f32.mxu0 0.0
    %550 = vmatmul.mubr.f32.gmra.mrb[0].mxu0 %v470
    %v551 = vpop.f32.mrb[0].mxu0
    %v552 = vadd.f32 0.0, %v551
    %v553 = vpop.f32.mrb[0].mxu0
    %554 = vmatprep.mubr.f32.mxu0 0.0
    %555 = vmatmul.mubr.f32.gmra.mrb[0].mxu0 %v473
    %v556 = vpop.f32.mrb[0].mxu0
    %v557 = vadd.f32 0.0, %v556
    %v558 = vpop.f32.mrb[0].mxu0
    %559 = vdwg.mxu0
    %s560 = scalar_lea.vmem %s2, 192
    %v561 = vld [vmem:[%s560] sm:$0xff]
    %v562 = vld [vmem:[%s560 + $0x8] sm:$0xff]
    %v563 = vld [vmem:[%s560 + $0x10] sm:$0xff]
    %v564 = vld [vmem:[%s560 + $0x18] sm:$0xff]
    %v565 = vld [vmem:[%s560 + $0x20] sm:$0xff]
    %v566 = vld [vmem:[%s560 + $0x28] sm:$0xff]
    %v567 = vld [vmem:[%s560 + $0x30] sm:$0xff]
    %v568 = vld [vmem:[%s560 + $0x38] sm:$0xff]
    %v570 = vsel %vm177, %v542, 0
    %v573 = vsel %vm177, %v547, 0
    %v576 = vsel %vm177, %v552, 0
    %v579 = vsel %vm177, %v557, 0
    %581 = vmatprep.subr.mxu0 0.0
    %582 = vmatpush1.msra.mxu0 %v561
    %583 = vmatprep.subr.mxu0 0.0
    %584 = vmatpush1.msra.mxu0 %v562
    %585 = vmatprep.subr.mxu0 0.0
    %586 = vmatpush1.msra.mxu0 %v563
    %587 = vmatprep.subr.mxu0 0.0
    %588 = vmatpush1.msra.mxu0 %v564
    %589 = vmatprep.subr.mxu0 0.0
    %590 = vmatpush1.msra.mxu0 %v565
    %591 = vmatprep.subr.mxu0 0.0
    %592 = vmatpush1.msra.mxu0 %v566
    %593 = vmatprep.subr.mxu0 0.0
    %594 = vmatpush1.msra.mxu0 %v567
    %595 = vmatprep.subr.mxu0 0.0
    %596 = vmatpush1.msra.mxu0 %v568
    %597 = vmatprep.subr.mxu0 0.0
    %598 = vmatpush1.msra.mxu0 0.0
    %599 = vmatprep.subr.mxu0 0.0
    %600 = vmatpush1.msra.mxu0 0.0
    %601 = vmatprep.subr.mxu0 0.0
    %602 = vmatpush1.msra.mxu0 0.0
    %603 = vmatprep.subr.mxu0 0.0
    %604 = vmatpush1.msra.mxu0 0.0
    %605 = vmatprep.subr.mxu0 0.0
    %606 = vmatpush1.msra.mxu0 0.0
    %607 = vmatprep.subr.mxu0 0.0
    %608 = vmatpush1.msra.mxu0 0.0
    %609 = vmatprep.subr.mxu0 0.0
    %610 = vmatpush1.msra.mxu0 0.0
    %611 = vmatprep.subr.mxu0 0.0
    %612 = vmatpush1.msra.mxu0 0.0
    %613 = vmatprep.subr.mxu0 0.0
    %614 = vmatpush1.msra.mxu0 0.0
    %615 = vmatprep.subr.mxu0 0.0
    %616 = vmatpush1.msra.mxu0 0.0
    %617 = vmatprep.subr.mxu0 0.0
    %618 = vmatpush1.msra.mxu0 0.0
    %619 = vmatprep.subr.mxu0 0.0
    %620 = vmatpush1.msra.mxu0 0.0
    %621 = vmatprep.subr.mxu0 0.0
    %622 = vmatpush1.msra.mxu0 0.0
    %623 = vmatprep.subr.mxu0 0.0
    %624 = vmatpush1.msra.mxu0 0.0
    %625 = vmatprep.subr.mxu0 0.0
    %626 = vmatpush1.msra.mxu0 0.0
    %627 = vmatprep.subr.mxu0 0.0
    %628 = vmatpush1.msra.mxu0 0.0
    %629 = vmatprep.subr.mxu0 0.0
    %630 = vmatpush1.msra.mxu0 0.0
    %631 = vmatprep.subr.mxu0 0.0
    %632 = vmatpush1.msra.mxu0 0.0
    %633 = vmatprep.subr.mxu0 0.0
    %634 = vmatpush1.msra.mxu0 0.0
    %635 = vmatprep.subr.mxu0 0.0
    %636 = vmatpush1.msra.mxu0 0.0
    %637 = vmatprep.subr.mxu0 0.0
    %638 = vmatpush1.msra.mxu0 0.0
    %639 = vmatprep.subr.mxu0 0.0
    %640 = vmatpush1.msra.mxu0 0.0
    %641 = vmatprep.subr.mxu0 0.0
    %642 = vmatpush1.msra.mxu0 0.0
    %643 = vmatprep.subr.mxu0 0.0
    %644 = vmatpush1.msra.mxu0 0.0
    %645 = vmatprep.mubr.f32.mxu0 0.0
    %646 = vmatmul.mubr.f32.gmra.mrb[0].mxu0 %v570
    %v647 = vpop.f32.mrb[0].mxu0
    %v648 = vadd.f32 0.0, %v647
    %v649 = vpop.f32.mrb[0].mxu0
    %650 = vmatprep.mubr.f32.mxu0 0.0
    %651 = vmatmul.mubr.f32.gmra.mrb[0].mxu0 %v573
    %v652 = vpop.f32.mrb[0].mxu0
    %v653 = vadd.f32 0.0, %v652
    %v654 = vpop.f32.mrb[0].mxu0
    %655 = vmatprep.mubr.f32.mxu0 0.0
    %656 = vmatmul.mubr.f32.gmra.mrb[0].mxu0 %v576
    %v657 = vpop.f32.mrb[0].mxu0
    %v658 = vadd.f32 0.0, %v657
    %v659 = vpop.f32.mrb[0].mxu0
    %660 = vmatprep.mubr.f32.mxu0 0.0
    %661 = vmatmul.mubr.f32.gmra.mrb[0].mxu0 %v579
    %v662 = vpop.f32.mrb[0].mxu0
    %v663 = vadd.f32 0.0, %v662
    %v664 = vpop.f32.mrb[0].mxu0
    %665 = vdwg.mxu0
    %v666 = vadd.f32 %v454, %v648
    %v667 = vadd.f32 %v455, %v653
    %v668 = vadd.f32 %v456, %v658
    %v669 = vadd.f32 %v457, %v663
    %s670 = scalar_lea.vmem %s2, 256
    %v671 = vld [vmem:[%s670] sm:$0xff]
    %v672 = vld [vmem:[%s670 + $0x8] sm:$0xff]
    %v673 = vld [vmem:[%s670 + $0x10] sm:$0xff]
    %v674 = vld [vmem:[%s670 + $0x18] sm:$0xff]
    %v675 = vld [vmem:[%s670 + $0x20] sm:$0xff]
    %v676 = vld [vmem:[%s670 + $0x28] sm:$0xff]
    %v677 = vld [vmem:[%s670 + $0x30] sm:$0xff]
    %v678 = vld [vmem:[%s670 + $0x38] sm:$0xff]
    %679 = vmatprep.subr.mxu0 0.0
    %680 = vmatpush1.msra.mxu0 %v671
    %681 = vmatprep.subr.mxu0 0.0
    %682 = vmatpush1.msra.mxu0 %v672
    %683 = vmatprep.subr.mxu0 0.0
    %684 = vmatpush1.msra.mxu0 %v673
    %685 = vmatprep.subr.mxu0 0.0
    %686 = vmatpush1.msra.mxu0 %v674
    %687 = vmatprep.subr.mxu0 0.0
    %688 = vmatpush1.msra.mxu0 %v675
    %689 = vmatprep.subr.mxu0 0.0
    %690 = vmatpush1.msra.mxu0 %v676
    %691 = vmatprep.subr.mxu0 0.0
    %692 = vmatpush1.msra.mxu0 %v677
    %693 = vmatprep.subr.mxu0 0.0
    %694 = vmatpush1.msra.mxu0 %v678
    %695 = vmatprep.subr.mxu0 0.0
    %696 = vmatpush1.msra.mxu0 0.0
    %697 = vmatprep.subr.mxu0 0.0
    %698 = vmatpush1.msra.mxu0 0.0
    %699 = vmatprep.subr.mxu0 0.0
    %700 = vmatpush1.msra.mxu0 0.0
    %701 = vmatprep.subr.mxu0 0.0
    %702 = vmatpush1.msra.mxu0 0.0
    %703 = vmatprep.subr.mxu0 0.0
    %704 = vmatpush1.msra.mxu0 0.0
    %705 = vmatprep.subr.mxu0 0.0
    %706 = vmatpush1.msra.mxu0 0.0
    %707 = vmatprep.subr.mxu0 0.0
    %708 = vmatpush1.msra.mxu0 0.0
    %709 = vmatprep.subr.mxu0 0.0
    %710 = vmatpush1.msra.mxu0 0.0
    %711 = vmatprep.subr.mxu0 0.0
    %712 = vmatpush1.msra.mxu0 0.0
    %713 = vmatprep.subr.mxu0 0.0
    %714 = vmatpush1.msra.mxu0 0.0
    %715 = vmatprep.subr.mxu0 0.0
    %716 = vmatpush1.msra.mxu0 0.0
    %717 = vmatprep.subr.mxu0 0.0
    %718 = vmatpush1.msra.mxu0 0.0
    %719 = vmatprep.subr.mxu0 0.0
    %720 = vmatpush1.msra.mxu0 0.0
    %721 = vmatprep.subr.mxu0 0.0
    %722 = vmatpush1.msra.mxu0 0.0
    %723 = vmatprep.subr.mxu0 0.0
    %724 = vmatpush1.msra.mxu0 0.0
    %725 = vmatprep.subr.mxu0 0.0
    %726 = vmatpush1.msra.mxu0 0.0
    %727 = vmatprep.subr.mxu0 0.0
    %728 = vmatpush1.msra.mxu0 0.0
    %729 = vmatprep.subr.mxu0 0.0
    %730 = vmatpush1.msra.mxu0 0.0
    %731 = vmatprep.subr.mxu0 0.0
    %732 = vmatpush1.msra.mxu0 0.0
    %733 = vmatprep.subr.mxu0 0.0
    %734 = vmatpush1.msra.mxu0 0.0
    %735 = vmatprep.subr.mxu0 0.0
    %736 = vmatpush1.msra.mxu0 0.0
    %737 = vmatprep.subr.mxu0 0.0
    %738 = vmatpush1.msra.mxu0 0.0
    %739 = vmatprep.subr.mxu0 0.0
    %740 = vmatpush1.msra.mxu0 0.0
    %741 = vmatprep.subr.mxu0 0.0
    %742 = vmatpush1.msra.mxu0 0.0
    %743 = vmatprep.mubr.f32.mxu0 0.0
    %744 = vmatmul.mubr.f32.gmra.mrb[0].mxu0 %v570
    %v745 = vpop.f32.mrb[0].mxu0
    %v746 = vadd.f32 0.0, %v745
    %v747 = vpop.f32.mrb[0].mxu0
    %748 = vmatprep.mubr.f32.mxu0 0.0
    %749 = vmatmul.mubr.f32.gmra.mrb[0].mxu0 %v573
    %v750 = vpop.f32.mrb[0].mxu0
    %v751 = vadd.f32 0.0, %v750
    %v752 = vpop.f32.mrb[0].mxu0
    %753 = vmatprep.mubr.f32.mxu0 0.0
    %754 = vmatmul.mubr.f32.gmra.mrb[0].mxu0 %v576
    %v755 = vpop.f32.mrb[0].mxu0
    %v756 = vadd.f32 0.0, %v755
    %v757 = vpop.f32.mrb[0].mxu0
    %758 = vmatprep.mubr.f32.mxu0 0.0
    %759 = vmatmul.mubr.f32.gmra.mrb[0].mxu0 %v579
    %v760 = vpop.f32.mrb[0].mxu0
    %v761 = vadd.f32 0.0, %v760
    %v762 = vpop.f32.mrb[0].mxu0
    %763 = vdwg.mxu0
    %v764 = vadd.f32 %v666, %v746
    %v765 = vadd.f32 %v667, %v751
    %v766 = vadd.f32 %v668, %v756
    %v767 = vadd.f32 %v669, %v761
    %s768 = scalar_lea.vmem %s2, 320
    %v769 = vld [vmem:[%s768] sm:$0xff]
    %v770 = vld [vmem:[%s768 + $0x8] sm:$0xff]
    %v771 = vld [vmem:[%s768 + $0x10] sm:$0xff]
    %v772 = vld [vmem:[%s768 + $0x18] sm:$0xff]
    %v773 = vld [vmem:[%s768 + $0x20] sm:$0xff]
    %v774 = vld [vmem:[%s768 + $0x28] sm:$0xff]
    %v775 = vld [vmem:[%s768 + $0x30] sm:$0xff]
    %v776 = vld [vmem:[%s768 + $0x38] sm:$0xff]
    %777 = vmatprep.subr.mxu0 0.0
    %778 = vmatpush1.msra.mxu0 %v769
    %779 = vmatprep.subr.mxu0 0.0
    %780 = vmatpush1.msra.mxu0 %v770
    %781 = vmatprep.subr.mxu0 0.0
    %782 = vmatpush1.msra.mxu0 %v771
    %783 = vmatprep.subr.mxu0 0.0
    %784 = vmatpush1.msra.mxu0 %v772
    %785 = vmatprep.subr.mxu0 0.0
    %786 = vmatpush1.msra.mxu0 %v773
    %787 = vmatprep.subr.mxu0 0.0
    %788 = vmatpush1.msra.mxu0 %v774
    %789 = vmatprep.subr.mxu0 0.0
    %790 = vmatpush1.msra.mxu0 %v775
    %791 = vmatprep.subr.mxu0 0.0
    %792 = vmatpush1.msra.mxu0 %v776
    %793 = vmatprep.subr.mxu0 0.0
    %794 = vmatpush1.msra.mxu0 0.0
    %795 = vmatprep.subr.mxu0 0.0
    %796 = vmatpush1.msra.mxu0 0.0
    %797 = vmatprep.subr.mxu0 0.0
    %798 = vmatpush1.msra.mxu0 0.0
    %799 = vmatprep.subr.mxu0 0.0
    %800 = vmatpush1.msra.mxu0 0.0
    %801 = vmatprep.subr.mxu0 0.0
    %802 = vmatpush1.msra.mxu0 0.0
    %803 = vmatprep.subr.mxu0 0.0
    %804 = vmatpush1.msra.mxu0 0.0
    %805 = vmatprep.subr.mxu0 0.0
    %806 = vmatpush1.msra.mxu0 0.0
    %807 = vmatprep.subr.mxu0 0.0
    %808 = vmatpush1.msra.mxu0 0.0
    %809 = vmatprep.subr.mxu0 0.0
    %810 = vmatpush1.msra.mxu0 0.0
    %811 = vmatprep.subr.mxu0 0.0
    %812 = vmatpush1.msra.mxu0 0.0
    %813 = vmatprep.subr.mxu0 0.0
    %814 = vmatpush1.msra.mxu0 0.0
    %815 = vmatprep.subr.mxu0 0.0
    %816 = vmatpush1.msra.mxu0 0.0
    %817 = vmatprep.subr.mxu0 0.0
    %818 = vmatpush1.msra.mxu0 0.0
    %819 = vmatprep.subr.mxu0 0.0
    %820 = vmatpush1.msra.mxu0 0.0
    %821 = vmatprep.subr.mxu0 0.0
    %822 = vmatpush1.msra.mxu0 0.0
    %823 = vmatprep.subr.mxu0 0.0
    %824 = vmatpush1.msra.mxu0 0.0
    %825 = vmatprep.subr.mxu0 0.0
    %826 = vmatpush1.msra.mxu0 0.0
    %827 = vmatprep.subr.mxu0 0.0
    %828 = vmatpush1.msra.mxu0 0.0
    %829 = vmatprep.subr.mxu0 0.0
    %830 = vmatpush1.msra.mxu0 0.0
    %831 = vmatprep.subr.mxu0 0.0
    %832 = vmatpush1.msra.mxu0 0.0
    %833 = vmatprep.subr.mxu0 0.0
    %834 = vmatpush1.msra.mxu0 0.0
    %835 = vmatprep.subr.mxu0 0.0
    %836 = vmatpush1.msra.mxu0 0.0
    %837 = vmatprep.subr.mxu0 0.0
    %838 = vmatpush1.msra.mxu0 0.0
    %839 = vmatprep.subr.mxu0 0.0
    %840 = vmatpush1.msra.mxu0 0.0
    %841 = vmatprep.mubr.f32.mxu0 0.0
    %842 = vmatmul.mubr.f32.gmra.mrb[0].mxu0 %v570
    %v843 = vpop.f32.mrb[0].mxu0
    %v844 = vadd.f32 0.0, %v843
    %v845 = vpop.f32.mrb[0].mxu0
    %846 = vmatprep.mubr.f32.mxu0 0.0
    %847 = vmatmul.mubr.f32.gmra.mrb[0].mxu0 %v573
    %v848 = vpop.f32.mrb[0].mxu0
    %v849 = vadd.f32 0.0, %v848
    %v850 = vpop.f32.mrb[0].mxu0
    %851 = vmatprep.mubr.f32.mxu0 0.0
    %852 = vmatmul.mubr.f32.gmra.mrb[0].mxu0 %v576
    %v853 = vpop.f32.mrb[0].mxu0
    %v854 = vadd.f32 0.0, %v853
    %v855 = vpop.f32.mrb[0].mxu0
    %856 = vmatprep.mubr.f32.mxu0 0.0
    %857 = vmatmul.mubr.f32.gmra.mrb[0].mxu0 %v579
    %v858 = vpop.f32.mrb[0].mxu0
    %v859 = vadd.f32 0.0, %v858
    %v860 = vpop.f32.mrb[0].mxu0
    %861 = vdwg.mxu0
    %v862 = vadd.f32 %v764, %v844
    %v863 = vadd.f32 %v765, %v849
    %v864 = vadd.f32 %v766, %v854
    %v865 = vadd.f32 %v767, %v859
    %s866 = scalar_lea.vmem %s1, 64
    %v867 = vld [vmem:[%s866] sm:$0xff]
    %v868 = vld [vmem:[%s866 + $0x8] sm:$0xff]
    %v869 = vld [vmem:[%s866 + $0x10] sm:$0xff]
    %v870 = vld [vmem:[%s866 + $0x18] sm:$0xff]
    %v872 = vsel %vm62, %v867, 0
    %v875 = vsel %vm62, %v868, 0
    %v878 = vsel %vm62, %v869, 0
    %v881 = vsel %vm62, %v870, 0
    %883 = vmatprep.subr.mxu0 0.0
    %884 = vmatpush1.msra.mxu0 %v54
    %885 = vmatprep.subr.mxu0 0.0
    %886 = vmatpush1.msra.mxu0 %v55
    %887 = vmatprep.subr.mxu0 0.0
    %888 = vmatpush1.msra.mxu0 %v56
    %889 = vmatprep.subr.mxu0 0.0
    %890 = vmatpush1.msra.mxu0 %v57
    %891 = vmatprep.subr.mxu0 0.0
    %892 = vmatpush1.msra.mxu0 0.0
    %893 = vmatprep.subr.mxu0 0.0
    %894 = vmatpush1.msra.mxu0 0.0
    %895 = vmatprep.subr.mxu0 0.0
    %896 = vmatpush1.msra.mxu0 0.0
    %897 = vmatprep.subr.mxu0 0.0
    %898 = vmatpush1.msra.mxu0 0.0
    %899 = vmatprep.subr.mxu0 0.0
    %900 = vmatpush1.msra.mxu0 0.0
    %901 = vmatprep.subr.mxu0 0.0
    %902 = vmatpush1.msra.mxu0 0.0
    %903 = vmatprep.subr.mxu0 0.0
    %904 = vmatpush1.msra.mxu0 0.0
    %905 = vmatprep.subr.mxu0 0.0
    %906 = vmatpush1.msra.mxu0 0.0
    %907 = vmatprep.subr.mxu0 0.0
    %908 = vmatpush1.msra.mxu0 0.0
    %909 = vmatprep.subr.mxu0 0.0
    %910 = vmatpush1.msra.mxu0 0.0
    %911 = vmatprep.subr.mxu0 0.0
    %912 = vmatpush1.msra.mxu0 0.0
    %913 = vmatprep.subr.mxu0 0.0
    %914 = vmatpush1.msra.mxu0 0.0
    %915 = vmatprep.subr.mxu0 0.0
    %916 = vmatpush1.msra.mxu0 0.0
    %917 = vmatprep.subr.mxu0 0.0
    %918 = vmatpush1.msra.mxu0 0.0
    %919 = vmatprep.subr.mxu0 0.0
    %920 = vmatpush1.msra.mxu0 0.0
    %921 = vmatprep.subr.mxu0 0.0
    %922 = vmatpush1.msra.mxu0 0.0
    %923 = vmatprep.subr.mxu0 0.0
    %924 = vmatpush1.msra.mxu0 0.0
    %925 = vmatprep.subr.mxu0 0.0
    %926 = vmatpush1.msra.mxu0 0.0
    %927 = vmatprep.subr.mxu0 0.0
    %928 = vmatpush1.msra.mxu0 0.0
    %929 = vmatprep.subr.mxu0 0.0
    %930 = vmatpush1.msra.mxu0 0.0
    %931 = vmatprep.subr.mxu0 0.0
    %932 = vmatpush1.msra.mxu0 0.0
    %933 = vmatprep.subr.mxu0 0.0
    %934 = vmatpush1.msra.mxu0 0.0
    %935 = vmatprep.subr.mxu0 0.0
    %936 = vmatpush1.msra.mxu0 0.0
    %937 = vmatprep.subr.mxu0 0.0
    %938 = vmatpush1.msra.mxu0 0.0
    %939 = vmatprep.subr.mxu0 0.0
    %940 = vmatpush1.msra.mxu0 0.0
    %941 = vmatprep.subr.mxu0 0.0
    %942 = vmatpush1.msra.mxu0 0.0
    %943 = vmatprep.subr.mxu0 0.0
    %944 = vmatpush1.msra.mxu0 0.0
    %945 = vmatprep.subr.mxu0 0.0
    %946 = vmatpush1.msra.mxu0 0.0
    %947 = vmatprep.mubr.f32.mxu0 0.0
    %948 = vmatmul.mubr.f32.gmra.mrb[0].mxu0 %v872
    %v949 = vpop.f32.mrb[0].mxu0
    %v950 = vadd.f32 0.0, %v949
    %v951 = vpop.f32.mrb[0].mxu0
    %952 = vmatprep.mubr.f32.mxu0 0.0
    %953 = vmatmul.mubr.f32.gmra.mrb[0].mxu0 %v875
    %v954 = vpop.f32.mrb[0].mxu0
    %v955 = vadd.f32 0.0, %v954
    %v956 = vpop.f32.mrb[0].mxu0
    %957 = vmatprep.mubr.f32.mxu0 0.0
    %958 = vmatmul.mubr.f32.gmra.mrb[0].mxu0 %v878
    %v959 = vpop.f32.mrb[0].mxu0
    %v960 = vadd.f32 0.0, %v959
    %v961 = vpop.f32.mrb[0].mxu0
    %962 = vmatprep.mubr.f32.mxu0 0.0
    %963 = vmatmul.mubr.f32.gmra.mrb[0].mxu0 %v881
    %v964 = vpop.f32.mrb[0].mxu0
    %v965 = vadd.f32 0.0, %v964
    %v966 = vpop.f32.mrb[0].mxu0
    %967 = vdwg.mxu0
    %s968 = scalar_lea.vmem %s2, 384
    %v969 = vld [vmem:[%s968] sm:$0xff]
    %v970 = vld [vmem:[%s968 + $0x8] sm:$0xff]
    %v971 = vld [vmem:[%s968 + $0x10] sm:$0xff]
    %v972 = vld [vmem:[%s968 + $0x18] sm:$0xff]
    %v973 = vld [vmem:[%s968 + $0x20] sm:$0xff]
    %v974 = vld [vmem:[%s968 + $0x28] sm:$0xff]
    %v975 = vld [vmem:[%s968 + $0x30] sm:$0xff]
    %v976 = vld [vmem:[%s968 + $0x38] sm:$0xff]
    %v978 = vsel %vm177, %v950, 0
    %v981 = vsel %vm177, %v955, 0
    %v984 = vsel %vm177, %v960, 0
    %v987 = vsel %vm177, %v965, 0
    %989 = vmatprep.subr.mxu0 0.0
    %990 = vmatpush1.msra.mxu0 %v969
    %991 = vmatprep.subr.mxu0 0.0
    %992 = vmatpush1.msra.mxu0 %v970
    %993 = vmatprep.subr.mxu0 0.0
    %994 = vmatpush1.msra.mxu0 %v971
    %995 = vmatprep.subr.mxu0 0.0
    %996 = vmatpush1.msra.mxu0 %v972
    %997 = vmatprep.subr.mxu0 0.0
    %998 = vmatpush1.msra.mxu0 %v973
    %999 = vmatprep.subr.mxu0 0.0
    %1000 = vmatpush1.msra.mxu0 %v974
    %1001 = vmatprep.subr.mxu0 0.0
    %1002 = vmatpush1.msra.mxu0 %v975
    %1003 = vmatprep.subr.mxu0 0.0
    %1004 = vmatpush1.msra.mxu0 %v976
    %1005 = vmatprep.subr.mxu0 0.0
    %1006 = vmatpush1.msra.mxu0 0.0
    %1007 = vmatprep.subr.mxu0 0.0
    %1008 = vmatpush1.msra.mxu0 0.0
    %1009 = vmatprep.subr.mxu0 0.0
    %1010 = vmatpush1.msra.mxu0 0.0
    %1011 = vmatprep.subr.mxu0 0.0
    %1012 = vmatpush1.msra.mxu0 0.0
    %1013 = vmatprep.subr.mxu0 0.0
    %1014 = vmatpush1.msra.mxu0 0.0
    %1015 = vmatprep.subr.mxu0 0.0
    %1016 = vmatpush1.msra.mxu0 0.0
    %1017 = vmatprep.subr.mxu0 0.0
    %1018 = vmatpush1.msra.mxu0 0.0
    %1019 = vmatprep.subr.mxu0 0.0
    %1020 = vmatpush1.msra.mxu0 0.0
    %1021 = vmatprep.subr.mxu0 0.0
    %1022 = vmatpush1.msra.mxu0 0.0
    %1023 = vmatprep.subr.mxu0 0.0
    %1024 = vmatpush1.msra.mxu0 0.0
    %1025 = vmatprep.subr.mxu0 0.0
    %1026 = vmatpush1.msra.mxu0 0.0
    %1027 = vmatprep.subr.mxu0 0.0
    %1028 = vmatpush1.msra.mxu0 0.0
    %1029 = vmatprep.subr.mxu0 0.0
    %1030 = vmatpush1.msra.mxu0 0.0
    %1031 = vmatprep.subr.mxu0 0.0
    %1032 = vmatpush1.msra.mxu0 0.0
    %1033 = vmatprep.subr.mxu0 0.0
    %1034 = vmatpush1.msra.mxu0 0.0
    %1035 = vmatprep.subr.mxu0 0.0
    %1036 = vmatpush1.msra.mxu0 0.0
    %1037 = vmatprep.subr.mxu0 0.0
    %1038 = vmatpush1.msra.mxu0 0.0
    %1039 = vmatprep.subr.mxu0 0.0
    %1040 = vmatpush1.msra.mxu0 0.0
    %1041 = vmatprep.subr.mxu0 0.0
    %1042 = vmatpush1.msra.mxu0 0.0
    %1043 = vmatprep.subr.mxu0 0.0
    %1044 = vmatpush1.msra.mxu0 0.0
    %1045 = vmatprep.subr.mxu0 0.0
    %1046 = vmatpush1.msra.mxu0 0.0
    %1047 = vmatprep.subr.mxu0 0.0
    %1048 = vmatpush1.msra.mxu0 0.0
    %1049 = vmatprep.subr.mxu0 0.0
    %1050 = vmatpush1.msra.mxu0 0.0
    %1051 = vmatprep.subr.mxu0 0.0
    %1052 = vmatpush1.msra.mxu0 0.0
    %1053 = vmatprep.mubr.f32.mxu0 0.0
    %1054 = vmatmul.mubr.f32.gmra.mrb[0].mxu0 %v978
    %v1055 = vpop.f32.mrb[0].mxu0
    %v1056 = vadd.f32 0.0, %v1055
    %v1057 = vpop.f32.mrb[0].mxu0
    %1058 = vmatprep.mubr.f32.mxu0 0.0
    %1059 = vmatmul.mubr.f32.gmra.mrb[0].mxu0 %v981
    %v1060 = vpop.f32.mrb[0].mxu0
    %v1061 = vadd.f32 0.0, %v1060
    %v1062 = vpop.f32.mrb[0].mxu0
    %1063 = vmatprep.mubr.f32.mxu0 0.0
    %1064 = vmatmul.mubr.f32.gmra.mrb[0].mxu0 %v984
    %v1065 = vpop.f32.mrb[0].mxu0
    %v1066 = vadd.f32 0.0, %v1065
    %v1067 = vpop.f32.mrb[0].mxu0
    %1068 = vmatprep.mubr.f32.mxu0 0.0
    %1069 = vmatmul.mubr.f32.gmra.mrb[0].mxu0 %v987
    %v1070 = vpop.f32.mrb[0].mxu0
    %v1071 = vadd.f32 0.0, %v1070
    %v1072 = vpop.f32.mrb[0].mxu0
    %1073 = vdwg.mxu0
    %v1074 = vadd.f32 %v862, %v1056
    %v1075 = vadd.f32 %v863, %v1061
    %v1076 = vadd.f32 %v864, %v1066
    %v1077 = vadd.f32 %v865, %v1071
    %s1078 = scalar_lea.vmem %s2, 448
    %v1079 = vld [vmem:[%s1078] sm:$0xff]
    %v1080 = vld [vmem:[%s1078 + $0x8] sm:$0xff]
    %v1081 = vld [vmem:[%s1078 + $0x10] sm:$0xff]
    %v1082 = vld [vmem:[%s1078 + $0x18] sm:$0xff]
    %v1083 = vld [vmem:[%s1078 + $0x20] sm:$0xff]
    %v1084 = vld [vmem:[%s1078 + $0x28] sm:$0xff]
    %v1085 = vld [vmem:[%s1078 + $0x30] sm:$0xff]
    %v1086 = vld [vmem:[%s1078 + $0x38] sm:$0xff]
    %1087 = vmatprep.subr.mxu0 0.0
    %1088 = vmatpush1.msra.mxu0 %v1079
    %1089 = vmatprep.subr.mxu0 0.0
    %1090 = vmatpush1.msra.mxu0 %v1080
    %1091 = vmatprep.subr.mxu0 0.0
    %1092 = vmatpush1.msra.mxu0 %v1081
    %1093 = vmatprep.subr.mxu0 0.0
    %1094 = vmatpush1.msra.mxu0 %v1082
    %1095 = vmatprep.subr.mxu0 0.0
    %1096 = vmatpush1.msra.mxu0 %v1083
    %1097 = vmatprep.subr.mxu0 0.0
    %1098 = vmatpush1.msra.mxu0 %v1084
    %1099 = vmatprep.subr.mxu0 0.0
    %1100 = vmatpush1.msra.mxu0 %v1085
    %1101 = vmatprep.subr.mxu0 0.0
    %1102 = vmatpush1.msra.mxu0 %v1086
    %1103 = vmatprep.subr.mxu0 0.0
    %1104 = vmatpush1.msra.mxu0 0.0
    %1105 = vmatprep.subr.mxu0 0.0
    %1106 = vmatpush1.msra.mxu0 0.0
    %1107 = vmatprep.subr.mxu0 0.0
    %1108 = vmatpush1.msra.mxu0 0.0
    %1109 = vmatprep.subr.mxu0 0.0
    %1110 = vmatpush1.msra.mxu0 0.0
    %1111 = vmatprep.subr.mxu0 0.0
    %1112 = vmatpush1.msra.mxu0 0.0
    %1113 = vmatprep.subr.mxu0 0.0
    %1114 = vmatpush1.msra.mxu0 0.0
    %1115 = vmatprep.subr.mxu0 0.0
    %1116 = vmatpush1.msra.mxu0 0.0
    %1117 = vmatprep.subr.mxu0 0.0
    %1118 = vmatpush1.msra.mxu0 0.0
    %1119 = vmatprep.subr.mxu0 0.0
    %1120 = vmatpush1.msra.mxu0 0.0
    %1121 = vmatprep.subr.mxu0 0.0
    %1122 = vmatpush1.msra.mxu0 0.0
    %1123 = vmatprep.subr.mxu0 0.0
    %1124 = vmatpush1.msra.mxu0 0.0
    %1125 = vmatprep.subr.mxu0 0.0
    %1126 = vmatpush1.msra.mxu0 0.0
    %1127 = vmatprep.subr.mxu0 0.0
    %1128 = vmatpush1.msra.mxu0 0.0
    %1129 = vmatprep.subr.mxu0 0.0
    %1130 = vmatpush1.msra.mxu0 0.0
    %1131 = vmatprep.subr.mxu0 0.0
    %1132 = vmatpush1.msra.mxu0 0.0
    %1133 = vmatprep.subr.mxu0 0.0
    %1134 = vmatpush1.msra.mxu0 0.0
    %1135 = vmatprep.subr.mxu0 0.0
    %1136 = vmatpush1.msra.mxu0 0.0
    %1137 = vmatprep.subr.mxu0 0.0
    %1138 = vmatpush1.msra.mxu0 0.0
    %1139 = vmatprep.subr.mxu0 0.0
    %1140 = vmatpush1.msra.mxu0 0.0
    %1141 = vmatprep.subr.mxu0 0.0
    %1142 = vmatpush1.msra.mxu0 0.0
    %1143 = vmatprep.subr.mxu0 0.0
    %1144 = vmatpush1.msra.mxu0 0.0
    %1145 = vmatprep.subr.mxu0 0.0
    %1146 = vmatpush1.msra.mxu0 0.0
    %1147 = vmatprep.subr.mxu0 0.0
    %1148 = vmatpush1.msra.mxu0 0.0
    %1149 = vmatprep.subr.mxu0 0.0
    %1150 = vmatpush1.msra.mxu0 0.0
    %1151 = vmatprep.mubr.f32.mxu0 0.0
    %1152 = vmatmul.mubr.f32.gmra.mrb[0].mxu0 %v978
    %v1153 = vpop.f32.mrb[0].mxu0
    %v1154 = vadd.f32 0.0, %v1153
    %v1155 = vpop.f32.mrb[0].mxu0
    %1156 = vmatprep.mubr.f32.mxu0 0.0
    %1157 = vmatmul.mubr.f32.gmra.mrb[0].mxu0 %v981
    %v1158 = vpop.f32.mrb[0].mxu0
    %v1159 = vadd.f32 0.0, %v1158
    %v1160 = vpop.f32.mrb[0].mxu0
    %1161 = vmatprep.mubr.f32.mxu0 0.0
    %1162 = vmatmul.mubr.f32.gmra.mrb[0].mxu0 %v984
    %v1163 = vpop.f32.mrb[0].mxu0
    %v1164 = vadd.f32 0.0, %v1163
    %v1165 = vpop.f32.mrb[0].mxu0
    %1166 = vmatprep.mubr.f32.mxu0 0.0
    %1167 = vmatmul.mubr.f32.gmra.mrb[0].mxu0 %v987
    %v1168 = vpop.f32.mrb[0].mxu0
    %v1169 = vadd.f32 0.0, %v1168
    %v1170 = vpop.f32.mrb[0].mxu0
    %1171 = vdwg.mxu0
    %v1172 = vadd.f32 %v1074, %v1154
    %v1173 = vadd.f32 %v1075, %v1159
    %v1174 = vadd.f32 %v1076, %v1164
    %v1175 = vadd.f32 %v1077, %v1169
    %s1176 = scalar_lea.vmem %s2, 512
    %v1177 = vld [vmem:[%s1176] sm:$0xff]
    %v1178 = vld [vmem:[%s1176 + $0x8] sm:$0xff]
    %v1179 = vld [vmem:[%s1176 + $0x10] sm:$0xff]
    %v1180 = vld [vmem:[%s1176 + $0x18] sm:$0xff]
    %v1181 = vld [vmem:[%s1176 + $0x20] sm:$0xff]
    %v1182 = vld [vmem:[%s1176 + $0x28] sm:$0xff]
    %v1183 = vld [vmem:[%s1176 + $0x30] sm:$0xff]
    %v1184 = vld [vmem:[%s1176 + $0x38] sm:$0xff]
    %1185 = vmatprep.subr.mxu0 0.0
    %1186 = vmatpush1.msra.mxu0 %v1177
    %1187 = vmatprep.subr.mxu0 0.0
    %1188 = vmatpush1.msra.mxu0 %v1178
    %1189 = vmatprep.subr.mxu0 0.0
    %1190 = vmatpush1.msra.mxu0 %v1179
    %1191 = vmatprep.subr.mxu0 0.0
    %1192 = vmatpush1.msra.mxu0 %v1180
    %1193 = vmatprep.subr.mxu0 0.0
    %1194 = vmatpush1.msra.mxu0 %v1181
    %1195 = vmatprep.subr.mxu0 0.0
    %1196 = vmatpush1.msra.mxu0 %v1182
    %1197 = vmatprep.subr.mxu0 0.0
    %1198 = vmatpush1.msra.mxu0 %v1183
    %1199 = vmatprep.subr.mxu0 0.0
    %1200 = vmatpush1.msra.mxu0 %v1184
    %1201 = vmatprep.subr.mxu0 0.0
    %1202 = vmatpush1.msra.mxu0 0.0
    %1203 = vmatprep.subr.mxu0 0.0
    %1204 = vmatpush1.msra.mxu0 0.0
    %1205 = vmatprep.subr.mxu0 0.0
    %1206 = vmatpush1.msra.mxu0 0.0
    %1207 = vmatprep.subr.mxu0 0.0
    %1208 = vmatpush1.msra.mxu0 0.0
    %1209 = vmatprep.subr.mxu0 0.0
    %1210 = vmatpush1.msra.mxu0 0.0
    %1211 = vmatprep.subr.mxu0 0.0
    %1212 = vmatpush1.msra.mxu0 0.0
    %1213 = vmatprep.subr.mxu0 0.0
    %1214 = vmatpush1.msra.mxu0 0.0
    %1215 = vmatprep.subr.mxu0 0.0
    %1216 = vmatpush1.msra.mxu0 0.0
    %1217 = vmatprep.subr.mxu0 0.0
    %1218 = vmatpush1.msra.mxu0 0.0
    %1219 = vmatprep.subr.mxu0 0.0
    %1220 = vmatpush1.msra.mxu0 0.0
    %1221 = vmatprep.subr.mxu0 0.0
    %1222 = vmatpush1.msra.mxu0 0.0
    %1223 = vmatprep.subr.mxu0 0.0
    %1224 = vmatpush1.msra.mxu0 0.0
    %1225 = vmatprep.subr.mxu0 0.0
    %1226 = vmatpush1.msra.mxu0 0.0
    %1227 = vmatprep.subr.mxu0 0.0
    %1228 = vmatpush1.msra.mxu0 0.0
    %1229 = vmatprep.subr.mxu0 0.0
    %1230 = vmatpush1.msra.mxu0 0.0
    %1231 = vmatprep.subr.mxu0 0.0
    %1232 = vmatpush1.msra.mxu0 0.0
    %1233 = vmatprep.subr.mxu0 0.0
    %1234 = vmatpush1.msra.mxu0 0.0
    %1235 = vmatprep.subr.mxu0 0.0
    %1236 = vmatpush1.msra.mxu0 0.0
    %1237 = vmatprep.subr.mxu0 0.0
    %1238 = vmatpush1.msra.mxu0 0.0
    %1239 = vmatprep.subr.mxu0 0.0
    %1240 = vmatpush1.msra.mxu0 0.0
    %1241 = vmatprep.subr.mxu0 0.0
    %1242 = vmatpush1.msra.mxu0 0.0
    %1243 = vmatprep.subr.mxu0 0.0
    %1244 = vmatpush1.msra.mxu0 0.0
    %1245 = vmatprep.subr.mxu0 0.0
    %1246 = vmatpush1.msra.mxu0 0.0
    %1247 = vmatprep.subr.mxu0 0.0
    %1248 = vmatpush1.msra.mxu0 0.0
    %1249 = vmatprep.mubr.f32.mxu0 0.0
    %1250 = vmatmul.mubr.f32.gmra.mrb[0].mxu0 %v978
    %v1251 = vpop.f32.mrb[0].mxu0
    %v1252 = vadd.f32 0.0, %v1251
    %v1253 = vpop.f32.mrb[0].mxu0
    %1254 = vmatprep.mubr.f32.mxu0 0.0
    %1255 = vmatmul.mubr.f32.gmra.mrb[0].mxu0 %v981
    %v1256 = vpop.f32.mrb[0].mxu0
    %v1257 = vadd.f32 0.0, %v1256
    %v1258 = vpop.f32.mrb[0].mxu0
    %1259 = vmatprep.mubr.f32.mxu0 0.0
    %1260 = vmatmul.mubr.f32.gmra.mrb[0].mxu0 %v984
    %v1261 = vpop.f32.mrb[0].mxu0
    %v1262 = vadd.f32 0.0, %v1261
    %v1263 = vpop.f32.mrb[0].mxu0
    %1264 = vmatprep.mubr.f32.mxu0 0.0
    %1265 = vmatmul.mubr.f32.gmra.mrb[0].mxu0 %v987
    %v1266 = vpop.f32.mrb[0].mxu0
    %v1267 = vadd.f32 0.0, %v1266
    %v1268 = vpop.f32.mrb[0].mxu0
    %1269 = vdwg.mxu0
    %v1270 = vadd.f32 %v1172, %v1252
    %v1271 = vadd.f32 %v1173, %v1257
    %v1272 = vadd.f32 %v1174, %v1262
    %v1273 = vadd.f32 %v1175, %v1267
    %v1274 = vld [vmem:[%s3] sm:$0x1]
    %v1276 = vlaneseq
    %v1277 = vshrl.u32 %v1276, 7
    %v1278 = vsub.s32 0, %v1277
    %v1279 = vrot.slane %v1274, %v1278
    %v1281 = vadd.f32 %v1270, %v1279
    %v1282 = vadd.f32 %v1271, %v1279
    %v1283 = vadd.f32 %v1272, %v1279
    %v1284 = vadd.f32 %v1273, %v1279
    %v1285 = vmax.f32 %v1281, 0.0
    %v1286 = vmax.f32 %v1282, 0.0
    %v1287 = vmax.f32 %v1283, 0.0
    %v1288 = vmax.f32 %v1284, 0.0
    %v1289 = vld [vmem:[%s4] sm:$0xff]
    %v1290 = vld [vmem:[%s4 + $0x8] sm:$0xff]
    %v1292 = vsel %vm62, %v1289, 0
    %v1295 = vsel %vm62, %v1290, 0
    %1297 = vmatprep.subr.mxu0 0.0
    %1298 = vmatpush1.msra.mxu0 %v1285
    %1299 = vmatprep.subr.mxu0 0.0
    %1300 = vmatpush1.msra.mxu0 %v1286
    %1301 = vmatprep.subr.mxu0 0.0
    %1302 = vmatpush1.msra.mxu0 %v1287
    %1303 = vmatprep.subr.mxu0 0.0
    %1304 = vmatpush1.msra.mxu0 %v1288
    %1305 = vmatprep.subr.mxu0 0.0
    %1306 = vmatpush1.msra.mxu0 0.0
    %1307 = vmatprep.subr.mxu0 0.0
    %1308 = vmatpush1.msra.mxu0 0.0
    %1309 = vmatprep.subr.mxu0 0.0
    %1310 = vmatpush1.msra.mxu0 0.0
    %1311 = vmatprep.subr.mxu0 0.0
    %1312 = vmatpush1.msra.mxu0 0.0
    %1313 = vmatprep.subr.mxu0 0.0
    %1314 = vmatpush1.msra.mxu0 0.0
    %1315 = vmatprep.subr.mxu0 0.0
    %1316 = vmatpush1.msra.mxu0 0.0
    %1317 = vmatprep.subr.mxu0 0.0
    %1318 = vmatpush1.msra.mxu0 0.0
    %1319 = vmatprep.subr.mxu0 0.0
    %1320 = vmatpush1.msra.mxu0 0.0
    %1321 = vmatprep.subr.mxu0 0.0
    %1322 = vmatpush1.msra.mxu0 0.0
    %1323 = vmatprep.subr.mxu0 0.0
    %1324 = vmatpush1.msra.mxu0 0.0
    %1325 = vmatprep.subr.mxu0 0.0
    %1326 = vmatpush1.msra.mxu0 0.0
    %1327 = vmatprep.subr.mxu0 0.0
    %1328 = vmatpush1.msra.mxu0 0.0
    %1329 = vmatprep.subr.mxu0 0.0
    %1330 = vmatpush1.msra.mxu0 0.0
    %1331 = vmatprep.subr.mxu0 0.0
    %1332 = vmatpush1.msra.mxu0 0.0
    %1333 = vmatprep.subr.mxu0 0.0
    %1334 = vmatpush1.msra.mxu0 0.0
    %1335 = vmatprep.subr.mxu0 0.0
    %1336 = vmatpush1.msra.mxu0 0.0
    %1337 = vmatprep.subr.mxu0 0.0
    %1338 = vmatpush1.msra.mxu0 0.0
    %1339 = vmatprep.subr.mxu0 0.0
    %1340 = vmatpush1.msra.mxu0 0.0
    %1341 = vmatprep.subr.mxu0 0.0
    %1342 = vmatpush1.msra.mxu0 0.0
    %1343 = vmatprep.subr.mxu0 0.0
    %1344 = vmatpush1.msra.mxu0 0.0
    %1345 = vmatprep.subr.mxu0 0.0
    %1346 = vmatpush1.msra.mxu0 0.0
    %1347 = vmatprep.subr.mxu0 0.0
    %1348 = vmatpush1.msra.mxu0 0.0
    %1349 = vmatprep.subr.mxu0 0.0
    %1350 = vmatpush1.msra.mxu0 0.0
    %1351 = vmatprep.subr.mxu0 0.0
    %1352 = vmatpush1.msra.mxu0 0.0
    %1353 = vmatprep.subr.mxu0 0.0
    %1354 = vmatpush1.msra.mxu0 0.0
    %1355 = vmatprep.subr.mxu0 0.0
    %1356 = vmatpush1.msra.mxu0 0.0
    %1357 = vmatprep.subr.mxu0 0.0
    %1358 = vmatpush1.msra.mxu0 0.0
    %1359 = vmatprep.subr.mxu0 0.0
    %1360 = vmatpush1.msra.mxu0 0.0
    %1361 = vmatprep.mubr.f32.mxu0 0.0
    %1362 = vmatmul.mubr.f32.gmra.mrb[0].mxu0 %v1292
    %v1363 = vpop.f32.mrb[0].mxu0
    %v1364 = vadd.f32 0.0, %v1363
    %v1365 = vpop.f32.mrb[0].mxu0
    %1366 = vmatprep.mubr.f32.mxu0 0.0
    %1367 = vmatmul.mubr.f32.gmra.mrb[0].mxu0 %v1295
    %v1368 = vpop.f32.mrb[0].mxu0
    %v1369 = vadd.f32 0.0, %v1368
    %v1370 = vpop.f32.mrb[0].mxu0
    %1371 = vdwg.mxu0
    %v1372 = vld [vmem:[%s5] sm:$0xff]
    %v1373 = vld [vmem:[%s5 + $0x8] sm:$0xff]
    %v1374 = vld [vmem:[%s5 + $0x10] sm:$0xff]
    %v1375 = vld [vmem:[%s5 + $0x18] sm:$0xff]
    %v1376 = vld [vmem:[%s5 + $0x20] sm:$0xff]
    %v1377 = vld [vmem:[%s5 + $0x28] sm:$0xff]
    %v1378 = vld [vmem:[%s5 + $0x30] sm:$0xff]
    %v1379 = vld [vmem:[%s5 + $0x38] sm:$0xff]
    %v1380 = vld [vmem:[%s5 + $0x40] sm:$0xff]
    %v1381 = vld [vmem:[%s5 + $0x48] sm:$0xff]
    %v1382 = vld [vmem:[%s5 + $0x50] sm:$0xff]
    %v1383 = vld [vmem:[%s5 + $0x58] sm:$0xff]
    %v1384 = vld [vmem:[%s5 + $0x60] sm:$0xff]
    %v1385 = vld [vmem:[%s5 + $0x68] sm:$0xff]
    %v1386 = vld [vmem:[%s5 + $0x70] sm:$0xff]
    %v1387 = vld [vmem:[%s5 + $0x78] sm:$0xff]
    %1388 = vmatprep.subr.mxu0 0.0
    %1389 = vmatpush1.msra.mxu0 %v1372
    %1390 = vmatprep.subr.mxu0 0.0
    %1391 = vmatpush1.msra.mxu0 %v1373
    %1392 = vmatprep.subr.mxu0 0.0
    %1393 = vmatpush1.msra.mxu0 %v1374
    %1394 = vmatprep.subr.mxu0 0.0
    %1395 = vmatpush1.msra.mxu0 %v1375
    %1396 = vmatprep.subr.mxu0 0.0
    %1397 = vmatpush1.msra.mxu0 %v1376
    %1398 = vmatprep.subr.mxu0 0.0
    %1399 = vmatpush1.msra.mxu0 %v1377
    %1400 = vmatprep.subr.mxu0 0.0
    %1401 = vmatpush1.msra.mxu0 %v1378
    %1402 = vmatprep.subr.mxu0 0.0
    %1403 = vmatpush1.msra.mxu0 %v1379
    %1404 = vmatprep.subr.mxu0 0.0
    %1405 = vmatpush1.msra.mxu0 %v1380
    %1406 = vmatprep.subr.mxu0 0.0
    %1407 = vmatpush1.msra.mxu0 %v1381
    %1408 = vmatprep.subr.mxu0 0.0
    %1409 = vmatpush1.msra.mxu0 %v1382
    %1410 = vmatprep.subr.mxu0 0.0
    %1411 = vmatpush1.msra.mxu0 %v1383
    %1412 = vmatprep.subr.mxu0 0.0
    %1413 = vmatpush1.msra.mxu0 %v1384
    %1414 = vmatprep.subr.mxu0 0.0
    %1415 = vmatpush1.msra.mxu0 %v1385
    %1416 = vmatprep.subr.mxu0 0.0
    %1417 = vmatpush1.msra.mxu0 %v1386
    %1418 = vmatprep.subr.mxu0 0.0
    %1419 = vmatpush1.msra.mxu0 %v1387
    %1420 = vmatprep.subr.mxu0 0.0
    %1421 = vmatpush1.msra.mxu0 0.0
    %1422 = vmatprep.subr.mxu0 0.0
    %1423 = vmatpush1.msra.mxu0 0.0
    %1424 = vmatprep.subr.mxu0 0.0
    %1425 = vmatpush1.msra.mxu0 0.0
    %1426 = vmatprep.subr.mxu0 0.0
    %1427 = vmatpush1.msra.mxu0 0.0
    %1428 = vmatprep.subr.mxu0 0.0
    %1429 = vmatpush1.msra.mxu0 0.0
    %1430 = vmatprep.subr.mxu0 0.0
    %1431 = vmatpush1.msra.mxu0 0.0
    %1432 = vmatprep.subr.mxu0 0.0
    %1433 = vmatpush1.msra.mxu0 0.0
    %1434 = vmatprep.subr.mxu0 0.0
    %1435 = vmatpush1.msra.mxu0 0.0
    %1436 = vmatprep.subr.mxu0 0.0
    %1437 = vmatpush1.msra.mxu0 0.0
    %1438 = vmatprep.subr.mxu0 0.0
    %1439 = vmatpush1.msra.mxu0 0.0
    %1440 = vmatprep.subr.mxu0 0.0
    %1441 = vmatpush1.msra.mxu0 0.0
    %1442 = vmatprep.subr.mxu0 0.0
    %1443 = vmatpush1.msra.mxu0 0.0
    %1444 = vmatprep.subr.mxu0 0.0
    %1445 = vmatpush1.msra.mxu0 0.0
    %1446 = vmatprep.subr.mxu0 0.0
    %1447 = vmatpush1.msra.mxu0 0.0
    %1448 = vmatprep.subr.mxu0 0.0
    %1449 = vmatpush1.msra.mxu0 0.0
    %1450 = vmatprep.subr.mxu0 0.0
    %1451 = vmatpush1.msra.mxu0 0.0
    %1452 = vmatprep.mubr.f32.mxu0 0.0
    %1453 = vmatmul.mubr.f32.gmra.mrb[0].mxu0 %v1364
    %v1454 = vpop.f32.mrb[0].mxu0
    %v1455 = vadd.f32 0.0, %v1454
    %v1456 = vpop.f32.mrb[0].mxu0
    %1457 = vmatprep.mubr.f32.mxu0 0.0
    %1458 = vmatmul.mubr.f32.gmra.mrb[0].mxu0 %v1369
    %v1459 = vpop.f32.mrb[0].mxu0
    %v1460 = vadd.f32 0.0, %v1459
    %v1461 = vpop.f32.mrb[0].mxu0
    %1462 = vdwg.mxu0
    %s1463 = scalar_lea.vmem %s5, 128
    %v1464 = vld [vmem:[%s1463] sm:$0xff]
    %v1465 = vld [vmem:[%s1463 + $0x8] sm:$0xff]
    %v1466 = vld [vmem:[%s1463 + $0x10] sm:$0xff]
    %v1467 = vld [vmem:[%s1463 + $0x18] sm:$0xff]
    %v1468 = vld [vmem:[%s1463 + $0x20] sm:$0xff]
    %v1469 = vld [vmem:[%s1463 + $0x28] sm:$0xff]
    %v1470 = vld [vmem:[%s1463 + $0x30] sm:$0xff]
    %v1471 = vld [vmem:[%s1463 + $0x38] sm:$0xff]
    %v1472 = vld [vmem:[%s1463 + $0x40] sm:$0xff]
    %v1473 = vld [vmem:[%s1463 + $0x48] sm:$0xff]
    %v1474 = vld [vmem:[%s1463 + $0x50] sm:$0xff]
    %v1475 = vld [vmem:[%s1463 + $0x58] sm:$0xff]
    %v1476 = vld [vmem:[%s1463 + $0x60] sm:$0xff]
    %v1477 = vld [vmem:[%s1463 + $0x68] sm:$0xff]
    %v1478 = vld [vmem:[%s1463 + $0x70] sm:$0xff]
    %v1479 = vld [vmem:[%s1463 + $0x78] sm:$0xff]
    %1480 = vmatprep.subr.mxu0 0.0
    %1481 = vmatpush1.msra.mxu0 %v1464
    %1482 = vmatprep.subr.mxu0 0.0
    %1483 = vmatpush1.msra.mxu0 %v1465
    %1484 = vmatprep.subr.mxu0 0.0
    %1485 = vmatpush1.msra.mxu0 %v1466
    %1486 = vmatprep.subr.mxu0 0.0
    %1487 = vmatpush1.msra.mxu0 %v1467
    %1488 = vmatprep.subr.mxu0 0.0
    %1489 = vmatpush1.msra.mxu0 %v1468
    %1490 = vmatprep.subr.mxu0 0.0
    %1491 = vmatpush1.msra.mxu0 %v1469
    %1492 = vmatprep.subr.mxu0 0.0
    %1493 = vmatpush1.msra.mxu0 %v1470
    %1494 = vmatprep.subr.mxu0 0.0
    %1495 = vmatpush1.msra.mxu0 %v1471
    %1496 = vmatprep.subr.mxu0 0.0
    %1497 = vmatpush1.msra.mxu0 %v1472
    %1498 = vmatprep.subr.mxu0 0.0
    %1499 = vmatpush1.msra.mxu0 %v1473
    %1500 = vmatprep.subr.mxu0 0.0
    %1501 = vmatpush1.msra.mxu0 %v1474
    %1502 = vmatprep.subr.mxu0 0.0
    %1503 = vmatpush1.msra.mxu0 %v1475
    %1504 = vmatprep.subr.mxu0 0.0
    %1505 = vmatpush1.msra.mxu0 %v1476
    %1506 = vmatprep.subr.mxu0 0.0
    %1507 = vmatpush1.msra.mxu0 %v1477
    %1508 = vmatprep.subr.mxu0 0.0
    %1509 = vmatpush1.msra.mxu0 %v1478
    %1510 = vmatprep.subr.mxu0 0.0
    %1511 = vmatpush1.msra.mxu0 %v1479
    %1512 = vmatprep.subr.mxu0 0.0
    %1513 = vmatpush1.msra.mxu0 0.0
    %1514 = vmatprep.subr.mxu0 0.0
    %1515 = vmatpush1.msra.mxu0 0.0
    %1516 = vmatprep.subr.mxu0 0.0
    %1517 = vmatpush1.msra.mxu0 0.0
    %1518 = vmatprep.subr.mxu0 0.0
    %1519 = vmatpush1.msra.mxu0 0.0
    %1520 = vmatprep.subr.mxu0 0.0
    %1521 = vmatpush1.msra.mxu0 0.0
    %1522 = vmatprep.subr.mxu0 0.0
    %1523 = vmatpush1.msra.mxu0 0.0
    %1524 = vmatprep.subr.mxu0 0.0
    %1525 = vmatpush1.msra.mxu0 0.0
    %1526 = vmatprep.subr.mxu0 0.0
    %1527 = vmatpush1.msra.mxu0 0.0
    %1528 = vmatprep.subr.mxu0 0.0
    %1529 = vmatpush1.msra.mxu0 0.0
    %1530 = vmatprep.subr.mxu0 0.0
    %1531 = vmatpush1.msra.mxu0 0.0
    %1532 = vmatprep.subr.mxu0 0.0
    %1533 = vmatpush1.msra.mxu0 0.0
    %1534 = vmatprep.subr.mxu0 0.0
    %1535 = vmatpush1.msra.mxu0 0.0
    %1536 = vmatprep.subr.mxu0 0.0
    %1537 = vmatpush1.msra.mxu0 0.0
    %1538 = vmatprep.subr.mxu0 0.0
    %1539 = vmatpush1.msra.mxu0 0.0
    %1540 = vmatprep.subr.mxu0 0.0
    %1541 = vmatpush1.msra.mxu0 0.0
    %1542 = vmatprep.subr.mxu0 0.0
    %1543 = vmatpush1.msra.mxu0 0.0
    %1544 = vmatprep.mubr.f32.mxu0 0.0
    %1545 = vmatmul.mubr.f32.gmra.mrb[0].mxu0 %v1364
    %v1546 = vpop.f32.mrb[0].mxu0
    %v1547 = vadd.f32 0.0, %v1546
    %v1548 = vpop.f32.mrb[0].mxu0
    %1549 = vmatprep.mubr.f32.mxu0 0.0
    %1550 = vmatmul.mubr.f32.gmra.mrb[0].mxu0 %v1369
    %v1551 = vpop.f32.mrb[0].mxu0
    %v1552 = vadd.f32 0.0, %v1551
    %v1553 = vpop.f32.mrb[0].mxu0
    %1554 = vdwg.mxu0
    %v1555 = vmax.f32 %v1455, %v1547
    %v1556 = vmax.f32 %v1460, %v1552
    %s1557 = scalar_lea.vmem %s4, 16
    %v1558 = vld [vmem:[%s1557] sm:$0xff]
    %v1559 = vld [vmem:[%s1557 + $0x8] sm:$0xff]
    %v1561 = vsel %vm62, %v1558, 0
    %v1564 = vsel %vm62, %v1559, 0
    %1566 = vmatprep.subr.mxu0 0.0
    %1567 = vmatpush1.msra.mxu0 %v1285
    %1568 = vmatprep.subr.mxu0 0.0
    %1569 = vmatpush1.msra.mxu0 %v1286
    %1570 = vmatprep.subr.mxu0 0.0
    %1571 = vmatpush1.msra.mxu0 %v1287
    %1572 = vmatprep.subr.mxu0 0.0
    %1573 = vmatpush1.msra.mxu0 %v1288
    %1574 = vmatprep.subr.mxu0 0.0
    %1575 = vmatpush1.msra.mxu0 0.0
    %1576 = vmatprep.subr.mxu0 0.0
    %1577 = vmatpush1.msra.mxu0 0.0
    %1578 = vmatprep.subr.mxu0 0.0
    %1579 = vmatpush1.msra.mxu0 0.0
    %1580 = vmatprep.subr.mxu0 0.0
    %1581 = vmatpush1.msra.mxu0 0.0
    %1582 = vmatprep.subr.mxu0 0.0
    %1583 = vmatpush1.msra.mxu0 0.0
    %1584 = vmatprep.subr.mxu0 0.0
    %1585 = vmatpush1.msra.mxu0 0.0
    %1586 = vmatprep.subr.mxu0 0.0
    %1587 = vmatpush1.msra.mxu0 0.0
    %1588 = vmatprep.subr.mxu0 0.0
    %1589 = vmatpush1.msra.mxu0 0.0
    %1590 = vmatprep.subr.mxu0 0.0
    %1591 = vmatpush1.msra.mxu0 0.0
    %1592 = vmatprep.subr.mxu0 0.0
    %1593 = vmatpush1.msra.mxu0 0.0
    %1594 = vmatprep.subr.mxu0 0.0
    %1595 = vmatpush1.msra.mxu0 0.0
    %1596 = vmatprep.subr.mxu0 0.0
    %1597 = vmatpush1.msra.mxu0 0.0
    %1598 = vmatprep.subr.mxu0 0.0
    %1599 = vmatpush1.msra.mxu0 0.0
    %1600 = vmatprep.subr.mxu0 0.0
    %1601 = vmatpush1.msra.mxu0 0.0
    %1602 = vmatprep.subr.mxu0 0.0
    %1603 = vmatpush1.msra.mxu0 0.0
    %1604 = vmatprep.subr.mxu0 0.0
    %1605 = vmatpush1.msra.mxu0 0.0
    %1606 = vmatprep.subr.mxu0 0.0
    %1607 = vmatpush1.msra.mxu0 0.0
    %1608 = vmatprep.subr.mxu0 0.0
    %1609 = vmatpush1.msra.mxu0 0.0
    %1610 = vmatprep.subr.mxu0 0.0
    %1611 = vmatpush1.msra.mxu0 0.0
    %1612 = vmatprep.subr.mxu0 0.0
    %1613 = vmatpush1.msra.mxu0 0.0
    %1614 = vmatprep.subr.mxu0 0.0
    %1615 = vmatpush1.msra.mxu0 0.0
    %1616 = vmatprep.subr.mxu0 0.0
    %1617 = vmatpush1.msra.mxu0 0.0
    %1618 = vmatprep.subr.mxu0 0.0
    %1619 = vmatpush1.msra.mxu0 0.0
    %1620 = vmatprep.subr.mxu0 0.0
    %1621 = vmatpush1.msra.mxu0 0.0
    %1622 = vmatprep.subr.mxu0 0.0
    %1623 = vmatpush1.msra.mxu0 0.0
    %1624 = vmatprep.subr.mxu0 0.0
    %1625 = vmatpush1.msra.mxu0 0.0
    %1626 = vmatprep.subr.mxu0 0.0
    %1627 = vmatpush1.msra.mxu0 0.0
    %1628 = vmatprep.subr.mxu0 0.0
    %1629 = vmatpush1.msra.mxu0 0.0
    %1630 = vmatprep.mubr.f32.mxu0 0.0
    %1631 = vmatmul.mubr.f32.gmra.mrb[0].mxu0 %v1561
    %v1632 = vpop.f32.mrb[0].mxu0
    %v1633 = vadd.f32 0.0, %v1632
    %v1634 = vpop.f32.mrb[0].mxu0
    %1635 = vmatprep.mubr.f32.mxu0 0.0
    %1636 = vmatmul.mubr.f32.gmra.mrb[0].mxu0 %v1564
    %v1637 = vpop.f32.mrb[0].mxu0
    %v1638 = vadd.f32 0.0, %v1637
    %v1639 = vpop.f32.mrb[0].mxu0
    %1640 = vdwg.mxu0
    %1641 = vmatprep.subr.mxu0 0.0
    %1642 = vmatpush1.msra.mxu0 %v1372
    %1643 = vmatprep.subr.mxu0 0.0
    %1644 = vmatpush1.msra.mxu0 %v1373
    %1645 = vmatprep.subr.mxu0 0.0
    %1646 = vmatpush1.msra.mxu0 %v1374
    %1647 = vmatprep.subr.mxu0 0.0
    %1648 = vmatpush1.msra.mxu0 %v1375
    %1649 = vmatprep.subr.mxu0 0.0
    %1650 = vmatpush1.msra.mxu0 %v1376
    %1651 = vmatprep.subr.mxu0 0.0
    %1652 = vmatpush1.msra.mxu0 %v1377
    %1653 = vmatprep.subr.mxu0 0.0
    %1654 = vmatpush1.msra.mxu0 %v1378
    %1655 = vmatprep.subr.mxu0 0.0
    %1656 = vmatpush1.msra.mxu0 %v1379
    %1657 = vmatprep.subr.mxu0 0.0
    %1658 = vmatpush1.msra.mxu0 %v1380
    %1659 = vmatprep.subr.mxu0 0.0
    %1660 = vmatpush1.msra.mxu0 %v1381
    %1661 = vmatprep.subr.mxu0 0.0
    %1662 = vmatpush1.msra.mxu0 %v1382
    %1663 = vmatprep.subr.mxu0 0.0
    %1664 = vmatpush1.msra.mxu0 %v1383
    %1665 = vmatprep.subr.mxu0 0.0
    %1666 = vmatpush1.msra.mxu0 %v1384
    %1667 = vmatprep.subr.mxu0 0.0
    %1668 = vmatpush1.msra.mxu0 %v1385
    %1669 = vmatprep.subr.mxu0 0.0
    %1670 = vmatpush1.msra.mxu0 %v1386
    %1671 = vmatprep.subr.mxu0 0.0
    %1672 = vmatpush1.msra.mxu0 %v1387
    %1673 = vmatprep.subr.mxu0 0.0
    %1674 = vmatpush1.msra.mxu0 0.0
    %1675 = vmatprep.subr.mxu0 0.0
    %1676 = vmatpush1.msra.mxu0 0.0
    %1677 = vmatprep.subr.mxu0 0.0
    %1678 = vmatpush1.msra.mxu0 0.0
    %1679 = vmatprep.subr.mxu0 0.0
    %1680 = vmatpush1.msra.mxu0 0.0
    %1681 = vmatprep.subr.mxu0 0.0
    %1682 = vmatpush1.msra.mxu0 0.0
    %1683 = vmatprep.subr.mxu0 0.0
    %1684 = vmatpush1.msra.mxu0 0.0
    %1685 = vmatprep.subr.mxu0 0.0
    %1686 = vmatpush1.msra.mxu0 0.0
    %1687 = vmatprep.subr.mxu0 0.0
    %1688 = vmatpush1.msra.mxu0 0.0
    %1689 = vmatprep.subr.mxu0 0.0
    %1690 = vmatpush1.msra.mxu0 0.0
    %1691 = vmatprep.subr.mxu0 0.0
    %1692 = vmatpush1.msra.mxu0 0.0
    %1693 = vmatprep.subr.mxu0 0.0
    %1694 = vmatpush1.msra.mxu0 0.0
    %1695 = vmatprep.subr.mxu0 0.0
    %1696 = vmatpush1.msra.mxu0 0.0
    %1697 = vmatprep.subr.mxu0 0.0
    %1698 = vmatpush1.msra.mxu0 0.0
    %1699 = vmatprep.subr.mxu0 0.0
    %1700 = vmatpush1.msra.mxu0 0.0
    %1701 = vmatprep.subr.mxu0 0.0
    %1702 = vmatpush1.msra.mxu0 0.0
    %1703 = vmatprep.subr.mxu0 0.0
    %1704 = vmatpush1.msra.mxu0 0.0
    %1705 = vmatprep.mubr.f32.mxu0 0.0
    %1706 = vmatmul.mubr.f32.gmra.mrb[0].mxu0 %v1633
    %v1707 = vpop.f32.mrb[0].mxu0
    %v1708 = vadd.f32 0.0, %v1707
    %v1709 = vpop.f32.mrb[0].mxu0
    %1710 = vmatprep.mubr.f32.mxu0 0.0
    %1711 = vmatmul.mubr.f32.gmra.mrb[0].mxu0 %v1638
    %v1712 = vpop.f32.mrb[0].mxu0
    %v1713 = vadd.f32 0.0, %v1712
    %v1714 = vpop.f32.mrb[0].mxu0
    %1715 = vdwg.mxu0
    %v1716 = vmax.f32 %v1555, %v1708
    %v1717 = vmax.f32 %v1556, %v1713
    %1718 = vmatprep.subr.mxu0 0.0
    %1719 = vmatpush1.msra.mxu0 %v1464
    %1720 = vmatprep.subr.mxu0 0.0
    %1721 = vmatpush1.msra.mxu0 %v1465
    %1722 = vmatprep.subr.mxu0 0.0
    %1723 = vmatpush1.msra.mxu0 %v1466
    %1724 = vmatprep.subr.mxu0 0.0
    %1725 = vmatpush1.msra.mxu0 %v1467
    %1726 = vmatprep.subr.mxu0 0.0
    %1727 = vmatpush1.msra.mxu0 %v1468
    %1728 = vmatprep.subr.mxu0 0.0
    %1729 = vmatpush1.msra.mxu0 %v1469
    %1730 = vmatprep.subr.mxu0 0.0
    %1731 = vmatpush1.msra.mxu0 %v1470
    %1732 = vmatprep.subr.mxu0 0.0
    %1733 = vmatpush1.msra.mxu0 %v1471
    %1734 = vmatprep.subr.mxu0 0.0
    %1735 = vmatpush1.msra.mxu0 %v1472
    %1736 = vmatprep.subr.mxu0 0.0
    %1737 = vmatpush1.msra.mxu0 %v1473
    %1738 = vmatprep.subr.mxu0 0.0
    %1739 = vmatpush1.msra.mxu0 %v1474
    %1740 = vmatprep.subr.mxu0 0.0
    %1741 = vmatpush1.msra.mxu0 %v1475
    %1742 = vmatprep.subr.mxu0 0.0
    %1743 = vmatpush1.msra.mxu0 %v1476
    %1744 = vmatprep.subr.mxu0 0.0
    %1745 = vmatpush1.msra.mxu0 %v1477
    %1746 = vmatprep.subr.mxu0 0.0
    %1747 = vmatpush1.msra.mxu0 %v1478
    %1748 = vmatprep.subr.mxu0 0.0
    %1749 = vmatpush1.msra.mxu0 %v1479
    %1750 = vmatprep.subr.mxu0 0.0
    %1751 = vmatpush1.msra.mxu0 0.0
    %1752 = vmatprep.subr.mxu0 0.0
    %1753 = vmatpush1.msra.mxu0 0.0
    %1754 = vmatprep.subr.mxu0 0.0
    %1755 = vmatpush1.msra.mxu0 0.0
    %1756 = vmatprep.subr.mxu0 0.0
    %1757 = vmatpush1.msra.mxu0 0.0
    %1758 = vmatprep.subr.mxu0 0.0
    %1759 = vmatpush1.msra.mxu0 0.0
    %1760 = vmatprep.subr.mxu0 0.0
    %1761 = vmatpush1.msra.mxu0 0.0
    %1762 = vmatprep.subr.mxu0 0.0
    %1763 = vmatpush1.msra.mxu0 0.0
    %1764 = vmatprep.subr.mxu0 0.0
    %1765 = vmatpush1.msra.mxu0 0.0
    %1766 = vmatprep.subr.mxu0 0.0
    %1767 = vmatpush1.msra.mxu0 0.0
    %1768 = vmatprep.subr.mxu0 0.0
    %1769 = vmatpush1.msra.mxu0 0.0
    %1770 = vmatprep.subr.mxu0 0.0
    %1771 = vmatpush1.msra.mxu0 0.0
    %1772 = vmatprep.subr.mxu0 0.0
    %1773 = vmatpush1.msra.mxu0 0.0
    %1774 = vmatprep.subr.mxu0 0.0
    %1775 = vmatpush1.msra.mxu0 0.0
    %1776 = vmatprep.subr.mxu0 0.0
    %1777 = vmatpush1.msra.mxu0 0.0
    %1778 = vmatprep.subr.mxu0 0.0
    %1779 = vmatpush1.msra.mxu0 0.0
    %1780 = vmatprep.subr.mxu0 0.0
    %1781 = vmatpush1.msra.mxu0 0.0
    %1782 = vmatprep.mubr.f32.mxu0 0.0
    %1783 = vmatmul.mubr.f32.gmra.mrb[0].mxu0 %v1633
    %v1784 = vpop.f32.mrb[0].mxu0
    %v1785 = vadd.f32 0.0, %v1784
    %v1786 = vpop.f32.mrb[0].mxu0
    %1787 = vmatprep.mubr.f32.mxu0 0.0
    %1788 = vmatmul.mubr.f32.gmra.mrb[0].mxu0 %v1638
    %v1789 = vpop.f32.mrb[0].mxu0
    %v1790 = vadd.f32 0.0, %v1789
    %v1791 = vpop.f32.mrb[0].mxu0
    %1792 = vdwg.mxu0
    %v1793 = vmax.f32 %v1716, %v1785
    %v1794 = vmax.f32 %v1717, %v1790
    %v1795 = vld [vmem:[%s6] sm:$0xff]
    %v1796 = vld [vmem:[%s6 + $0x8] sm:$0xff]
    %vm1797 = vcmask 130048
    %v1799 = vsel %vm1797, %v1795, 0
    %v1802 = vsel %vm1797, %v1796, 0
    %1804 = vmatprep.subr.mxu0 0.0
    %1805 = vmatpush1.msra.mxu0 %v1793
    %1806 = vmatprep.subr.mxu0 0.0
    %1807 = vmatpush1.msra.mxu0 %v1794
    %1808 = vmatprep.subr.mxu0 0.0
    %1809 = vmatpush1.msra.mxu0 0.0
    %1810 = vmatprep.subr.mxu0 0.0
    %1811 = vmatpush1.msra.mxu0 0.0
    %1812 = vmatprep.subr.mxu0 0.0
    %1813 = vmatpush1.msra.mxu0 0.0
    %1814 = vmatprep.subr.mxu0 0.0
    %1815 = vmatpush1.msra.mxu0 0.0
    %1816 = vmatprep.subr.mxu0 0.0
    %1817 = vmatpush1.msra.mxu0 0.0
    %1818 = vmatprep.subr.mxu0 0.0
    %1819 = vmatpush1.msra.mxu0 0.0
    %1820 = vmatprep.subr.mxu0 0.0
    %1821 = vmatpush1.msra.mxu0 0.0
    %1822 = vmatprep.subr.mxu0 0.0
    %1823 = vmatpush1.msra.mxu0 0.0
    %1824 = vmatprep.subr.mxu0 0.0
    %1825 = vmatpush1.msra.mxu0 0.0
    %1826 = vmatprep.subr.mxu0 0.0
    %1827 = vmatpush1.msra.mxu0 0.0
    %1828 = vmatprep.subr.mxu0 0.0
    %1829 = vmatpush1.msra.mxu0 0.0
    %1830 = vmatprep.subr.mxu0 0.0
    %1831 = vmatpush1.msra.mxu0 0.0
    %1832 = vmatprep.subr.mxu0 0.0
    %1833 = vmatpush1.msra.mxu0 0.0
    %1834 = vmatprep.subr.mxu0 0.0
    %1835 = vmatpush1.msra.mxu0 0.0
    %1836 = vmatprep.subr.mxu0 0.0
    %1837 = vmatpush1.msra.mxu0 0.0
    %1838 = vmatprep.subr.mxu0 0.0
    %1839 = vmatpush1.msra.mxu0 0.0
    %1840 = vmatprep.subr.mxu0 0.0
    %1841 = vmatpush1.msra.mxu0 0.0
    %1842 = vmatprep.subr.mxu0 0.0
    %1843 = vmatpush1.msra.mxu0 0.0
    %1844 = vmatprep.subr.mxu0 0.0
    %1845 = vmatpush1.msra.mxu0 0.0
    %1846 = vmatprep.subr.mxu0 0.0
    %1847 = vmatpush1.msra.mxu0 0.0
    %1848 = vmatprep.subr.mxu0 0.0
    %1849 = vmatpush1.msra.mxu0 0.0
    %1850 = vmatprep.subr.mxu0 0.0
    %1851 = vmatpush1.msra.mxu0 0.0
    %1852 = vmatprep.subr.mxu0 0.0
    %1853 = vmatpush1.msra.mxu0 0.0
    %1854 = vmatprep.subr.mxu0 0.0
    %1855 = vmatpush1.msra.mxu0 0.0
    %1856 = vmatprep.subr.mxu0 0.0
    %1857 = vmatpush1.msra.mxu0 0.0
    %1858 = vmatprep.subr.mxu0 0.0
    %1859 = vmatpush1.msra.mxu0 0.0
    %1860 = vmatprep.subr.mxu0 0.0
    %1861 = vmatpush1.msra.mxu0 0.0
    %1862 = vmatprep.subr.mxu0 0.0
    %1863 = vmatpush1.msra.mxu0 0.0
    %1864 = vmatprep.subr.mxu0 0.0
    %1865 = vmatpush1.msra.mxu0 0.0
    %1866 = vmatprep.subr.mxu0 0.0
    %1867 = vmatpush1.msra.mxu0 0.0
    %1868 = vmatprep.mubr.f32.mxu0 0.0
    %1869 = vmatmul.mubr.f32.gmra.mrb[0].mxu0 %v1799
    %v1870 = vpop.f32.mrb[0].mxu0
    %v1871 = vadd.f32 0.0, %v1870
    %v1872 = vpop.f32.mrb[0].mxu0
    %1873 = vmatprep.mubr.f32.mxu0 0.0
    %1874 = vmatmul.mubr.f32.gmra.mrb[0].mxu0 %v1802
    %v1875 = vpop.f32.mrb[0].mxu0
    %v1876 = vadd.f32 0.0, %v1875
    %v1877 = vpop.f32.mrb[0].mxu0
    %1878 = vdwg.mxu0
    %v1879 = vld [vmem:[%s7] sm:$0xff]
    %v1880 = vld [vmem:[%s7 + $0x8] sm:$0xff]
    %v1881 = vld [vmem:[%s7 + $0x10] sm:$0xff]
    %v1882 = vld [vmem:[%s7 + $0x18] sm:$0xff]
    %v1883 = vld [vmem:[%s7 + $0x20] sm:$0xff]
    %v1884 = vld [vmem:[%s7 + $0x28] sm:$0xff]
    %v1885 = vld [vmem:[%s7 + $0x30] sm:$0xff]
    %v1886 = vld [vmem:[%s7 + $0x38] sm:$0xff]
    %s1887 = scalar_lea.vmem %s7, 64
    %v1888 = vld [vmem:[%s1887] sm:$0xff]
    %v1889 = vld [vmem:[%s1887 + $0x8] sm:$0xff]
    %v1890 = vld [vmem:[%s1887 + $0x10] sm:$0xff]
    %v1891 = vld [vmem:[%s1887 + $0x18] sm:$0xff]
    %v1892 = vld [vmem:[%s1887 + $0x20] sm:$0xff]
    %v1893 = vld [vmem:[%s1887 + $0x28] sm:$0xff]
    %v1894 = vld [vmem:[%s1887 + $0x30] sm:$0xff]
    %v1895 = vld [vmem:[%s1887 + $0x38] sm:$0xff]
    %v1897 = vsel %vm177, %v1871, 0
    %v1900 = vsel %vm177, %v1876, 0
    %1902 = vmatprep.subr.mxu0 0.0
    %1903 = vmatpush1.msra.mxu0 %v1888
    %1904 = vmatprep.subr.mxu0 0.0
    %1905 = vmatpush1.msra.mxu0 %v1889
    %1906 = vmatprep.subr.mxu0 0.0
    %1907 = vmatpush1.msra.mxu0 %v1890
    %1908 = vmatprep.subr.mxu0 0.0
    %1909 = vmatpush1.msra.mxu0 %v1891
    %1910 = vmatprep.subr.mxu0 0.0
    %1911 = vmatpush1.msra.mxu0 %v1892
    %1912 = vmatprep.subr.mxu0 0.0
    %1913 = vmatpush1.msra.mxu0 %v1893
    %1914 = vmatprep.subr.mxu0 0.0
    %1915 = vmatpush1.msra.mxu0 %v1894
    %1916 = vmatprep.subr.mxu0 0.0
    %1917 = vmatpush1.msra.mxu0 %v1895
    %1918 = vmatprep.subr.mxu0 0.0
    %1919 = vmatpush1.msra.mxu0 0.0
    %1920 = vmatprep.subr.mxu0 0.0
    %1921 = vmatpush1.msra.mxu0 0.0
    %1922 = vmatprep.subr.mxu0 0.0
    %1923 = vmatpush1.msra.mxu0 0.0
    %1924 = vmatprep.subr.mxu0 0.0
    %1925 = vmatpush1.msra.mxu0 0.0
    %1926 = vmatprep.subr.mxu0 0.0
    %1927 = vmatpush1.msra.mxu0 0.0
    %1928 = vmatprep.subr.mxu0 0.0
    %1929 = vmatpush1.msra.mxu0 0.0
    %1930 = vmatprep.subr.mxu0 0.0
    %1931 = vmatpush1.msra.mxu0 0.0
    %1932 = vmatprep.subr.mxu0 0.0
    %1933 = vmatpush1.msra.mxu0 0.0
    %1934 = vmatprep.subr.mxu0 0.0
    %1935 = vmatpush1.msra.mxu0 0.0
    %1936 = vmatprep.subr.mxu0 0.0
    %1937 = vmatpush1.msra.mxu0 0.0
    %1938 = vmatprep.subr.mxu0 0.0
    %1939 = vmatpush1.msra.mxu0 0.0
    %1940 = vmatprep.subr.mxu0 0.0
    %1941 = vmatpush1.msra.mxu0 0.0
    %1942 = vmatprep.subr.mxu0 0.0
    %1943 = vmatpush1.msra.mxu0 0.0
    %1944 = vmatprep.subr.mxu0 0.0
    %1945 = vmatpush1.msra.mxu0 0.0
    %1946 = vmatprep.subr.mxu0 0.0
    %1947 = vmatpush1.msra.mxu0 0.0
    %1948 = vmatprep.subr.mxu0 0.0
    %1949 = vmatpush1.msra.mxu0 0.0
    %1950 = vmatprep.subr.mxu0 0.0
    %1951 = vmatpush1.msra.mxu0 0.0
    %1952 = vmatprep.subr.mxu0 0.0
    %1953 = vmatpush1.msra.mxu0 0.0
    %1954 = vmatprep.subr.mxu0 0.0
    %1955 = vmatpush1.msra.mxu0 0.0
    %1956 = vmatprep.subr.mxu0 0.0
    %1957 = vmatpush1.msra.mxu0 0.0
    %1958 = vmatprep.subr.mxu0 0.0
    %1959 = vmatpush1.msra.mxu0 0.0
    %1960 = vmatprep.subr.mxu0 0.0
    %1961 = vmatpush1.msra.mxu0 0.0
    %1962 = vmatprep.subr.mxu0 0.0
    %1963 = vmatpush1.msra.mxu0 0.0
    %1964 = vmatprep.subr.mxu0 0.0
    %1965 = vmatpush1.msra.mxu0 0.0
    %1966 = vmatprep.mubr.f32.mxu0 0.0
    %1967 = vmatmul.mubr.f32.gmra.mrb[0].mxu0 %v1897
    %v1968 = vpop.f32.mrb[0].mxu0
    %v1969 = vadd.f32 0.0, %v1968
    %v1970 = vpop.f32.mrb[0].mxu0
    %1971 = vmatprep.mubr.f32.mxu0 0.0
    %1972 = vmatmul.mubr.f32.gmra.mrb[0].mxu0 %v1900
    %v1973 = vpop.f32.mrb[0].mxu0
    %v1974 = vadd.f32 0.0, %v1973
    %v1975 = vpop.f32.mrb[0].mxu0
    %1976 = vdwg.mxu0
    %1977 = vmatprep.subr.mxu0 0.0
    %1978 = vmatpush1.msra.mxu0 %v1879
    %1979 = vmatprep.subr.mxu0 0.0
    %1980 = vmatpush1.msra.mxu0 %v1880
    %1981 = vmatprep.subr.mxu0 0.0
    %1982 = vmatpush1.msra.mxu0 %v1881
    %1983 = vmatprep.subr.mxu0 0.0
    %1984 = vmatpush1.msra.mxu0 %v1882
    %1985 = vmatprep.subr.mxu0 0.0
    %1986 = vmatpush1.msra.mxu0 %v1883
    %1987 = vmatprep.subr.mxu0 0.0
    %1988 = vmatpush1.msra.mxu0 %v1884
    %1989 = vmatprep.subr.mxu0 0.0
    %1990 = vmatpush1.msra.mxu0 %v1885
    %1991 = vmatprep.subr.mxu0 0.0
    %1992 = vmatpush1.msra.mxu0 %v1886
    %1993 = vmatprep.subr.mxu0 0.0
    %1994 = vmatpush1.msra.mxu0 0.0
    %1995 = vmatprep.subr.mxu0 0.0
    %1996 = vmatpush1.msra.mxu0 0.0
    %1997 = vmatprep.subr.mxu0 0.0
    %1998 = vmatpush1.msra.mxu0 0.0
    %1999 = vmatprep.subr.mxu0 0.0
    %2000 = vmatpush1.msra.mxu0 0.0
    %2001 = vmatprep.subr.mxu0 0.0
    %2002 = vmatpush1.msra.mxu0 0.0
    %2003 = vmatprep.subr.mxu0 0.0
    %2004 = vmatpush1.msra.mxu0 0.0
    %2005 = vmatprep.subr.mxu0 0.0
    %2006 = vmatpush1.msra.mxu0 0.0
    %2007 = vmatprep.subr.mxu0 0.0
    %2008 = vmatpush1.msra.mxu0 0.0
    %2009 = vmatprep.subr.mxu0 0.0
    %2010 = vmatpush1.msra.mxu0 0.0
    %2011 = vmatprep.subr.mxu0 0.0
    %2012 = vmatpush1.msra.mxu0 0.0
    %2013 = vmatprep.subr.mxu0 0.0
    %2014 = vmatpush1.msra.mxu0 0.0
    %2015 = vmatprep.subr.mxu0 0.0
    %2016 = vmatpush1.msra.mxu0 0.0
    %2017 = vmatprep.subr.mxu0 0.0
    %2018 = vmatpush1.msra.mxu0 0.0
    %2019 = vmatprep.subr.mxu0 0.0
    %2020 = vmatpush1.msra.mxu0 0.0
    %2021 = vmatprep.subr.mxu0 0.0
    %2022 = vmatpush1.msra.mxu0 0.0
    %2023 = vmatprep.subr.mxu0 0.0
    %2024 = vmatpush1.msra.mxu0 0.0
    %2025 = vmatprep.subr.mxu0 0.0
    %2026 = vmatpush1.msra.mxu0 0.0
    %2027 = vmatprep.subr.mxu0 0.0
    %2028 = vmatpush1.msra.mxu0 0.0
    %2029 = vmatprep.subr.mxu0 0.0
    %2030 = vmatpush1.msra.mxu0 0.0
    %2031 = vmatprep.subr.mxu0 0.0
    %2032 = vmatpush1.msra.mxu0 0.0
    %2033 = vmatprep.subr.mxu0 0.0
    %2034 = vmatpush1.msra.mxu0 0.0
    %2035 = vmatprep.subr.mxu0 0.0
    %2036 = vmatpush1.msra.mxu0 0.0
    %2037 = vmatprep.subr.mxu0 0.0
    %2038 = vmatpush1.msra.mxu0 0.0
    %2039 = vmatprep.subr.mxu0 0.0
    %2040 = vmatpush1.msra.mxu0 0.0
    %2041 = vmatprep.mubr.f32.mxu0 0.0
    %2042 = vmatmul.mubr.f32.gmra.mrb[0].mxu0 %v1897
    %v2043 = vpop.f32.mrb[0].mxu0
    %v2044 = vadd.f32 %v1969, %v2043
    %v2045 = vpop.f32.mrb[0].mxu0
    %2046 = vmatprep.mubr.f32.mxu0 0.0
    %2047 = vmatmul.mubr.f32.gmra.mrb[0].mxu0 %v1900
    %v2048 = vpop.f32.mrb[0].mxu0
    %v2049 = vadd.f32 %v1974, %v2048
    %v2050 = vpop.f32.mrb[0].mxu0
    %2051 = vdwg.mxu0
    %s2052 = scalar_lea.vmem %s7, 128
    %v2053 = vld [vmem:[%s2052] sm:$0xff]
    %v2054 = vld [vmem:[%s2052 + $0x8] sm:$0xff]
    %v2055 = vld [vmem:[%s2052 + $0x10] sm:$0xff]
    %v2056 = vld [vmem:[%s2052 + $0x18] sm:$0xff]
    %v2057 = vld [vmem:[%s2052 + $0x20] sm:$0xff]
    %v2058 = vld [vmem:[%s2052 + $0x28] sm:$0xff]
    %v2059 = vld [vmem:[%s2052 + $0x30] sm:$0xff]
    %v2060 = vld [vmem:[%s2052 + $0x38] sm:$0xff]
    %2061 = vmatprep.subr.mxu0 0.0
    %2062 = vmatpush1.msra.mxu0 %v2053
    %2063 = vmatprep.subr.mxu0 0.0
    %2064 = vmatpush1.msra.mxu0 %v2054
    %2065 = vmatprep.subr.mxu0 0.0
    %2066 = vmatpush1.msra.mxu0 %v2055
    %2067 = vmatprep.subr.mxu0 0.0
    %2068 = vmatpush1.msra.mxu0 %v2056
    %2069 = vmatprep.subr.mxu0 0.0
    %2070 = vmatpush1.msra.mxu0 %v2057
    %2071 = vmatprep.subr.mxu0 0.0
    %2072 = vmatpush1.msra.mxu0 %v2058
    %2073 = vmatprep.subr.mxu0 0.0
    %2074 = vmatpush1.msra.mxu0 %v2059
    %2075 = vmatprep.subr.mxu0 0.0
    %2076 = vmatpush1.msra.mxu0 %v2060
    %2077 = vmatprep.subr.mxu0 0.0
    %2078 = vmatpush1.msra.mxu0 0.0
    %2079 = vmatprep.subr.mxu0 0.0
    %2080 = vmatpush1.msra.mxu0 0.0
    %2081 = vmatprep.subr.mxu0 0.0
    %2082 = vmatpush1.msra.mxu0 0.0
    %2083 = vmatprep.subr.mxu0 0.0
    %2084 = vmatpush1.msra.mxu0 0.0
    %2085 = vmatprep.subr.mxu0 0.0
    %2086 = vmatpush1.msra.mxu0 0.0
    %2087 = vmatprep.subr.mxu0 0.0
    %2088 = vmatpush1.msra.mxu0 0.0
    %2089 = vmatprep.subr.mxu0 0.0
    %2090 = vmatpush1.msra.mxu0 0.0
    %2091 = vmatprep.subr.mxu0 0.0
    %2092 = vmatpush1.msra.mxu0 0.0
    %2093 = vmatprep.subr.mxu0 0.0
    %2094 = vmatpush1.msra.mxu0 0.0
    %2095 = vmatprep.subr.mxu0 0.0
    %2096 = vmatpush1.msra.mxu0 0.0
    %2097 = vmatprep.subr.mxu0 0.0
    %2098 = vmatpush1.msra.mxu0 0.0
    %2099 = vmatprep.subr.mxu0 0.0
    %2100 = vmatpush1.msra.mxu0 0.0
    %2101 = vmatprep.subr.mxu0 0.0
    %2102 = vmatpush1.msra.mxu0 0.0
    %2103 = vmatprep.subr.mxu0 0.0
    %2104 = vmatpush1.msra.mxu0 0.0
    %2105 = vmatprep.subr.mxu0 0.0
    %2106 = vmatpush1.msra.mxu0 0.0
    %2107 = vmatprep.subr.mxu0 0.0
    %2108 = vmatpush1.msra.mxu0 0.0
    %2109 = vmatprep.subr.mxu0 0.0
    %2110 = vmatpush1.msra.mxu0 0.0
    %2111 = vmatprep.subr.mxu0 0.0
    %2112 = vmatpush1.msra.mxu0 0.0
    %2113 = vmatprep.subr.mxu0 0.0
    %2114 = vmatpush1.msra.mxu0 0.0
    %2115 = vmatprep.subr.mxu0 0.0
    %2116 = vmatpush1.msra.mxu0 0.0
    %2117 = vmatprep.subr.mxu0 0.0
    %2118 = vmatpush1.msra.mxu0 0.0
    %2119 = vmatprep.subr.mxu0 0.0
    %2120 = vmatpush1.msra.mxu0 0.0
    %2121 = vmatprep.subr.mxu0 0.0
    %2122 = vmatpush1.msra.mxu0 0.0
    %2123 = vmatprep.subr.mxu0 0.0
    %2124 = vmatpush1.msra.mxu0 0.0
    %2125 = vmatprep.mubr.f32.mxu0 0.0
    %2126 = vmatmul.mubr.f32.gmra.mrb[0].mxu0 %v1897
    %v2127 = vpop.f32.mrb[0].mxu0
    %v2128 = vadd.f32 0.0, %v2127
    %v2129 = vpop.f32.mrb[0].mxu0
    %2130 = vmatprep.mubr.f32.mxu0 0.0
    %2131 = vmatmul.mubr.f32.gmra.mrb[0].mxu0 %v1900
    %v2132 = vpop.f32.mrb[0].mxu0
    %v2133 = vadd.f32 0.0, %v2132
    %v2134 = vpop.f32.mrb[0].mxu0
    %2135 = vdwg.mxu0
    %v2136 = vadd.f32 %v2044, %v2128
    %v2137 = vadd.f32 %v2049, %v2133
    %s2138 = scalar_lea.vmem %s6, 16
    %v2139 = vld [vmem:[%s2138] sm:$0xff]
    %v2140 = vld [vmem:[%s2138 + $0x8] sm:$0xff]
    %v2142 = vsel %vm1797, %v2139, 0
    %v2145 = vsel %vm1797, %v2140, 0
    %2147 = vmatprep.subr.mxu0 0.0
    %2148 = vmatpush1.msra.mxu0 %v1793
    %2149 = vmatprep.subr.mxu0 0.0
    %2150 = vmatpush1.msra.mxu0 %v1794
    %2151 = vmatprep.subr.mxu0 0.0
    %2152 = vmatpush1.msra.mxu0 0.0
    %2153 = vmatprep.subr.mxu0 0.0
    %2154 = vmatpush1.msra.mxu0 0.0
    %2155 = vmatprep.subr.mxu0 0.0
    %2156 = vmatpush1.msra.mxu0 0.0
    %2157 = vmatprep.subr.mxu0 0.0
    %2158 = vmatpush1.msra.mxu0 0.0
    %2159 = vmatprep.subr.mxu0 0.0
    %2160 = vmatpush1.msra.mxu0 0.0
    %2161 = vmatprep.subr.mxu0 0.0
    %2162 = vmatpush1.msra.mxu0 0.0
    %2163 = vmatprep.subr.mxu0 0.0
    %2164 = vmatpush1.msra.mxu0 0.0
    %2165 = vmatprep.subr.mxu0 0.0
    %2166 = vmatpush1.msra.mxu0 0.0
    %2167 = vmatprep.subr.mxu0 0.0
    %2168 = vmatpush1.msra.mxu0 0.0
    %2169 = vmatprep.subr.mxu0 0.0
    %2170 = vmatpush1.msra.mxu0 0.0
    %2171 = vmatprep.subr.mxu0 0.0
    %2172 = vmatpush1.msra.mxu0 0.0
    %2173 = vmatprep.subr.mxu0 0.0
    %2174 = vmatpush1.msra.mxu0 0.0
    %2175 = vmatprep.subr.mxu0 0.0
    %2176 = vmatpush1.msra.mxu0 0.0
    %2177 = vmatprep.subr.mxu0 0.0
    %2178 = vmatpush1.msra.mxu0 0.0
    %2179 = vmatprep.subr.mxu0 0.0
    %2180 = vmatpush1.msra.mxu0 0.0
    %2181 = vmatprep.subr.mxu0 0.0
    %2182 = vmatpush1.msra.mxu0 0.0
    %2183 = vmatprep.subr.mxu0 0.0
    %2184 = vmatpush1.msra.mxu0 0.0
    %2185 = vmatprep.subr.mxu0 0.0
    %2186 = vmatpush1.msra.mxu0 0.0
    %2187 = vmatprep.subr.mxu0 0.0
    %2188 = vmatpush1.msra.mxu0 0.0
    %2189 = vmatprep.subr.mxu0 0.0
    %2190 = vmatpush1.msra.mxu0 0.0
    %2191 = vmatprep.subr.mxu0 0.0
    %2192 = vmatpush1.msra.mxu0 0.0
    %2193 = vmatprep.subr.mxu0 0.0
    %2194 = vmatpush1.msra.mxu0 0.0
    %2195 = vmatprep.subr.mxu0 0.0
    %2196 = vmatpush1.msra.mxu0 0.0
    %2197 = vmatprep.subr.mxu0 0.0
    %2198 = vmatpush1.msra.mxu0 0.0
    %2199 = vmatprep.subr.mxu0 0.0
    %2200 = vmatpush1.msra.mxu0 0.0
    %2201 = vmatprep.subr.mxu0 0.0
    %2202 = vmatpush1.msra.mxu0 0.0
    %2203 = vmatprep.subr.mxu0 0.0
    %2204 = vmatpush1.msra.mxu0 0.0
    %2205 = vmatprep.subr.mxu0 0.0
    %2206 = vmatpush1.msra.mxu0 0.0
    %2207 = vmatprep.subr.mxu0 0.0
    %2208 = vmatpush1.msra.mxu0 0.0
    %2209 = vmatprep.subr.mxu0 0.0
    %2210 = vmatpush1.msra.mxu0 0.0
    %2211 = vmatprep.mubr.f32.mxu0 0.0
    %2212 = vmatmul.mubr.f32.gmra.mrb[0].mxu0 %v2142
    %v2213 = vpop.f32.mrb[0].mxu0
    %v2214 = vadd.f32 0.0, %v2213
    %v2215 = vpop.f32.mrb[0].mxu0
    %2216 = vmatprep.mubr.f32.mxu0 0.0
    %2217 = vmatmul.mubr.f32.gmra.mrb[0].mxu0 %v2145
    %v2218 = vpop.f32.mrb[0].mxu0
    %v2219 = vadd.f32 0.0, %v2218
    %v2220 = vpop.f32.mrb[0].mxu0
    %2221 = vdwg.mxu0
    %s2222 = scalar_lea.vmem %s7, 192
    %v2223 = vld [vmem:[%s2222] sm:$0xff]
    %v2224 = vld [vmem:[%s2222 + $0x8] sm:$0xff]
    %v2225 = vld [vmem:[%s2222 + $0x10] sm:$0xff]
    %v2226 = vld [vmem:[%s2222 + $0x18] sm:$0xff]
    %v2227 = vld [vmem:[%s2222 + $0x20] sm:$0xff]
    %v2228 = vld [vmem:[%s2222 + $0x28] sm:$0xff]
    %v2229 = vld [vmem:[%s2222 + $0x30] sm:$0xff]
    %v2230 = vld [vmem:[%s2222 + $0x38] sm:$0xff]
    %v2232 = vsel %vm177, %v2214, 0
    %v2235 = vsel %vm177, %v2219, 0
    %2237 = vmatprep.subr.mxu0 0.0
    %2238 = vmatpush1.msra.mxu0 %v2223
    %2239 = vmatprep.subr.mxu0 0.0
    %2240 = vmatpush1.msra.mxu0 %v2224
    %2241 = vmatprep.subr.mxu0 0.0
    %2242 = vmatpush1.msra.mxu0 %v2225
    %2243 = vmatprep.subr.mxu0 0.0
    %2244 = vmatpush1.msra.mxu0 %v2226
    %2245 = vmatprep.subr.mxu0 0.0
    %2246 = vmatpush1.msra.mxu0 %v2227
    %2247 = vmatprep.subr.mxu0 0.0
    %2248 = vmatpush1.msra.mxu0 %v2228
    %2249 = vmatprep.subr.mxu0 0.0
    %2250 = vmatpush1.msra.mxu0 %v2229
    %2251 = vmatprep.subr.mxu0 0.0
    %2252 = vmatpush1.msra.mxu0 %v2230
    %2253 = vmatprep.subr.mxu0 0.0
    %2254 = vmatpush1.msra.mxu0 0.0
    %2255 = vmatprep.subr.mxu0 0.0
    %2256 = vmatpush1.msra.mxu0 0.0
    %2257 = vmatprep.subr.mxu0 0.0
    %2258 = vmatpush1.msra.mxu0 0.0
    %2259 = vmatprep.subr.mxu0 0.0
    %2260 = vmatpush1.msra.mxu0 0.0
    %2261 = vmatprep.subr.mxu0 0.0
    %2262 = vmatpush1.msra.mxu0 0.0
    %2263 = vmatprep.subr.mxu0 0.0
    %2264 = vmatpush1.msra.mxu0 0.0
    %2265 = vmatprep.subr.mxu0 0.0
    %2266 = vmatpush1.msra.mxu0 0.0
    %2267 = vmatprep.subr.mxu0 0.0
    %2268 = vmatpush1.msra.mxu0 0.0
    %2269 = vmatprep.subr.mxu0 0.0
    %2270 = vmatpush1.msra.mxu0 0.0
    %2271 = vmatprep.subr.mxu0 0.0
    %2272 = vmatpush1.msra.mxu0 0.0
    %2273 = vmatprep.subr.mxu0 0.0
    %2274 = vmatpush1.msra.mxu0 0.0
    %2275 = vmatprep.subr.mxu0 0.0
    %2276 = vmatpush1.msra.mxu0 0.0
    %2277 = vmatprep.subr.mxu0 0.0
    %2278 = vmatpush1.msra.mxu0 0.0
    %2279 = vmatprep.subr.mxu0 0.0
    %2280 = vmatpush1.msra.mxu0 0.0
    %2281 = vmatprep.subr.mxu0 0.0
    %2282 = vmatpush1.msra.mxu0 0.0
    %2283 = vmatprep.subr.mxu0 0.0
    %2284 = vmatpush1.msra.mxu0 0.0
    %2285 = vmatprep.subr.mxu0 0.0
    %2286 = vmatpush1.msra.mxu0 0.0
    %2287 = vmatprep.subr.mxu0 0.0
    %2288 = vmatpush1.msra.mxu0 0.0
    %2289 = vmatprep.subr.mxu0 0.0
    %2290 = vmatpush1.msra.mxu0 0.0
    %2291 = vmatprep.subr.mxu0 0.0
    %2292 = vmatpush1.msra.mxu0 0.0
    %2293 = vmatprep.subr.mxu0 0.0
    %2294 = vmatpush1.msra.mxu0 0.0
    %2295 = vmatprep.subr.mxu0 0.0
    %2296 = vmatpush1.msra.mxu0 0.0
    %2297 = vmatprep.subr.mxu0 0.0
    %2298 = vmatpush1.msra.mxu0 0.0
    %2299 = vmatprep.subr.mxu0 0.0
    %2300 = vmatpush1.msra.mxu0 0.0
    %2301 = vmatprep.mubr.f32.mxu0 0.0
    %2302 = vmatmul.mubr.f32.gmra.mrb[0].mxu0 %v2232
    %v2303 = vpop.f32.mrb[0].mxu0
    %v2304 = vadd.f32 0.0, %v2303
    %v2305 = vpop.f32.mrb[0].mxu0
    %2306 = vmatprep.mubr.f32.mxu0 0.0
    %2307 = vmatmul.mubr.f32.gmra.mrb[0].mxu0 %v2235
    %v2308 = vpop.f32.mrb[0].mxu0
    %v2309 = vadd.f32 0.0, %v2308
    %v2310 = vpop.f32.mrb[0].mxu0
    %2311 = vdwg.mxu0
    %v2312 = vadd.f32 %v2136, %v2304
    %v2313 = vadd.f32 %v2137, %v2309
    %s2314 = scalar_lea.vmem %s7, 256
    %v2315 = vld [vmem:[%s2314] sm:$0xff]
    %v2316 = vld [vmem:[%s2314 + $0x8] sm:$0xff]
    %v2317 = vld [vmem:[%s2314 + $0x10] sm:$0xff]
    %v2318 = vld [vmem:[%s2314 + $0x18] sm:$0xff]
    %v2319 = vld [vmem:[%s2314 + $0x20] sm:$0xff]
    %v2320 = vld [vmem:[%s2314 + $0x28] sm:$0xff]
    %v2321 = vld [vmem:[%s2314 + $0x30] sm:$0xff]
    %v2322 = vld [vmem:[%s2314 + $0x38] sm:$0xff]
    %2323 = vmatprep.subr.mxu0 0.0
    %2324 = vmatpush1.msra.mxu0 %v2315
    %2325 = vmatprep.subr.mxu0 0.0
    %2326 = vmatpush1.msra.mxu0 %v2316
    %2327 = vmatprep.subr.mxu0 0.0
    %2328 = vmatpush1.msra.mxu0 %v2317
    %2329 = vmatprep.subr.mxu0 0.0
    %2330 = vmatpush1.msra.mxu0 %v2318
    %2331 = vmatprep.subr.mxu0 0.0
    %2332 = vmatpush1.msra.mxu0 %v2319
    %2333 = vmatprep.subr.mxu0 0.0
    %2334 = vmatpush1.msra.mxu0 %v2320
    %2335 = vmatprep.subr.mxu0 0.0
    %2336 = vmatpush1.msra.mxu0 %v2321
    %2337 = vmatprep.subr.mxu0 0.0
    %2338 = vmatpush1.msra.mxu0 %v2322
    %2339 = vmatprep.subr.mxu0 0.0
    %2340 = vmatpush1.msra.mxu0 0.0
    %2341 = vmatprep.subr.mxu0 0.0
    %2342 = vmatpush1.msra.mxu0 0.0
    %2343 = vmatprep.subr.mxu0 0.0
    %2344 = vmatpush1.msra.mxu0 0.0
    %2345 = vmatprep.subr.mxu0 0.0
    %2346 = vmatpush1.msra.mxu0 0.0
    %2347 = vmatprep.subr.mxu0 0.0
    %2348 = vmatpush1.msra.mxu0 0.0
    %2349 = vmatprep.subr.mxu0 0.0
    %2350 = vmatpush1.msra.mxu0 0.0
    %2351 = vmatprep.subr.mxu0 0.0
    %2352 = vmatpush1.msra.mxu0 0.0
    %2353 = vmatprep.subr.mxu0 0.0
    %2354 = vmatpush1.msra.mxu0 0.0
    %2355 = vmatprep.subr.mxu0 0.0
    %2356 = vmatpush1.msra.mxu0 0.0
    %2357 = vmatprep.subr.mxu0 0.0
    %2358 = vmatpush1.msra.mxu0 0.0
    %2359 = vmatprep.subr.mxu0 0.0
    %2360 = vmatpush1.msra.mxu0 0.0
    %2361 = vmatprep.subr.mxu0 0.0
    %2362 = vmatpush1.msra.mxu0 0.0
    %2363 = vmatprep.subr.mxu0 0.0
    %2364 = vmatpush1.msra.mxu0 0.0
    %2365 = vmatprep.subr.mxu0 0.0
    %2366 = vmatpush1.msra.mxu0 0.0
    %2367 = vmatprep.subr.mxu0 0.0
    %2368 = vmatpush1.msra.mxu0 0.0
    %2369 = vmatprep.subr.mxu0 0.0
    %2370 = vmatpush1.msra.mxu0 0.0
    %2371 = vmatprep.subr.mxu0 0.0
    %2372 = vmatpush1.msra.mxu0 0.0
    %2373 = vmatprep.subr.mxu0 0.0
    %2374 = vmatpush1.msra.mxu0 0.0
    %2375 = vmatprep.subr.mxu0 0.0
    %2376 = vmatpush1.msra.mxu0 0.0
    %2377 = vmatprep.subr.mxu0 0.0
    %2378 = vmatpush1.msra.mxu0 0.0
    %2379 = vmatprep.subr.mxu0 0.0
    %2380 = vmatpush1.msra.mxu0 0.0
    %2381 = vmatprep.subr.mxu0 0.0
    %2382 = vmatpush1.msra.mxu0 0.0
    %2383 = vmatprep.subr.mxu0 0.0
    %2384 = vmatpush1.msra.mxu0 0.0
    %2385 = vmatprep.subr.mxu0 0.0
    %2386 = vmatpush1.msra.mxu0 0.0
    %2387 = vmatprep.mubr.f32.mxu0 0.0
    %2388 = vmatmul.mubr.f32.gmra.mrb[0].mxu0 %v2232
    %v2389 = vpop.f32.mrb[0].mxu0
    %v2390 = vadd.f32 0.0, %v2389
    %v2391 = vpop.f32.mrb[0].mxu0
    %2392 = vmatprep.mubr.f32.mxu0 0.0
    %2393 = vmatmul.mubr.f32.gmra.mrb[0].mxu0 %v2235
    %v2394 = vpop.f32.mrb[0].mxu0
    %v2395 = vadd.f32 0.0, %v2394
    %v2396 = vpop.f32.mrb[0].mxu0
    %2397 = vdwg.mxu0
    %v2398 = vadd.f32 %v2312, %v2390
    %v2399 = vadd.f32 %v2313, %v2395
    %s2400 = scalar_lea.vmem %s7, 320
    %v2401 = vld [vmem:[%s2400] sm:$0xff]
    %v2402 = vld [vmem:[%s2400 + $0x8] sm:$0xff]
    %v2403 = vld [vmem:[%s2400 + $0x10] sm:$0xff]
    %v2404 = vld [vmem:[%s2400 + $0x18] sm:$0xff]
    %v2405 = vld [vmem:[%s2400 + $0x20] sm:$0xff]
    %v2406 = vld [vmem:[%s2400 + $0x28] sm:$0xff]
    %v2407 = vld [vmem:[%s2400 + $0x30] sm:$0xff]
    %v2408 = vld [vmem:[%s2400 + $0x38] sm:$0xff]
    %2409 = vmatprep.subr.mxu0 0.0
    %2410 = vmatpush1.msra.mxu0 %v2401
    %2411 = vmatprep.subr.mxu0 0.0
    %2412 = vmatpush1.msra.mxu0 %v2402
    %2413 = vmatprep.subr.mxu0 0.0
    %2414 = vmatpush1.msra.mxu0 %v2403
    %2415 = vmatprep.subr.mxu0 0.0
    %2416 = vmatpush1.msra.mxu0 %v2404
    %2417 = vmatprep.subr.mxu0 0.0
    %2418 = vmatpush1.msra.mxu0 %v2405
    %2419 = vmatprep.subr.mxu0 0.0
    %2420 = vmatpush1.msra.mxu0 %v2406
    %2421 = vmatprep.subr.mxu0 0.0
    %2422 = vmatpush1.msra.mxu0 %v2407
    %2423 = vmatprep.subr.mxu0 0.0
    %2424 = vmatpush1.msra.mxu0 %v2408
    %2425 = vmatprep.subr.mxu0 0.0
    %2426 = vmatpush1.msra.mxu0 0.0
    %2427 = vmatprep.subr.mxu0 0.0
    %2428 = vmatpush1.msra.mxu0 0.0
    %2429 = vmatprep.subr.mxu0 0.0
    %2430 = vmatpush1.msra.mxu0 0.0
    %2431 = vmatprep.subr.mxu0 0.0
    %2432 = vmatpush1.msra.mxu0 0.0
    %2433 = vmatprep.subr.mxu0 0.0
    %2434 = vmatpush1.msra.mxu0 0.0
    %2435 = vmatprep.subr.mxu0 0.0
    %2436 = vmatpush1.msra.mxu0 0.0
    %2437 = vmatprep.subr.mxu0 0.0
    %2438 = vmatpush1.msra.mxu0 0.0
    %2439 = vmatprep.subr.mxu0 0.0
    %2440 = vmatpush1.msra.mxu0 0.0
    %2441 = vmatprep.subr.mxu0 0.0
    %2442 = vmatpush1.msra.mxu0 0.0
    %2443 = vmatprep.subr.mxu0 0.0
    %2444 = vmatpush1.msra.mxu0 0.0
    %2445 = vmatprep.subr.mxu0 0.0
    %2446 = vmatpush1.msra.mxu0 0.0
    %2447 = vmatprep.subr.mxu0 0.0
    %2448 = vmatpush1.msra.mxu0 0.0
    %2449 = vmatprep.subr.mxu0 0.0
    %2450 = vmatpush1.msra.mxu0 0.0
    %2451 = vmatprep.subr.mxu0 0.0
    %2452 = vmatpush1.msra.mxu0 0.0
    %2453 = vmatprep.subr.mxu0 0.0
    %2454 = vmatpush1.msra.mxu0 0.0
    %2455 = vmatprep.subr.mxu0 0.0
    %2456 = vmatpush1.msra.mxu0 0.0
    %2457 = vmatprep.subr.mxu0 0.0
    %2458 = vmatpush1.msra.mxu0 0.0
    %2459 = vmatprep.subr.mxu0 0.0
    %2460 = vmatpush1.msra.mxu0 0.0
    %2461 = vmatprep.subr.mxu0 0.0
    %2462 = vmatpush1.msra.mxu0 0.0
    %2463 = vmatprep.subr.mxu0 0.0
    %2464 = vmatpush1.msra.mxu0 0.0
    %2465 = vmatprep.subr.mxu0 0.0
    %2466 = vmatpush1.msra.mxu0 0.0
    %2467 = vmatprep.subr.mxu0 0.0
    %2468 = vmatpush1.msra.mxu0 0.0
    %2469 = vmatprep.subr.mxu0 0.0
    %2470 = vmatpush1.msra.mxu0 0.0
    %2471 = vmatprep.subr.mxu0 0.0
    %2472 = vmatpush1.msra.mxu0 0.0
    %2473 = vmatprep.mubr.f32.mxu0 0.0
    %2474 = vmatmul.mubr.f32.gmra.mrb[0].mxu0 %v2232
    %v2475 = vpop.f32.mrb[0].mxu0
    %v2476 = vadd.f32 0.0, %v2475
    %v2477 = vpop.f32.mrb[0].mxu0
    %2478 = vmatprep.mubr.f32.mxu0 0.0
    %2479 = vmatmul.mubr.f32.gmra.mrb[0].mxu0 %v2235
    %v2480 = vpop.f32.mrb[0].mxu0
    %v2481 = vadd.f32 0.0, %v2480
    %v2482 = vpop.f32.mrb[0].mxu0
    %2483 = vdwg.mxu0
    %v2484 = vadd.f32 %v2398, %v2476
    %v2485 = vadd.f32 %v2399, %v2481
    %s2486 = scalar_lea.vmem %s6, 32
    %v2487 = vld [vmem:[%s2486] sm:$0xff]
    %v2488 = vld [vmem:[%s2486 + $0x8] sm:$0xff]
    %v2490 = vsel %vm1797, %v2487, 0
    %v2493 = vsel %vm1797, %v2488, 0
    %2495 = vmatprep.subr.mxu0 0.0
    %2496 = vmatpush1.msra.mxu0 %v1793
    %2497 = vmatprep.subr.mxu0 0.0
    %2498 = vmatpush1.msra.mxu0 %v1794
    %2499 = vmatprep.subr.mxu0 0.0
    %2500 = vmatpush1.msra.mxu0 0.0
    %2501 = vmatprep.subr.mxu0 0.0
    %2502 = vmatpush1.msra.mxu0 0.0
    %2503 = vmatprep.subr.mxu0 0.0
    %2504 = vmatpush1.msra.mxu0 0.0
    %2505 = vmatprep.subr.mxu0 0.0
    %2506 = vmatpush1.msra.mxu0 0.0
    %2507 = vmatprep.subr.mxu0 0.0
    %2508 = vmatpush1.msra.mxu0 0.0
    %2509 = vmatprep.subr.mxu0 0.0
    %2510 = vmatpush1.msra.mxu0 0.0
    %2511 = vmatprep.subr.mxu0 0.0
    %2512 = vmatpush1.msra.mxu0 0.0
    %2513 = vmatprep.subr.mxu0 0.0
    %2514 = vmatpush1.msra.mxu0 0.0
    %2515 = vmatprep.subr.mxu0 0.0
    %2516 = vmatpush1.msra.mxu0 0.0
    %2517 = vmatprep.subr.mxu0 0.0
    %2518 = vmatpush1.msra.mxu0 0.0
    %2519 = vmatprep.subr.mxu0 0.0
    %2520 = vmatpush1.msra.mxu0 0.0
    %2521 = vmatprep.subr.mxu0 0.0
    %2522 = vmatpush1.msra.mxu0 0.0
    %2523 = vmatprep.subr.mxu0 0.0
    %2524 = vmatpush1.msra.mxu0 0.0
    %2525 = vmatprep.subr.mxu0 0.0
    %2526 = vmatpush1.msra.mxu0 0.0
    %2527 = vmatprep.subr.mxu0 0.0
    %2528 = vmatpush1.msra.mxu0 0.0
    %2529 = vmatprep.subr.mxu0 0.0
    %2530 = vmatpush1.msra.mxu0 0.0
    %2531 = vmatprep.subr.mxu0 0.0
    %2532 = vmatpush1.msra.mxu0 0.0
    %2533 = vmatprep.subr.mxu0 0.0
    %2534 = vmatpush1.msra.mxu0 0.0
    %2535 = vmatprep.subr.mxu0 0.0
    %2536 = vmatpush1.msra.mxu0 0.0
    %2537 = vmatprep.subr.mxu0 0.0
    %2538 = vmatpush1.msra.mxu0 0.0
    %2539 = vmatprep.subr.mxu0 0.0
    %2540 = vmatpush1.msra.mxu0 0.0
    %2541 = vmatprep.subr.mxu0 0.0
    %2542 = vmatpush1.msra.mxu0 0.0
    %2543 = vmatprep.subr.mxu0 0.0
    %2544 = vmatpush1.msra.mxu0 0.0
    %2545 = vmatprep.subr.mxu0 0.0
    %2546 = vmatpush1.msra.mxu0 0.0
    %2547 = vmatprep.subr.mxu0 0.0
    %2548 = vmatpush1.msra.mxu0 0.0
    %2549 = vmatprep.subr.mxu0 0.0
    %2550 = vmatpush1.msra.mxu0 0.0
    %2551 = vmatprep.subr.mxu0 0.0
    %2552 = vmatpush1.msra.mxu0 0.0
    %2553 = vmatprep.subr.mxu0 0.0
    %2554 = vmatpush1.msra.mxu0 0.0
    %2555 = vmatprep.subr.mxu0 0.0
    %2556 = vmatpush1.msra.mxu0 0.0
    %2557 = vmatprep.subr.mxu0 0.0
    %2558 = vmatpush1.msra.mxu0 0.0
    %2559 = vmatprep.mubr.f32.mxu0 0.0
    %2560 = vmatmul.mubr.f32.gmra.mrb[0].mxu0 %v2490
    %v2561 = vpop.f32.mrb[0].mxu0
    %v2562 = vadd.f32 0.0, %v2561
    %v2563 = vpop.f32.mrb[0].mxu0
    %2564 = vmatprep.mubr.f32.mxu0 0.0
    %2565 = vmatmul.mubr.f32.gmra.mrb[0].mxu0 %v2493
    %v2566 = vpop.f32.mrb[0].mxu0
    %v2567 = vadd.f32 0.0, %v2566
    %v2568 = vpop.f32.mrb[0].mxu0
    %2569 = vdwg.mxu0
    %s2570 = scalar_lea.vmem %s7, 384
    %v2571 = vld [vmem:[%s2570] sm:$0xff]
    %v2572 = vld [vmem:[%s2570 + $0x8] sm:$0xff]
    %v2573 = vld [vmem:[%s2570 + $0x10] sm:$0xff]
    %v2574 = vld [vmem:[%s2570 + $0x18] sm:$0xff]
    %v2575 = vld [vmem:[%s2570 + $0x20] sm:$0xff]
    %v2576 = vld [vmem:[%s2570 + $0x28] sm:$0xff]
    %v2577 = vld [vmem:[%s2570 + $0x30] sm:$0xff]
    %v2578 = vld [vmem:[%s2570 + $0x38] sm:$0xff]
    %v2580 = vsel %vm177, %v2562, 0
    %v2583 = vsel %vm177, %v2567, 0
    %2585 = vmatprep.subr.mxu0 0.0
    %2586 = vmatpush1.msra.mxu0 %v2571
    %2587 = vmatprep.subr.mxu0 0.0
    %2588 = vmatpush1.msra.mxu0 %v2572
    %2589 = vmatprep.subr.mxu0 0.0
    %2590 = vmatpush1.msra.mxu0 %v2573
    %2591 = vmatprep.subr.mxu0 0.0
    %2592 = vmatpush1.msra.mxu0 %v2574
    %2593 = vmatprep.subr.mxu0 0.0
    %2594 = vmatpush1.msra.mxu0 %v2575
    %2595 = vmatprep.subr.mxu0 0.0
    %2596 = vmatpush1.msra.mxu0 %v2576
    %2597 = vmatprep.subr.mxu0 0.0
    %2598 = vmatpush1.msra.mxu0 %v2577
    %2599 = vmatprep.subr.mxu0 0.0
    %2600 = vmatpush1.msra.mxu0 %v2578
    %2601 = vmatprep.subr.mxu0 0.0
    %2602 = vmatpush1.msra.mxu0 0.0
    %2603 = vmatprep.subr.mxu0 0.0
    %2604 = vmatpush1.msra.mxu0 0.0
    %2605 = vmatprep.subr.mxu0 0.0
    %2606 = vmatpush1.msra.mxu0 0.0
    %2607 = vmatprep.subr.mxu0 0.0
    %2608 = vmatpush1.msra.mxu0 0.0
    %2609 = vmatprep.subr.mxu0 0.0
    %2610 = vmatpush1.msra.mxu0 0.0
    %2611 = vmatprep.subr.mxu0 0.0
    %2612 = vmatpush1.msra.mxu0 0.0
    %2613 = vmatprep.subr.mxu0 0.0
    %2614 = vmatpush1.msra.mxu0 0.0
    %2615 = vmatprep.subr.mxu0 0.0
    %2616 = vmatpush1.msra.mxu0 0.0
    %2617 = vmatprep.subr.mxu0 0.0
    %2618 = vmatpush1.msra.mxu0 0.0
    %2619 = vmatprep.subr.mxu0 0.0
    %2620 = vmatpush1.msra.mxu0 0.0
    %2621 = vmatprep.subr.mxu0 0.0
    %2622 = vmatpush1.msra.mxu0 0.0
    %2623 = vmatprep.subr.mxu0 0.0
    %2624 = vmatpush1.msra.mxu0 0.0
    %2625 = vmatprep.subr.mxu0 0.0
    %2626 = vmatpush1.msra.mxu0 0.0
    %2627 = vmatprep.subr.mxu0 0.0
    %2628 = vmatpush1.msra.mxu0 0.0
    %2629 = vmatprep.subr.mxu0 0.0
    %2630 = vmatpush1.msra.mxu0 0.0
    %2631 = vmatprep.subr.mxu0 0.0
    %2632 = vmatpush1.msra.mxu0 0.0
    %2633 = vmatprep.subr.mxu0 0.0
    %2634 = vmatpush1.msra.mxu0 0.0
    %2635 = vmatprep.subr.mxu0 0.0
    %2636 = vmatpush1.msra.mxu0 0.0
    %2637 = vmatprep.subr.mxu0 0.0
    %2638 = vmatpush1.msra.mxu0 0.0
    %2639 = vmatprep.subr.mxu0 0.0
    %2640 = vmatpush1.msra.mxu0 0.0
    %2641 = vmatprep.subr.mxu0 0.0
    %2642 = vmatpush1.msra.mxu0 0.0
    %2643 = vmatprep.subr.mxu0 0.0
    %2644 = vmatpush1.msra.mxu0 0.0
    %2645 = vmatprep.subr.mxu0 0.0
    %2646 = vmatpush1.msra.mxu0 0.0
    %2647 = vmatprep.subr.mxu0 0.0
    %2648 = vmatpush1.msra.mxu0 0.0
    %2649 = vmatprep.mubr.f32.mxu0 0.0
    %2650 = vmatmul.mubr.f32.gmra.mrb[0].mxu0 %v2580
    %v2651 = vpop.f32.mrb[0].mxu0
    %v2652 = vadd.f32 0.0, %v2651
    %v2653 = vpop.f32.mrb[0].mxu0
    %2654 = vmatprep.mubr.f32.mxu0 0.0
    %2655 = vmatmul.mubr.f32.gmra.mrb[0].mxu0 %v2583
    %v2656 = vpop.f32.mrb[0].mxu0
    %v2657 = vadd.f32 0.0, %v2656
    %v2658 = vpop.f32.mrb[0].mxu0
    %2659 = vdwg.mxu0
    %v2660 = vadd.f32 %v2484, %v2652
    %v2661 = vadd.f32 %v2485, %v2657
    %s2662 = scalar_lea.vmem %s7, 448
    %v2663 = vld [vmem:[%s2662] sm:$0xff]
    %v2664 = vld [vmem:[%s2662 + $0x8] sm:$0xff]
    %v2665 = vld [vmem:[%s2662 + $0x10] sm:$0xff]
    %v2666 = vld [vmem:[%s2662 + $0x18] sm:$0xff]
    %v2667 = vld [vmem:[%s2662 + $0x20] sm:$0xff]
    %v2668 = vld [vmem:[%s2662 + $0x28] sm:$0xff]
    %v2669 = vld [vmem:[%s2662 + $0x30] sm:$0xff]
    %v2670 = vld [vmem:[%s2662 + $0x38] sm:$0xff]
    %2671 = vmatprep.subr.mxu0 0.0
    %2672 = vmatpush1.msra.mxu0 %v2663
    %2673 = vmatprep.subr.mxu0 0.0
    %2674 = vmatpush1.msra.mxu0 %v2664
    %2675 = vmatprep.subr.mxu0 0.0
    %2676 = vmatpush1.msra.mxu0 %v2665
    %2677 = vmatprep.subr.mxu0 0.0
    %2678 = vmatpush1.msra.mxu0 %v2666
    %2679 = vmatprep.subr.mxu0 0.0
    %2680 = vmatpush1.msra.mxu0 %v2667
    %2681 = vmatprep.subr.mxu0 0.0
    %2682 = vmatpush1.msra.mxu0 %v2668
    %2683 = vmatprep.subr.mxu0 0.0
    %2684 = vmatpush1.msra.mxu0 %v2669
    %2685 = vmatprep.subr.mxu0 0.0
    %2686 = vmatpush1.msra.mxu0 %v2670
    %2687 = vmatprep.subr.mxu0 0.0
    %2688 = vmatpush1.msra.mxu0 0.0
    %2689 = vmatprep.subr.mxu0 0.0
    %2690 = vmatpush1.msra.mxu0 0.0
    %2691 = vmatprep.subr.mxu0 0.0
    %2692 = vmatpush1.msra.mxu0 0.0
    %2693 = vmatprep.subr.mxu0 0.0
    %2694 = vmatpush1.msra.mxu0 0.0
    %2695 = vmatprep.subr.mxu0 0.0
    %2696 = vmatpush1.msra.mxu0 0.0
    %2697 = vmatprep.subr.mxu0 0.0
    %2698 = vmatpush1.msra.mxu0 0.0
    %2699 = vmatprep.subr.mxu0 0.0
    %2700 = vmatpush1.msra.mxu0 0.0
    %2701 = vmatprep.subr.mxu0 0.0
    %2702 = vmatpush1.msra.mxu0 0.0
    %2703 = vmatprep.subr.mxu0 0.0
    %2704 = vmatpush1.msra.mxu0 0.0
    %2705 = vmatprep.subr.mxu0 0.0
    %2706 = vmatpush1.msra.mxu0 0.0
    %2707 = vmatprep.subr.mxu0 0.0
    %2708 = vmatpush1.msra.mxu0 0.0
    %2709 = vmatprep.subr.mxu0 0.0
    %2710 = vmatpush1.msra.mxu0 0.0
    %2711 = vmatprep.subr.mxu0 0.0
    %2712 = vmatpush1.msra.mxu0 0.0
    %2713 = vmatprep.subr.mxu0 0.0
    %2714 = vmatpush1.msra.mxu0 0.0
    %2715 = vmatprep.subr.mxu0 0.0
    %2716 = vmatpush1.msra.mxu0 0.0
    %2717 = vmatprep.subr.mxu0 0.0
    %2718 = vmatpush1.msra.mxu0 0.0
    %2719 = vmatprep.subr.mxu0 0.0
    %2720 = vmatpush1.msra.mxu0 0.0
    %2721 = vmatprep.subr.mxu0 0.0
    %2722 = vmatpush1.msra.mxu0 0.0
    %2723 = vmatprep.subr.mxu0 0.0
    %2724 = vmatpush1.msra.mxu0 0.0
    %2725 = vmatprep.subr.mxu0 0.0
    %2726 = vmatpush1.msra.mxu0 0.0
    %2727 = vmatprep.subr.mxu0 0.0
    %2728 = vmatpush1.msra.mxu0 0.0
    %2729 = vmatprep.subr.mxu0 0.0
    %2730 = vmatpush1.msra.mxu0 0.0
    %2731 = vmatprep.subr.mxu0 0.0
    %2732 = vmatpush1.msra.mxu0 0.0
    %2733 = vmatprep.subr.mxu0 0.0
    %2734 = vmatpush1.msra.mxu0 0.0
    %2735 = vmatprep.mubr.f32.mxu0 0.0
    %2736 = vmatmul.mubr.f32.gmra.mrb[0].mxu0 %v2580
    %v2737 = vpop.f32.mrb[0].mxu0
    %v2738 = vadd.f32 0.0, %v2737
    %v2739 = vpop.f32.mrb[0].mxu0
    %2740 = vmatprep.mubr.f32.mxu0 0.0
    %2741 = vmatmul.mubr.f32.gmra.mrb[0].mxu0 %v2583
    %v2742 = vpop.f32.mrb[0].mxu0
    %v2743 = vadd.f32 0.0, %v2742
    %v2744 = vpop.f32.mrb[0].mxu0
    %2745 = vdwg.mxu0
    %v2746 = vadd.f32 %v2660, %v2738
    %v2747 = vadd.f32 %v2661, %v2743
    %s2748 = scalar_lea.vmem %s7, 512
    %v2749 = vld [vmem:[%s2748] sm:$0xff]
    %v2750 = vld [vmem:[%s2748 + $0x8] sm:$0xff]
    %v2751 = vld [vmem:[%s2748 + $0x10] sm:$0xff]
    %v2752 = vld [vmem:[%s2748 + $0x18] sm:$0xff]
    %v2753 = vld [vmem:[%s2748 + $0x20] sm:$0xff]
    %v2754 = vld [vmem:[%s2748 + $0x28] sm:$0xff]
    %v2755 = vld [vmem:[%s2748 + $0x30] sm:$0xff]
    %v2756 = vld [vmem:[%s2748 + $0x38] sm:$0xff]
    %2757 = vmatprep.subr.mxu0 0.0
    %2758 = vmatpush1.msra.mxu0 %v2749
    %2759 = vmatprep.subr.mxu0 0.0
    %2760 = vmatpush1.msra.mxu0 %v2750
    %2761 = vmatprep.subr.mxu0 0.0
    %2762 = vmatpush1.msra.mxu0 %v2751
    %2763 = vmatprep.subr.mxu0 0.0
    %2764 = vmatpush1.msra.mxu0 %v2752
    %2765 = vmatprep.subr.mxu0 0.0
    %2766 = vmatpush1.msra.mxu0 %v2753
    %2767 = vmatprep.subr.mxu0 0.0
    %2768 = vmatpush1.msra.mxu0 %v2754
    %2769 = vmatprep.subr.mxu0 0.0
    %2770 = vmatpush1.msra.mxu0 %v2755
    %2771 = vmatprep.subr.mxu0 0.0
    %2772 = vmatpush1.msra.mxu0 %v2756
    %2773 = vmatprep.subr.mxu0 0.0
    %2774 = vmatpush1.msra.mxu0 0.0
    %2775 = vmatprep.subr.mxu0 0.0
    %2776 = vmatpush1.msra.mxu0 0.0
    %2777 = vmatprep.subr.mxu0 0.0
    %2778 = vmatpush1.msra.mxu0 0.0
    %2779 = vmatprep.subr.mxu0 0.0
    %2780 = vmatpush1.msra.mxu0 0.0
    %2781 = vmatprep.subr.mxu0 0.0
    %2782 = vmatpush1.msra.mxu0 0.0
    %2783 = vmatprep.subr.mxu0 0.0
    %2784 = vmatpush1.msra.mxu0 0.0
    %2785 = vmatprep.subr.mxu0 0.0
    %2786 = vmatpush1.msra.mxu0 0.0
    %2787 = vmatprep.subr.mxu0 0.0
    %2788 = vmatpush1.msra.mxu0 0.0
    %2789 = vmatprep.subr.mxu0 0.0
    %2790 = vmatpush1.msra.mxu0 0.0
    %2791 = vmatprep.subr.mxu0 0.0
    %2792 = vmatpush1.msra.mxu0 0.0
    %2793 = vmatprep.subr.mxu0 0.0
    %2794 = vmatpush1.msra.mxu0 0.0
    %2795 = vmatprep.subr.mxu0 0.0
    %2796 = vmatpush1.msra.mxu0 0.0
    %2797 = vmatprep.subr.mxu0 0.0
    %2798 = vmatpush1.msra.mxu0 0.0
    %2799 = vmatprep.subr.mxu0 0.0
    %2800 = vmatpush1.msra.mxu0 0.0
    %2801 = vmatprep.subr.mxu0 0.0
    %2802 = vmatpush1.msra.mxu0 0.0
    %2803 = vmatprep.subr.mxu0 0.0
    %2804 = vmatpush1.msra.mxu0 0.0
    %2805 = vmatprep.subr.mxu0 0.0
    %2806 = vmatpush1.msra.mxu0 0.0
    %2807 = vmatprep.subr.mxu0 0.0
    %2808 = vmatpush1.msra.mxu0 0.0
    %2809 = vmatprep.subr.mxu0 0.0
    %2810 = vmatpush1.msra.mxu0 0.0
    %2811 = vmatprep.subr.mxu0 0.0
    %2812 = vmatpush1.msra.mxu0 0.0
    %2813 = vmatprep.subr.mxu0 0.0
    %2814 = vmatpush1.msra.mxu0 0.0
    %2815 = vmatprep.subr.mxu0 0.0
    %2816 = vmatpush1.msra.mxu0 0.0
    %2817 = vmatprep.subr.mxu0 0.0
    %2818 = vmatpush1.msra.mxu0 0.0
    %2819 = vmatprep.subr.mxu0 0.0
    %2820 = vmatpush1.msra.mxu0 0.0
    %2821 = vmatprep.mubr.f32.mxu0 0.0
    %2822 = vmatmul.mubr.f32.gmra.mrb[0].mxu0 %v2580
    %v2823 = vpop.f32.mrb[0].mxu0
    %v2824 = vadd.f32 0.0, %v2823
    %v2825 = vpop.f32.mrb[0].mxu0
    %2826 = vmatprep.mubr.f32.mxu0 0.0
    %2827 = vmatmul.mubr.f32.gmra.mrb[0].mxu0 %v2583
    %v2828 = vpop.f32.mrb[0].mxu0
    %v2829 = vadd.f32 0.0, %v2828
    %v2830 = vpop.f32.mrb[0].mxu0
    %2831 = vdwg.mxu0
    %v2832 = vadd.f32 %v2746, %v2824
    %v2833 = vadd.f32 %v2747, %v2829
    %v2834 = vld [vmem:[%s8] sm:$0x1]
    %v2836 = vlaneseq
    %v2837 = vshrl.u32 %v2836, 7
    %v2838 = vsub.s32 0, %v2837
    %v2839 = vrot.slane %v2834, %v2838
    %v2841 = vadd.f32 %v2832, %v2839
    %v2842 = vadd.f32 %v2833, %v2839
    %v2843 = vmax.f32 %v2841, 0.0
    %v2844 = vmax.f32 %v2842, 0.0
    %v2845 = vld [vmem:[%s9] sm:$0xff]
    %v2847 = vsel %vm1797, %v2845, 0
    %2849 = vmatprep.subr.mxu0 0.0
    %2850 = vmatpush1.msra.mxu0 %v2843
    %2851 = vmatprep.subr.mxu0 0.0
    %2852 = vmatpush1.msra.mxu0 %v2844
    %2853 = vmatprep.subr.mxu0 0.0
    %2854 = vmatpush1.msra.mxu0 0.0
    %2855 = vmatprep.subr.mxu0 0.0
    %2856 = vmatpush1.msra.mxu0 0.0
    %2857 = vmatprep.subr.mxu0 0.0
    %2858 = vmatpush1.msra.mxu0 0.0
    %2859 = vmatprep.subr.mxu0 0.0
    %2860 = vmatpush1.msra.mxu0 0.0
    %2861 = vmatprep.subr.mxu0 0.0
    %2862 = vmatpush1.msra.mxu0 0.0
    %2863 = vmatprep.subr.mxu0 0.0
    %2864 = vmatpush1.msra.mxu0 0.0
    %2865 = vmatprep.subr.mxu0 0.0
    %2866 = vmatpush1.msra.mxu0 0.0
    %2867 = vmatprep.subr.mxu0 0.0
    %2868 = vmatpush1.msra.mxu0 0.0
    %2869 = vmatprep.subr.mxu0 0.0
    %2870 = vmatpush1.msra.mxu0 0.0
    %2871 = vmatprep.subr.mxu0 0.0
    %2872 = vmatpush1.msra.mxu0 0.0
    %2873 = vmatprep.subr.mxu0 0.0
    %2874 = vmatpush1.msra.mxu0 0.0
    %2875 = vmatprep.subr.mxu0 0.0
    %2876 = vmatpush1.msra.mxu0 0.0
    %2877 = vmatprep.subr.mxu0 0.0
    %2878 = vmatpush1.msra.mxu0 0.0
    %2879 = vmatprep.subr.mxu0 0.0
    %2880 = vmatpush1.msra.mxu0 0.0
    %2881 = vmatprep.subr.mxu0 0.0
    %2882 = vmatpush1.msra.mxu0 0.0
    %2883 = vmatprep.subr.mxu0 0.0
    %2884 = vmatpush1.msra.mxu0 0.0
    %2885 = vmatprep.subr.mxu0 0.0
    %2886 = vmatpush1.msra.mxu0 0.0
    %2887 = vmatprep.subr.mxu0 0.0
    %2888 = vmatpush1.msra.mxu0 0.0
    %2889 = vmatprep.subr.mxu0 0.0
    %2890 = vmatpush1.msra.mxu0 0.0
    %2891 = vmatprep.subr.mxu0 0.0
    %2892 = vmatpush1.msra.mxu0 0.0
    %2893 = vmatprep.subr.mxu0 0.0
    %2894 = vmatpush1.msra.mxu0 0.0
    %2895 = vmatprep.subr.mxu0 0.0
    %2896 = vmatpush1.msra.mxu0 0.0
    %2897 = vmatprep.subr.mxu0 0.0
    %2898 = vmatpush1.msra.mxu0 0.0
    %2899 = vmatprep.subr.mxu0 0.0
    %2900 = vmatpush1.msra.mxu0 0.0
    %2901 = vmatprep.subr.mxu0 0.0
    %2902 = vmatpush1.msra.mxu0 0.0
    %2903 = vmatprep.subr.mxu0 0.0
    %2904 = vmatpush1.msra.mxu0 0.0
    %2905 = vmatprep.subr.mxu0 0.0
    %2906 = vmatpush1.msra.mxu0 0.0
    %2907 = vmatprep.subr.mxu0 0.0
    %2908 = vmatpush1.msra.mxu0 0.0
    %2909 = vmatprep.subr.mxu0 0.0
    %2910 = vmatpush1.msra.mxu0 0.0
    %2911 = vmatprep.subr.mxu0 0.0
    %2912 = vmatpush1.msra.mxu0 0.0
    %2913 = vmatprep.mubr.f32.mxu0 0.0
    %2914 = vmatmul.mubr.f32.gmra.mrb[0].mxu0 %v2847
    %v2915 = vpop.f32.mrb[0].mxu0
    %v2916 = vadd.f32 0.0, %v2915
    %v2917 = vpop.f32.mrb[0].mxu0
    %2918 = vdwg.mxu0
    %v2919 = vld [vmem:[%s10] sm:$0xff]
    %v2920 = vld [vmem:[%s10 + $0x8] sm:$0xff]
    %v2921 = vld [vmem:[%s10 + $0x10] sm:$0xff]
    %v2922 = vld [vmem:[%s10 + $0x18] sm:$0xff]
    %v2923 = vld [vmem:[%s10 + $0x20] sm:$0xff]
    %v2924 = vld [vmem:[%s10 + $0x28] sm:$0xff]
    %v2925 = vld [vmem:[%s10 + $0x30] sm:$0xff]
    %v2926 = vld [vmem:[%s10 + $0x38] sm:$0xff]
    %v2927 = vld [vmem:[%s10 + $0x40] sm:$0xff]
    %v2928 = vld [vmem:[%s10 + $0x48] sm:$0xff]
    %v2929 = vld [vmem:[%s10 + $0x50] sm:$0xff]
    %v2930 = vld [vmem:[%s10 + $0x58] sm:$0xff]
    %v2931 = vld [vmem:[%s10 + $0x60] sm:$0xff]
    %v2932 = vld [vmem:[%s10 + $0x68] sm:$0xff]
    %v2933 = vld [vmem:[%s10 + $0x70] sm:$0xff]
    %v2934 = vld [vmem:[%s10 + $0x78] sm:$0xff]
    %2935 = vmatprep.subr.mxu0 0.0
    %2936 = vmatpush1.msra.mxu0 %v2919
    %2937 = vmatprep.subr.mxu0 0.0
    %2938 = vmatpush1.msra.mxu0 %v2920
    %2939 = vmatprep.subr.mxu0 0.0
    %2940 = vmatpush1.msra.mxu0 %v2921
    %2941 = vmatprep.subr.mxu0 0.0
    %2942 = vmatpush1.msra.mxu0 %v2922
    %2943 = vmatprep.subr.mxu0 0.0
    %2944 = vmatpush1.msra.mxu0 %v2923
    %2945 = vmatprep.subr.mxu0 0.0
    %2946 = vmatpush1.msra.mxu0 %v2924
    %2947 = vmatprep.subr.mxu0 0.0
    %2948 = vmatpush1.msra.mxu0 %v2925
    %2949 = vmatprep.subr.mxu0 0.0
    %2950 = vmatpush1.msra.mxu0 %v2926
    %2951 = vmatprep.subr.mxu0 0.0
    %2952 = vmatpush1.msra.mxu0 %v2927
    %2953 = vmatprep.subr.mxu0 0.0
    %2954 = vmatpush1.msra.mxu0 %v2928
    %2955 = vmatprep.subr.mxu0 0.0
    %2956 = vmatpush1.msra.mxu0 %v2929
    %2957 = vmatprep.subr.mxu0 0.0
    %2958 = vmatpush1.msra.mxu0 %v2930
    %2959 = vmatprep.subr.mxu0 0.0
    %2960 = vmatpush1.msra.mxu0 %v2931
    %2961 = vmatprep.subr.mxu0 0.0
    %2962 = vmatpush1.msra.mxu0 %v2932
    %2963 = vmatprep.subr.mxu0 0.0
    %2964 = vmatpush1.msra.mxu0 %v2933
    %2965 = vmatprep.subr.mxu0 0.0
    %2966 = vmatpush1.msra.mxu0 %v2934
    %2967 = vmatprep.subr.mxu0 0.0
    %2968 = vmatpush1.msra.mxu0 0.0
    %2969 = vmatprep.subr.mxu0 0.0
    %2970 = vmatpush1.msra.mxu0 0.0
    %2971 = vmatprep.subr.mxu0 0.0
    %2972 = vmatpush1.msra.mxu0 0.0
    %2973 = vmatprep.subr.mxu0 0.0
    %2974 = vmatpush1.msra.mxu0 0.0
    %2975 = vmatprep.subr.mxu0 0.0
    %2976 = vmatpush1.msra.mxu0 0.0
    %2977 = vmatprep.subr.mxu0 0.0
    %2978 = vmatpush1.msra.mxu0 0.0
    %2979 = vmatprep.subr.mxu0 0.0
    %2980 = vmatpush1.msra.mxu0 0.0
    %2981 = vmatprep.subr.mxu0 0.0
    %2982 = vmatpush1.msra.mxu0 0.0
    %2983 = vmatprep.subr.mxu0 0.0
    %2984 = vmatpush1.msra.mxu0 0.0
    %2985 = vmatprep.subr.mxu0 0.0
    %2986 = vmatpush1.msra.mxu0 0.0
    %2987 = vmatprep.subr.mxu0 0.0
    %2988 = vmatpush1.msra.mxu0 0.0
    %2989 = vmatprep.subr.mxu0 0.0
    %2990 = vmatpush1.msra.mxu0 0.0
    %2991 = vmatprep.subr.mxu0 0.0
    %2992 = vmatpush1.msra.mxu0 0.0
    %2993 = vmatprep.subr.mxu0 0.0
    %2994 = vmatpush1.msra.mxu0 0.0
    %2995 = vmatprep.subr.mxu0 0.0
    %2996 = vmatpush1.msra.mxu0 0.0
    %2997 = vmatprep.subr.mxu0 0.0
    %2998 = vmatpush1.msra.mxu0 0.0
    %2999 = vmatprep.mubr.f32.mxu0 0.0
    %3000 = vmatmul.mubr.f32.gmra.mrb[0].mxu0 %v2916
    %v3001 = vpop.f32.mrb[0].mxu0
    %v3002 = vadd.f32 0.0, %v3001
    %v3003 = vpop.f32.mrb[0].mxu0
    %3004 = vdwg.mxu0
    %s3005 = scalar_lea.vmem %s10, 128
    %v3006 = vld [vmem:[%s3005] sm:$0xff]
    %v3007 = vld [vmem:[%s3005 + $0x8] sm:$0xff]
    %v3008 = vld [vmem:[%s3005 + $0x10] sm:$0xff]
    %v3009 = vld [vmem:[%s3005 + $0x18] sm:$0xff]
    %v3010 = vld [vmem:[%s3005 + $0x20] sm:$0xff]
    %v3011 = vld [vmem:[%s3005 + $0x28] sm:$0xff]
    %v3012 = vld [vmem:[%s3005 + $0x30] sm:$0xff]
    %v3013 = vld [vmem:[%s3005 + $0x38] sm:$0xff]
    %v3014 = vld [vmem:[%s3005 + $0x40] sm:$0xff]
    %v3015 = vld [vmem:[%s3005 + $0x48] sm:$0xff]
    %v3016 = vld [vmem:[%s3005 + $0x50] sm:$0xff]
    %v3017 = vld [vmem:[%s3005 + $0x58] sm:$0xff]
    %v3018 = vld [vmem:[%s3005 + $0x60] sm:$0xff]
    %v3019 = vld [vmem:[%s3005 + $0x68] sm:$0xff]
    %v3020 = vld [vmem:[%s3005 + $0x70] sm:$0xff]
    %v3021 = vld [vmem:[%s3005 + $0x78] sm:$0xff]
    %3022 = vmatprep.subr.mxu0 0.0
    %3023 = vmatpush1.msra.mxu0 %v3006
    %3024 = vmatprep.subr.mxu0 0.0
    %3025 = vmatpush1.msra.mxu0 %v3007
    %3026 = vmatprep.subr.mxu0 0.0
    %3027 = vmatpush1.msra.mxu0 %v3008
    %3028 = vmatprep.subr.mxu0 0.0
    %3029 = vmatpush1.msra.mxu0 %v3009
    %3030 = vmatprep.subr.mxu0 0.0
    %3031 = vmatpush1.msra.mxu0 %v3010
    %3032 = vmatprep.subr.mxu0 0.0
    %3033 = vmatpush1.msra.mxu0 %v3011
    %3034 = vmatprep.subr.mxu0 0.0
    %3035 = vmatpush1.msra.mxu0 %v3012
    %3036 = vmatprep.subr.mxu0 0.0
    %3037 = vmatpush1.msra.mxu0 %v3013
    %3038 = vmatprep.subr.mxu0 0.0
    %3039 = vmatpush1.msra.mxu0 %v3014
    %3040 = vmatprep.subr.mxu0 0.0
    %3041 = vmatpush1.msra.mxu0 %v3015
    %3042 = vmatprep.subr.mxu0 0.0
    %3043 = vmatpush1.msra.mxu0 %v3016
    %3044 = vmatprep.subr.mxu0 0.0
    %3045 = vmatpush1.msra.mxu0 %v3017
    %3046 = vmatprep.subr.mxu0 0.0
    %3047 = vmatpush1.msra.mxu0 %v3018
    %3048 = vmatprep.subr.mxu0 0.0
    %3049 = vmatpush1.msra.mxu0 %v3019
    %3050 = vmatprep.subr.mxu0 0.0
    %3051 = vmatpush1.msra.mxu0 %v3020
    %3052 = vmatprep.subr.mxu0 0.0
    %3053 = vmatpush1.msra.mxu0 %v3021
    %3054 = vmatprep.subr.mxu0 0.0
    %3055 = vmatpush1.msra.mxu0 0.0
    %3056 = vmatprep.subr.mxu0 0.0
    %3057 = vmatpush1.msra.mxu0 0.0
    %3058 = vmatprep.subr.mxu0 0.0
    %3059 = vmatpush1.msra.mxu0 0.0
    %3060 = vmatprep.subr.mxu0 0.0
    %3061 = vmatpush1.msra.mxu0 0.0
    %3062 = vmatprep.subr.mxu0 0.0
    %3063 = vmatpush1.msra.mxu0 0.0
    %3064 = vmatprep.subr.mxu0 0.0
    %3065 = vmatpush1.msra.mxu0 0.0
    %3066 = vmatprep.subr.mxu0 0.0
    %3067 = vmatpush1.msra.mxu0 0.0
    %3068 = vmatprep.subr.mxu0 0.0
    %3069 = vmatpush1.msra.mxu0 0.0
    %3070 = vmatprep.subr.mxu0 0.0
    %3071 = vmatpush1.msra.mxu0 0.0
    %3072 = vmatprep.subr.mxu0 0.0
    %3073 = vmatpush1.msra.mxu0 0.0
    %3074 = vmatprep.subr.mxu0 0.0
    %3075 = vmatpush1.msra.mxu0 0.0
    %3076 = vmatprep.subr.mxu0 0.0
    %3077 = vmatpush1.msra.mxu0 0.0
    %3078 = vmatprep.subr.mxu0 0.0
    %3079 = vmatpush1.msra.mxu0 0.0
    %3080 = vmatprep.subr.mxu0 0.0
    %3081 = vmatpush1.msra.mxu0 0.0
    %3082 = vmatprep.subr.mxu0 0.0
    %3083 = vmatpush1.msra.mxu0 0.0
    %3084 = vmatprep.subr.mxu0 0.0
    %3085 = vmatpush1.msra.mxu0 0.0
    %3086 = vmatprep.mubr.f32.mxu0 0.0
    %3087 = vmatmul.mubr.f32.gmra.mrb[0].mxu0 %v2916
    %v3088 = vpop.f32.mrb[0].mxu0
    %v3089 = vadd.f32 0.0, %v3088
    %v3090 = vpop.f32.mrb[0].mxu0
    %3091 = vdwg.mxu0
    %v3092 = vmax.f32 %v3002, %v3089
    %s3093 = scalar_lea.vmem %s9, 8
    %v3094 = vld [vmem:[%s3093] sm:$0xff]
    %v3096 = vsel %vm1797, %v3094, 0
    %3098 = vmatprep.subr.mxu0 0.0
    %3099 = vmatpush1.msra.mxu0 %v2843
    %3100 = vmatprep.subr.mxu0 0.0
    %3101 = vmatpush1.msra.mxu0 %v2844
    %3102 = vmatprep.subr.mxu0 0.0
    %3103 = vmatpush1.msra.mxu0 0.0
    %3104 = vmatprep.subr.mxu0 0.0
    %3105 = vmatpush1.msra.mxu0 0.0
    %3106 = vmatprep.subr.mxu0 0.0
    %3107 = vmatpush1.msra.mxu0 0.0
    %3108 = vmatprep.subr.mxu0 0.0
    %3109 = vmatpush1.msra.mxu0 0.0
    %3110 = vmatprep.subr.mxu0 0.0
    %3111 = vmatpush1.msra.mxu0 0.0
    %3112 = vmatprep.subr.mxu0 0.0
    %3113 = vmatpush1.msra.mxu0 0.0
    %3114 = vmatprep.subr.mxu0 0.0
    %3115 = vmatpush1.msra.mxu0 0.0
    %3116 = vmatprep.subr.mxu0 0.0
    %3117 = vmatpush1.msra.mxu0 0.0
    %3118 = vmatprep.subr.mxu0 0.0
    %3119 = vmatpush1.msra.mxu0 0.0
    %3120 = vmatprep.subr.mxu0 0.0
    %3121 = vmatpush1.msra.mxu0 0.0
    %3122 = vmatprep.subr.mxu0 0.0
    %3123 = vmatpush1.msra.mxu0 0.0
    %3124 = vmatprep.subr.mxu0 0.0
    %3125 = vmatpush1.msra.mxu0 0.0
    %3126 = vmatprep.subr.mxu0 0.0
    %3127 = vmatpush1.msra.mxu0 0.0
    %3128 = vmatprep.subr.mxu0 0.0
    %3129 = vmatpush1.msra.mxu0 0.0
    %3130 = vmatprep.subr.mxu0 0.0
    %3131 = vmatpush1.msra.mxu0 0.0
    %3132 = vmatprep.subr.mxu0 0.0
    %3133 = vmatpush1.msra.mxu0 0.0
    %3134 = vmatprep.subr.mxu0 0.0
    %3135 = vmatpush1.msra.mxu0 0.0
    %3136 = vmatprep.subr.mxu0 0.0
    %3137 = vmatpush1.msra.mxu0 0.0
    %3138 = vmatprep.subr.mxu0 0.0
    %3139 = vmatpush1.msra.mxu0 0.0
    %3140 = vmatprep.subr.mxu0 0.0
    %3141 = vmatpush1.msra.mxu0 0.0
    %3142 = vmatprep.subr.mxu0 0.0
    %3143 = vmatpush1.msra.mxu0 0.0
    %3144 = vmatprep.subr.mxu0 0.0
    %3145 = vmatpush1.msra.mxu0 0.0
    %3146 = vmatprep.subr.mxu0 0.0
    %3147 = vmatpush1.msra.mxu0 0.0
    %3148 = vmatprep.subr.mxu0 0.0
    %3149 = vmatpush1.msra.mxu0 0.0
    %3150 = vmatprep.subr.mxu0 0.0
    %3151 = vmatpush1.msra.mxu0 0.0
    %3152 = vmatprep.subr.mxu0 0.0
    %3153 = vmatpush1.msra.mxu0 0.0
    %3154 = vmatprep.subr.mxu0 0.0
    %3155 = vmatpush1.msra.mxu0 0.0
    %3156 = vmatprep.subr.mxu0 0.0
    %3157 = vmatpush1.msra.mxu0 0.0
    %3158 = vmatprep.subr.mxu0 0.0
    %3159 = vmatpush1.msra.mxu0 0.0
    %3160 = vmatprep.subr.mxu0 0.0
    %3161 = vmatpush1.msra.mxu0 0.0
    %3162 = vmatprep.mubr.f32.mxu0 0.0
    %3163 = vmatmul.mubr.f32.gmra.mrb[0].mxu0 %v3096
    %v3164 = vpop.f32.mrb[0].mxu0
    %v3165 = vadd.f32 0.0, %v3164
    %v3166 = vpop.f32.mrb[0].mxu0
    %3167 = vdwg.mxu0
    %3168 = vmatprep.subr.mxu0 0.0
    %3169 = vmatpush1.msra.mxu0 %v2919
    %3170 = vmatprep.subr.mxu0 0.0
    %3171 = vmatpush1.msra.mxu0 %v2920
    %3172 = vmatprep.subr.mxu0 0.0
    %3173 = vmatpush1.msra.mxu0 %v2921
    %3174 = vmatprep.subr.mxu0 0.0
    %3175 = vmatpush1.msra.mxu0 %v2922
    %3176 = vmatprep.subr.mxu0 0.0
    %3177 = vmatpush1.msra.mxu0 %v2923
    %3178 = vmatprep.subr.mxu0 0.0
    %3179 = vmatpush1.msra.mxu0 %v2924
    %3180 = vmatprep.subr.mxu0 0.0
    %3181 = vmatpush1.msra.mxu0 %v2925
    %3182 = vmatprep.subr.mxu0 0.0
    %3183 = vmatpush1.msra.mxu0 %v2926
    %3184 = vmatprep.subr.mxu0 0.0
    %3185 = vmatpush1.msra.mxu0 %v2927
    %3186 = vmatprep.subr.mxu0 0.0
    %3187 = vmatpush1.msra.mxu0 %v2928
    %3188 = vmatprep.subr.mxu0 0.0
    %3189 = vmatpush1.msra.mxu0 %v2929
    %3190 = vmatprep.subr.mxu0 0.0
    %3191 = vmatpush1.msra.mxu0 %v2930
    %3192 = vmatprep.subr.mxu0 0.0
    %3193 = vmatpush1.msra.mxu0 %v2931
    %3194 = vmatprep.subr.mxu0 0.0
    %3195 = vmatpush1.msra.mxu0 %v2932
    %3196 = vmatprep.subr.mxu0 0.0
    %3197 = vmatpush1.msra.mxu0 %v2933
    %3198 = vmatprep.subr.mxu0 0.0
    %3199 = vmatpush1.msra.mxu0 %v2934
    %3200 = vmatprep.subr.mxu0 0.0
    %3201 = vmatpush1.msra.mxu0 0.0
    %3202 = vmatprep.subr.mxu0 0.0
    %3203 = vmatpush1.msra.mxu0 0.0
    %3204 = vmatprep.subr.mxu0 0.0
    %3205 = vmatpush1.msra.mxu0 0.0
    %3206 = vmatprep.subr.mxu0 0.0
    %3207 = vmatpush1.msra.mxu0 0.0
    %3208 = vmatprep.subr.mxu0 0.0
    %3209 = vmatpush1.msra.mxu0 0.0
    %3210 = vmatprep.subr.mxu0 0.0
    %3211 = vmatpush1.msra.mxu0 0.0
    %3212 = vmatprep.subr.mxu0 0.0
    %3213 = vmatpush1.msra.mxu0 0.0
    %3214 = vmatprep.subr.mxu0 0.0
    %3215 = vmatpush1.msra.mxu0 0.0
    %3216 = vmatprep.subr.mxu0 0.0
    %3217 = vmatpush1.msra.mxu0 0.0
    %3218 = vmatprep.subr.mxu0 0.0
    %3219 = vmatpush1.msra.mxu0 0.0
    %3220 = vmatprep.subr.mxu0 0.0
    %3221 = vmatpush1.msra.mxu0 0.0
    %3222 = vmatprep.subr.mxu0 0.0
    %3223 = vmatpush1.msra.mxu0 0.0
    %3224 = vmatprep.subr.mxu0 0.0
    %3225 = vmatpush1.msra.mxu0 0.0
    %3226 = vmatprep.subr.mxu0 0.0
    %3227 = vmatpush1.msra.mxu0 0.0
    %3228 = vmatprep.subr.mxu0 0.0
    %3229 = vmatpush1.msra.mxu0 0.0
    %3230 = vmatprep.subr.mxu0 0.0
    %3231 = vmatpush1.msra.mxu0 0.0
    %3232 = vmatprep.mubr.f32.mxu0 0.0
    %3233 = vmatmul.mubr.f32.gmra.mrb[0].mxu0 %v3165
    %v3234 = vpop.f32.mrb[0].mxu0
    %v3235 = vadd.f32 0.0, %v3234
    %v3236 = vpop.f32.mrb[0].mxu0
    %3237 = vdwg.mxu0
    %v3238 = vmax.f32 %v3092, %v3235
    %3239 = vmatprep.subr.mxu0 0.0
    %3240 = vmatpush1.msra.mxu0 %v3006
    %3241 = vmatprep.subr.mxu0 0.0
    %3242 = vmatpush1.msra.mxu0 %v3007
    %3243 = vmatprep.subr.mxu0 0.0
    %3244 = vmatpush1.msra.mxu0 %v3008
    %3245 = vmatprep.subr.mxu0 0.0
    %3246 = vmatpush1.msra.mxu0 %v3009
    %3247 = vmatprep.subr.mxu0 0.0
    %3248 = vmatpush1.msra.mxu0 %v3010
    %3249 = vmatprep.subr.mxu0 0.0
    %3250 = vmatpush1.msra.mxu0 %v3011
    %3251 = vmatprep.subr.mxu0 0.0
    %3252 = vmatpush1.msra.mxu0 %v3012
    %3253 = vmatprep.subr.mxu0 0.0
    %3254 = vmatpush1.msra.mxu0 %v3013
    %3255 = vmatprep.subr.mxu0 0.0
    %3256 = vmatpush1.msra.mxu0 %v3014
    %3257 = vmatprep.subr.mxu0 0.0
    %3258 = vmatpush1.msra.mxu0 %v3015
    %3259 = vmatprep.subr.mxu0 0.0
    %3260 = vmatpush1.msra.mxu0 %v3016
    %3261 = vmatprep.subr.mxu0 0.0
    %3262 = vmatpush1.msra.mxu0 %v3017
    %3263 = vmatprep.subr.mxu0 0.0
    %3264 = vmatpush1.msra.mxu0 %v3018
    %3265 = vmatprep.subr.mxu0 0.0
    %3266 = vmatpush1.msra.mxu0 %v3019
    %3267 = vmatprep.subr.mxu0 0.0
    %3268 = vmatpush1.msra.mxu0 %v3020
    %3269 = vmatprep.subr.mxu0 0.0
    %3270 = vmatpush1.msra.mxu0 %v3021
    %3271 = vmatprep.subr.mxu0 0.0
    %3272 = vmatpush1.msra.mxu0 0.0
    %3273 = vmatprep.subr.mxu0 0.0
    %3274 = vmatpush1.msra.mxu0 0.0
    %3275 = vmatprep.subr.mxu0 0.0
    %3276 = vmatpush1.msra.mxu0 0.0
    %3277 = vmatprep.subr.mxu0 0.0
    %3278 = vmatpush1.msra.mxu0 0.0
    %3279 = vmatprep.subr.mxu0 0.0
    %3280 = vmatpush1.msra.mxu0 0.0
    %3281 = vmatprep.subr.mxu0 0.0
    %3282 = vmatpush1.msra.mxu0 0.0
    %3283 = vmatprep.subr.mxu0 0.0
    %3284 = vmatpush1.msra.mxu0 0.0
    %3285 = vmatprep.subr.mxu0 0.0
    %3286 = vmatpush1.msra.mxu0 0.0
    %3287 = vmatprep.subr.mxu0 0.0
    %3288 = vmatpush1.msra.mxu0 0.0
    %3289 = vmatprep.subr.mxu0 0.0
    %3290 = vmatpush1.msra.mxu0 0.0
    %3291 = vmatprep.subr.mxu0 0.0
    %3292 = vmatpush1.msra.mxu0 0.0
    %3293 = vmatprep.subr.mxu0 0.0
    %3294 = vmatpush1.msra.mxu0 0.0
    %3295 = vmatprep.subr.mxu0 0.0
    %3296 = vmatpush1.msra.mxu0 0.0
    %3297 = vmatprep.subr.mxu0 0.0
    %3298 = vmatpush1.msra.mxu0 0.0
    %3299 = vmatprep.subr.mxu0 0.0
    %3300 = vmatpush1.msra.mxu0 0.0
    %3301 = vmatprep.subr.mxu0 0.0
    %3302 = vmatpush1.msra.mxu0 0.0
    %3303 = vmatprep.mubr.f32.mxu0 0.0
    %3304 = vmatmul.mubr.f32.gmra.mrb[0].mxu0 %v3165
    %v3305 = vpop.f32.mrb[0].mxu0
    %v3306 = vadd.f32 0.0, %v3305
    %v3307 = vpop.f32.mrb[0].mxu0
    %3308 = vdwg.mxu0
    %v3309 = vmax.f32 %v3238, %v3306
    %v3310 = vld [vmem:[%s11] sm:$0x3]
    %vm3311 = vcmask 64512
    %v3313 = vsel %vm3311, %v3310, 0
    %3315 = vmatprep.subr.mxu0 0.0
    %3316 = vmatpush1.msra.mxu0 %v3309
    %3317 = vmatprep.subr.mxu0 0.0
    %3318 = vmatpush1.msra.mxu0 0.0
    %3319 = vmatprep.subr.mxu0 0.0
    %3320 = vmatpush1.msra.mxu0 0.0
    %3321 = vmatprep.subr.mxu0 0.0
    %3322 = vmatpush1.msra.mxu0 0.0
    %3323 = vmatprep.subr.mxu0 0.0
    %3324 = vmatpush1.msra.mxu0 0.0
    %3325 = vmatprep.subr.mxu0 0.0
    %3326 = vmatpush1.msra.mxu0 0.0
    %3327 = vmatprep.subr.mxu0 0.0
    %3328 = vmatpush1.msra.mxu0 0.0
    %3329 = vmatprep.subr.mxu0 0.0
    %3330 = vmatpush1.msra.mxu0 0.0
    %3331 = vmatprep.subr.mxu0 0.0
    %3332 = vmatpush1.msra.mxu0 0.0
    %3333 = vmatprep.subr.mxu0 0.0
    %3334 = vmatpush1.msra.mxu0 0.0
    %3335 = vmatprep.subr.mxu0 0.0
    %3336 = vmatpush1.msra.mxu0 0.0
    %3337 = vmatprep.subr.mxu0 0.0
    %3338 = vmatpush1.msra.mxu0 0.0
    %3339 = vmatprep.subr.mxu0 0.0
    %3340 = vmatpush1.msra.mxu0 0.0
    %3341 = vmatprep.subr.mxu0 0.0
    %3342 = vmatpush1.msra.mxu0 0.0
    %3343 = vmatprep.subr.mxu0 0.0
    %3344 = vmatpush1.msra.mxu0 0.0
    %3345 = vmatprep.subr.mxu0 0.0
    %3346 = vmatpush1.msra.mxu0 0.0
    %3347 = vmatprep.subr.mxu0 0.0
    %3348 = vmatpush1.msra.mxu0 0.0
    %3349 = vmatprep.subr.mxu0 0.0
    %3350 = vmatpush1.msra.mxu0 0.0
    %3351 = vmatprep.subr.mxu0 0.0
    %3352 = vmatpush1.msra.mxu0 0.0
    %3353 = vmatprep.subr.mxu0 0.0
    %3354 = vmatpush1.msra.mxu0 0.0
    %3355 = vmatprep.subr.mxu0 0.0
    %3356 = vmatpush1.msra.mxu0 0.0
    %3357 = vmatprep.subr.mxu0 0.0
    %3358 = vmatpush1.msra.mxu0 0.0
    %3359 = vmatprep.subr.mxu0 0.0
    %3360 = vmatpush1.msra.mxu0 0.0
    %3361 = vmatprep.subr.mxu0 0.0
    %3362 = vmatpush1.msra.mxu0 0.0
    %3363 = vmatprep.subr.mxu0 0.0
    %3364 = vmatpush1.msra.mxu0 0.0
    %3365 = vmatprep.subr.mxu0 0.0
    %3366 = vmatpush1.msra.mxu0 0.0
    %3367 = vmatprep.subr.mxu0 0.0
    %3368 = vmatpush1.msra.mxu0 0.0
    %3369 = vmatprep.subr.mxu0 0.0
    %3370 = vmatpush1.msra.mxu0 0.0
    %3371 = vmatprep.subr.mxu0 0.0
    %3372 = vmatpush1.msra.mxu0 0.0
    %3373 = vmatprep.subr.mxu0 0.0
    %3374 = vmatpush1.msra.mxu0 0.0
    %3375 = vmatprep.subr.mxu0 0.0
    %3376 = vmatpush1.msra.mxu0 0.0
    %3377 = vmatprep.subr.mxu0 0.0
    %3378 = vmatpush1.msra.mxu0 0.0
    %3379 = vmatprep.mubr.f32.mxu0 0.0
    %3380 = vmatmul.mubr.f32.gmra.mrb[0].mxu0 %v3313
    %v3381 = vpop.f32.mrb[0].mxu0
    %v3382 = vadd.f32 0.0, %v3381
    %v3383 = vpop.f32.mrb[0].mxu0
    %3384 = vdwg.mxu0
    %v3385 = vld [vmem:[%s12] sm:$0xff]
    %v3386 = vld [vmem:[%s12 + $0x8] sm:$0xff]
    %v3387 = vld [vmem:[%s12 + $0x10] sm:$0xff]
    %v3388 = vld [vmem:[%s12 + $0x18] sm:$0xff]
    %v3389 = vld [vmem:[%s12 + $0x20] sm:$0xff]
    %v3390 = vld [vmem:[%s12 + $0x28] sm:$0xff]
    %v3391 = vld [vmem:[%s12 + $0x30] sm:$0xff]
    %v3392 = vld [vmem:[%s12 + $0x38] sm:$0xff]
    %s3393 = scalar_lea.vmem %s11, 2
    %v3394 = vld [vmem:[%s3393] sm:$0x3]
    %v3396 = vsel %vm3311, %v3394, 0
    %3398 = vmatprep.subr.mxu0 0.0
    %3399 = vmatpush1.msra.mxu0 %v3309
    %3400 = vmatprep.subr.mxu0 0.0
    %3401 = vmatpush1.msra.mxu0 0.0
    %3402 = vmatprep.subr.mxu0 0.0
    %3403 = vmatpush1.msra.mxu0 0.0
    %3404 = vmatprep.subr.mxu0 0.0
    %3405 = vmatpush1.msra.mxu0 0.0
    %3406 = vmatprep.subr.mxu0 0.0
    %3407 = vmatpush1.msra.mxu0 0.0
    %3408 = vmatprep.subr.mxu0 0.0
    %3409 = vmatpush1.msra.mxu0 0.0
    %3410 = vmatprep.subr.mxu0 0.0
    %3411 = vmatpush1.msra.mxu0 0.0
    %3412 = vmatprep.subr.mxu0 0.0
    %3413 = vmatpush1.msra.mxu0 0.0
    %3414 = vmatprep.subr.mxu0 0.0
    %3415 = vmatpush1.msra.mxu0 0.0
    %3416 = vmatprep.subr.mxu0 0.0
    %3417 = vmatpush1.msra.mxu0 0.0
    %3418 = vmatprep.subr.mxu0 0.0
    %3419 = vmatpush1.msra.mxu0 0.0
    %3420 = vmatprep.subr.mxu0 0.0
    %3421 = vmatpush1.msra.mxu0 0.0
    %3422 = vmatprep.subr.mxu0 0.0
    %3423 = vmatpush1.msra.mxu0 0.0
    %3424 = vmatprep.subr.mxu0 0.0
    %3425 = vmatpush1.msra.mxu0 0.0
    %3426 = vmatprep.subr.mxu0 0.0
    %3427 = vmatpush1.msra.mxu0 0.0
    %3428 = vmatprep.subr.mxu0 0.0
    %3429 = vmatpush1.msra.mxu0 0.0
    %3430 = vmatprep.subr.mxu0 0.0
    %3431 = vmatpush1.msra.mxu0 0.0
    %3432 = vmatprep.subr.mxu0 0.0
    %3433 = vmatpush1.msra.mxu0 0.0
    %3434 = vmatprep.subr.mxu0 0.0
    %3435 = vmatpush1.msra.mxu0 0.0
    %3436 = vmatprep.subr.mxu0 0.0
    %3437 = vmatpush1.msra.mxu0 0.0
    %3438 = vmatprep.subr.mxu0 0.0
    %3439 = vmatpush1.msra.mxu0 0.0
    %3440 = vmatprep.subr.mxu0 0.0
    %3441 = vmatpush1.msra.mxu0 0.0
    %3442 = vmatprep.subr.mxu0 0.0
    %3443 = vmatpush1.msra.mxu0 0.0
    %3444 = vmatprep.subr.mxu0 0.0
    %3445 = vmatpush1.msra.mxu0 0.0
    %3446 = vmatprep.subr.mxu0 0.0
    %3447 = vmatpush1.msra.mxu0 0.0
    %3448 = vmatprep.subr.mxu0 0.0
    %3449 = vmatpush1.msra.mxu0 0.0
    %3450 = vmatprep.subr.mxu0 0.0
    %3451 = vmatpush1.msra.mxu0 0.0
    %3452 = vmatprep.subr.mxu0 0.0
    %3453 = vmatpush1.msra.mxu0 0.0
    %3454 = vmatprep.subr.mxu0 0.0
    %3455 = vmatpush1.msra.mxu0 0.0
    %3456 = vmatprep.subr.mxu0 0.0
    %3457 = vmatpush1.msra.mxu0 0.0
    %3458 = vmatprep.subr.mxu0 0.0
    %3459 = vmatpush1.msra.mxu0 0.0
    %3460 = vmatprep.subr.mxu0 0.0
    %3461 = vmatpush1.msra.mxu0 0.0
    %3462 = vmatprep.mubr.f32.mxu0 0.0
    %3463 = vmatmul.mubr.f32.gmra.mrb[0].mxu0 %v3396
    %v3464 = vpop.f32.mrb[0].mxu0
    %v3465 = vadd.f32 0.0, %v3464
    %v3466 = vpop.f32.mrb[0].mxu0
    %3467 = vdwg.mxu0
    %s3468 = scalar_lea.vmem %s12, 64
    %v3469 = vld [vmem:[%s3468] sm:$0xff]
    %v3470 = vld [vmem:[%s3468 + $0x8] sm:$0xff]
    %v3471 = vld [vmem:[%s3468 + $0x10] sm:$0xff]
    %v3472 = vld [vmem:[%s3468 + $0x18] sm:$0xff]
    %v3473 = vld [vmem:[%s3468 + $0x20] sm:$0xff]
    %v3474 = vld [vmem:[%s3468 + $0x28] sm:$0xff]
    %v3475 = vld [vmem:[%s3468 + $0x30] sm:$0xff]
    %v3476 = vld [vmem:[%s3468 + $0x38] sm:$0xff]
    %v3478 = vsel %vm177, %v3465, 0
    %3480 = vmatprep.subr.mxu0 0.0
    %3481 = vmatpush1.msra.mxu0 %v3469
    %3482 = vmatprep.subr.mxu0 0.0
    %3483 = vmatpush1.msra.mxu0 %v3470
    %3484 = vmatprep.subr.mxu0 0.0
    %3485 = vmatpush1.msra.mxu0 %v3471
    %3486 = vmatprep.subr.mxu0 0.0
    %3487 = vmatpush1.msra.mxu0 %v3472
    %3488 = vmatprep.subr.mxu0 0.0
    %3489 = vmatpush1.msra.mxu0 %v3473
    %3490 = vmatprep.subr.mxu0 0.0
    %3491 = vmatpush1.msra.mxu0 %v3474
    %3492 = vmatprep.subr.mxu0 0.0
    %3493 = vmatpush1.msra.mxu0 %v3475
    %3494 = vmatprep.subr.mxu0 0.0
    %3495 = vmatpush1.msra.mxu0 %v3476
    %3496 = vmatprep.subr.mxu0 0.0
    %3497 = vmatpush1.msra.mxu0 0.0
    %3498 = vmatprep.subr.mxu0 0.0
    %3499 = vmatpush1.msra.mxu0 0.0
    %3500 = vmatprep.subr.mxu0 0.0
    %3501 = vmatpush1.msra.mxu0 0.0
    %3502 = vmatprep.subr.mxu0 0.0
    %3503 = vmatpush1.msra.mxu0 0.0
    %3504 = vmatprep.subr.mxu0 0.0
    %3505 = vmatpush1.msra.mxu0 0.0
    %3506 = vmatprep.subr.mxu0 0.0
    %3507 = vmatpush1.msra.mxu0 0.0
    %3508 = vmatprep.subr.mxu0 0.0
    %3509 = vmatpush1.msra.mxu0 0.0
    %3510 = vmatprep.subr.mxu0 0.0
    %3511 = vmatpush1.msra.mxu0 0.0
    %3512 = vmatprep.subr.mxu0 0.0
    %3513 = vmatpush1.msra.mxu0 0.0
    %3514 = vmatprep.subr.mxu0 0.0
    %3515 = vmatpush1.msra.mxu0 0.0
    %3516 = vmatprep.subr.mxu0 0.0
    %3517 = vmatpush1.msra.mxu0 0.0
    %3518 = vmatprep.subr.mxu0 0.0
    %3519 = vmatpush1.msra.mxu0 0.0
    %3520 = vmatprep.subr.mxu0 0.0
    %3521 = vmatpush1.msra.mxu0 0.0
    %3522 = vmatprep.subr.mxu0 0.0
    %3523 = vmatpush1.msra.mxu0 0.0
    %3524 = vmatprep.subr.mxu0 0.0
    %3525 = vmatpush1.msra.mxu0 0.0
    %3526 = vmatprep.subr.mxu0 0.0
    %3527 = vmatpush1.msra.mxu0 0.0
    %3528 = vmatprep.subr.mxu0 0.0
    %3529 = vmatpush1.msra.mxu0 0.0
    %3530 = vmatprep.subr.mxu0 0.0
    %3531 = vmatpush1.msra.mxu0 0.0
    %3532 = vmatprep.subr.mxu0 0.0
    %3533 = vmatpush1.msra.mxu0 0.0
    %3534 = vmatprep.subr.mxu0 0.0
    %3535 = vmatpush1.msra.mxu0 0.0
    %3536 = vmatprep.subr.mxu0 0.0
    %3537 = vmatpush1.msra.mxu0 0.0
    %3538 = vmatprep.subr.mxu0 0.0
    %3539 = vmatpush1.msra.mxu0 0.0
    %3540 = vmatprep.subr.mxu0 0.0
    %3541 = vmatpush1.msra.mxu0 0.0
    %3542 = vmatprep.subr.mxu0 0.0
    %3543 = vmatpush1.msra.mxu0 0.0
    %3544 = vmatprep.mubr.f32.mxu0 0.0
    %3545 = vmatmul.mubr.f32.gmra.mrb[0].mxu0 %v3478
    %v3546 = vpop.f32.mrb[0].mxu0
    %v3547 = vadd.f32 0.0, %v3546
    %v3548 = vpop.f32.mrb[0].mxu0
    %3549 = vdwg.mxu0
    %v3551 = vsel %vm177, %v3382, 0
    %3553 = vmatprep.subr.mxu0 0.0
    %3554 = vmatpush1.msra.mxu0 %v3385
    %3555 = vmatprep.subr.mxu0 0.0
    %3556 = vmatpush1.msra.mxu0 %v3386
    %3557 = vmatprep.subr.mxu0 0.0
    %3558 = vmatpush1.msra.mxu0 %v3387
    %3559 = vmatprep.subr.mxu0 0.0
    %3560 = vmatpush1.msra.mxu0 %v3388
    %3561 = vmatprep.subr.mxu0 0.0
    %3562 = vmatpush1.msra.mxu0 %v3389
    %3563 = vmatprep.subr.mxu0 0.0
    %3564 = vmatpush1.msra.mxu0 %v3390
    %3565 = vmatprep.subr.mxu0 0.0
    %3566 = vmatpush1.msra.mxu0 %v3391
    %3567 = vmatprep.subr.mxu0 0.0
    %3568 = vmatpush1.msra.mxu0 %v3392
    %3569 = vmatprep.subr.mxu0 0.0
    %3570 = vmatpush1.msra.mxu0 0.0
    %3571 = vmatprep.subr.mxu0 0.0
    %3572 = vmatpush1.msra.mxu0 0.0
    %3573 = vmatprep.subr.mxu0 0.0
    %3574 = vmatpush1.msra.mxu0 0.0
    %3575 = vmatprep.subr.mxu0 0.0
    %3576 = vmatpush1.msra.mxu0 0.0
    %3577 = vmatprep.subr.mxu0 0.0
    %3578 = vmatpush1.msra.mxu0 0.0
    %3579 = vmatprep.subr.mxu0 0.0
    %3580 = vmatpush1.msra.mxu0 0.0
    %3581 = vmatprep.subr.mxu0 0.0
    %3582 = vmatpush1.msra.mxu0 0.0
    %3583 = vmatprep.subr.mxu0 0.0
    %3584 = vmatpush1.msra.mxu0 0.0
    %3585 = vmatprep.subr.mxu0 0.0
    %3586 = vmatpush1.msra.mxu0 0.0
    %3587 = vmatprep.subr.mxu0 0.0
    %3588 = vmatpush1.msra.mxu0 0.0
    %3589 = vmatprep.subr.mxu0 0.0
    %3590 = vmatpush1.msra.mxu0 0.0
    %3591 = vmatprep.subr.mxu0 0.0
    %3592 = vmatpush1.msra.mxu0 0.0
    %3593 = vmatprep.subr.mxu0 0.0
    %3594 = vmatpush1.msra.mxu0 0.0
    %3595 = vmatprep.subr.mxu0 0.0
    %3596 = vmatpush1.msra.mxu0 0.0
    %3597 = vmatprep.subr.mxu0 0.0
    %3598 = vmatpush1.msra.mxu0 0.0
    %3599 = vmatprep.subr.mxu0 0.0
    %3600 = vmatpush1.msra.mxu0 0.0
    %3601 = vmatprep.subr.mxu0 0.0
    %3602 = vmatpush1.msra.mxu0 0.0
    %3603 = vmatprep.subr.mxu0 0.0
    %3604 = vmatpush1.msra.mxu0 0.0
    %3605 = vmatprep.subr.mxu0 0.0
    %3606 = vmatpush1.msra.mxu0 0.0
    %3607 = vmatprep.subr.mxu0 0.0
    %3608 = vmatpush1.msra.mxu0 0.0
    %3609 = vmatprep.subr.mxu0 0.0
    %3610 = vmatpush1.msra.mxu0 0.0
    %3611 = vmatprep.subr.mxu0 0.0
    %3612 = vmatpush1.msra.mxu0 0.0
    %3613 = vmatprep.subr.mxu0 0.0
    %3614 = vmatpush1.msra.mxu0 0.0
    %3615 = vmatprep.subr.mxu0 0.0
    %3616 = vmatpush1.msra.mxu0 0.0
    %3617 = vmatprep.mubr.f32.mxu0 0.0
    %3618 = vmatmul.mubr.f32.gmra.mrb[0].mxu0 %v3551
    %v3619 = vpop.f32.mrb[0].mxu0
    %v3620 = vadd.f32 %v3547, %v3619
    %v3621 = vpop.f32.mrb[0].mxu0
    %3622 = vdwg.mxu0
    %s3623 = scalar_lea.vmem %s11, 4
    %v3624 = vld [vmem:[%s3623] sm:$0x3]
    %v3626 = vsel %vm3311, %v3624, 0
    %3628 = vmatprep.subr.mxu0 0.0
    %3629 = vmatpush1.msra.mxu0 %v3309
    %3630 = vmatprep.subr.mxu0 0.0
    %3631 = vmatpush1.msra.mxu0 0.0
    %3632 = vmatprep.subr.mxu0 0.0
    %3633 = vmatpush1.msra.mxu0 0.0
    %3634 = vmatprep.subr.mxu0 0.0
    %3635 = vmatpush1.msra.mxu0 0.0
    %3636 = vmatprep.subr.mxu0 0.0
    %3637 = vmatpush1.msra.mxu0 0.0
    %3638 = vmatprep.subr.mxu0 0.0
    %3639 = vmatpush1.msra.mxu0 0.0
    %3640 = vmatprep.subr.mxu0 0.0
    %3641 = vmatpush1.msra.mxu0 0.0
    %3642 = vmatprep.subr.mxu0 0.0
    %3643 = vmatpush1.msra.mxu0 0.0
    %3644 = vmatprep.subr.mxu0 0.0
    %3645 = vmatpush1.msra.mxu0 0.0
    %3646 = vmatprep.subr.mxu0 0.0
    %3647 = vmatpush1.msra.mxu0 0.0
    %3648 = vmatprep.subr.mxu0 0.0
    %3649 = vmatpush1.msra.mxu0 0.0
    %3650 = vmatprep.subr.mxu0 0.0
    %3651 = vmatpush1.msra.mxu0 0.0
    %3652 = vmatprep.subr.mxu0 0.0
    %3653 = vmatpush1.msra.mxu0 0.0
    %3654 = vmatprep.subr.mxu0 0.0
    %3655 = vmatpush1.msra.mxu0 0.0
    %3656 = vmatprep.subr.mxu0 0.0
    %3657 = vmatpush1.msra.mxu0 0.0
    %3658 = vmatprep.subr.mxu0 0.0
    %3659 = vmatpush1.msra.mxu0 0.0
    %3660 = vmatprep.subr.mxu0 0.0
    %3661 = vmatpush1.msra.mxu0 0.0
    %3662 = vmatprep.subr.mxu0 0.0
    %3663 = vmatpush1.msra.mxu0 0.0
    %3664 = vmatprep.subr.mxu0 0.0
    %3665 = vmatpush1.msra.mxu0 0.0
    %3666 = vmatprep.subr.mxu0 0.0
    %3667 = vmatpush1.msra.mxu0 0.0
    %3668 = vmatprep.subr.mxu0 0.0
    %3669 = vmatpush1.msra.mxu0 0.0
    %3670 = vmatprep.subr.mxu0 0.0
    %3671 = vmatpush1.msra.mxu0 0.0
    %3672 = vmatprep.subr.mxu0 0.0
    %3673 = vmatpush1.msra.mxu0 0.0
    %3674 = vmatprep.subr.mxu0 0.0
    %3675 = vmatpush1.msra.mxu0 0.0
    %3676 = vmatprep.subr.mxu0 0.0
    %3677 = vmatpush1.msra.mxu0 0.0
    %3678 = vmatprep.subr.mxu0 0.0
    %3679 = vmatpush1.msra.mxu0 0.0
    %3680 = vmatprep.subr.mxu0 0.0
    %3681 = vmatpush1.msra.mxu0 0.0
    %3682 = vmatprep.subr.mxu0 0.0
    %3683 = vmatpush1.msra.mxu0 0.0
    %3684 = vmatprep.subr.mxu0 0.0
    %3685 = vmatpush1.msra.mxu0 0.0
    %3686 = vmatprep.subr.mxu0 0.0
    %3687 = vmatpush1.msra.mxu0 0.0
    %3688 = vmatprep.subr.mxu0 0.0
    %3689 = vmatpush1.msra.mxu0 0.0
    %3690 = vmatprep.subr.mxu0 0.0
    %3691 = vmatpush1.msra.mxu0 0.0
    %3692 = vmatprep.mubr.f32.mxu0 0.0
    %3693 = vmatmul.mubr.f32.gmra.mrb[0].mxu0 %v3626
    %v3694 = vpop.f32.mrb[0].mxu0
    %v3695 = vadd.f32 0.0, %v3694
    %v3696 = vpop.f32.mrb[0].mxu0
    %3697 = vdwg.mxu0
    %s3698 = scalar_lea.vmem %s12, 128
    %v3699 = vld [vmem:[%s3698] sm:$0xff]
    %v3700 = vld [vmem:[%s3698 + $0x8] sm:$0xff]
    %v3701 = vld [vmem:[%s3698 + $0x10] sm:$0xff]
    %v3702 = vld [vmem:[%s3698 + $0x18] sm:$0xff]
    %v3703 = vld [vmem:[%s3698 + $0x20] sm:$0xff]
    %v3704 = vld [vmem:[%s3698 + $0x28] sm:$0xff]
    %v3705 = vld [vmem:[%s3698 + $0x30] sm:$0xff]
    %v3706 = vld [vmem:[%s3698 + $0x38] sm:$0xff]
    %v3708 = vsel %vm177, %v3695, 0
    %3710 = vmatprep.subr.mxu0 0.0
    %3711 = vmatpush1.msra.mxu0 %v3699
    %3712 = vmatprep.subr.mxu0 0.0
    %3713 = vmatpush1.msra.mxu0 %v3700
    %3714 = vmatprep.subr.mxu0 0.0
    %3715 = vmatpush1.msra.mxu0 %v3701
    %3716 = vmatprep.subr.mxu0 0.0
    %3717 = vmatpush1.msra.mxu0 %v3702
    %3718 = vmatprep.subr.mxu0 0.0
    %3719 = vmatpush1.msra.mxu0 %v3703
    %3720 = vmatprep.subr.mxu0 0.0
    %3721 = vmatpush1.msra.mxu0 %v3704
    %3722 = vmatprep.subr.mxu0 0.0
    %3723 = vmatpush1.msra.mxu0 %v3705
    %3724 = vmatprep.subr.mxu0 0.0
    %3725 = vmatpush1.msra.mxu0 %v3706
    %3726 = vmatprep.subr.mxu0 0.0
    %3727 = vmatpush1.msra.mxu0 0.0
    %3728 = vmatprep.subr.mxu0 0.0
    %3729 = vmatpush1.msra.mxu0 0.0
    %3730 = vmatprep.subr.mxu0 0.0
    %3731 = vmatpush1.msra.mxu0 0.0
    %3732 = vmatprep.subr.mxu0 0.0
    %3733 = vmatpush1.msra.mxu0 0.0
    %3734 = vmatprep.subr.mxu0 0.0
    %3735 = vmatpush1.msra.mxu0 0.0
    %3736 = vmatprep.subr.mxu0 0.0
    %3737 = vmatpush1.msra.mxu0 0.0
    %3738 = vmatprep.subr.mxu0 0.0
    %3739 = vmatpush1.msra.mxu0 0.0
    %3740 = vmatprep.subr.mxu0 0.0
    %3741 = vmatpush1.msra.mxu0 0.0
    %3742 = vmatprep.subr.mxu0 0.0
    %3743 = vmatpush1.msra.mxu0 0.0
    %3744 = vmatprep.subr.mxu0 0.0
    %3745 = vmatpush1.msra.mxu0 0.0
    %3746 = vmatprep.subr.mxu0 0.0
    %3747 = vmatpush1.msra.mxu0 0.0
    %3748 = vmatprep.subr.mxu0 0.0
    %3749 = vmatpush1.msra.mxu0 0.0
    %3750 = vmatprep.subr.mxu0 0.0
    %3751 = vmatpush1.msra.mxu0 0.0
    %3752 = vmatprep.subr.mxu0 0.0
    %3753 = vmatpush1.msra.mxu0 0.0
    %3754 = vmatprep.subr.mxu0 0.0
    %3755 = vmatpush1.msra.mxu0 0.0
    %3756 = vmatprep.subr.mxu0 0.0
    %3757 = vmatpush1.msra.mxu0 0.0
    %3758 = vmatprep.subr.mxu0 0.0
    %3759 = vmatpush1.msra.mxu0 0.0
    %3760 = vmatprep.subr.mxu0 0.0
    %3761 = vmatpush1.msra.mxu0 0.0
    %3762 = vmatprep.subr.mxu0 0.0
    %3763 = vmatpush1.msra.mxu0 0.0
    %3764 = vmatprep.subr.mxu0 0.0
    %3765 = vmatpush1.msra.mxu0 0.0
    %3766 = vmatprep.subr.mxu0 0.0
    %3767 = vmatpush1.msra.mxu0 0.0
    %3768 = vmatprep.subr.mxu0 0.0
    %3769 = vmatpush1.msra.mxu0 0.0
    %3770 = vmatprep.subr.mxu0 0.0
    %3771 = vmatpush1.msra.mxu0 0.0
    %3772 = vmatprep.subr.mxu0 0.0
    %3773 = vmatpush1.msra.mxu0 0.0
    %3774 = vmatprep.mubr.f32.mxu0 0.0
    %3775 = vmatmul.mubr.f32.gmra.mrb[0].mxu0 %v3708
    %v3776 = vpop.f32.mrb[0].mxu0
    %v3777 = vadd.f32 0.0, %v3776
    %v3778 = vpop.f32.mrb[0].mxu0
    %3779 = vdwg.mxu0
    %v3780 = vadd.f32 %v3620, %v3777
    %s3781 = scalar_lea.vmem %s11, 6
    %v3782 = vld [vmem:[%s3781] sm:$0x3]
    %v3784 = vsel %vm3311, %v3782, 0
    %3786 = vmatprep.subr.mxu0 0.0
    %3787 = vmatpush1.msra.mxu0 %v3309
    %3788 = vmatprep.subr.mxu0 0.0
    %3789 = vmatpush1.msra.mxu0 0.0
    %3790 = vmatprep.subr.mxu0 0.0
    %3791 = vmatpush1.msra.mxu0 0.0
    %3792 = vmatprep.subr.mxu0 0.0
    %3793 = vmatpush1.msra.mxu0 0.0
    %3794 = vmatprep.subr.mxu0 0.0
    %3795 = vmatpush1.msra.mxu0 0.0
    %3796 = vmatprep.subr.mxu0 0.0
    %3797 = vmatpush1.msra.mxu0 0.0
    %3798 = vmatprep.subr.mxu0 0.0
    %3799 = vmatpush1.msra.mxu0 0.0
    %3800 = vmatprep.subr.mxu0 0.0
    %3801 = vmatpush1.msra.mxu0 0.0
    %3802 = vmatprep.subr.mxu0 0.0
    %3803 = vmatpush1.msra.mxu0 0.0
    %3804 = vmatprep.subr.mxu0 0.0
    %3805 = vmatpush1.msra.mxu0 0.0
    %3806 = vmatprep.subr.mxu0 0.0
    %3807 = vmatpush1.msra.mxu0 0.0
    %3808 = vmatprep.subr.mxu0 0.0
    %3809 = vmatpush1.msra.mxu0 0.0
    %3810 = vmatprep.subr.mxu0 0.0
    %3811 = vmatpush1.msra.mxu0 0.0
    %3812 = vmatprep.subr.mxu0 0.0
    %3813 = vmatpush1.msra.mxu0 0.0
    %3814 = vmatprep.subr.mxu0 0.0
    %3815 = vmatpush1.msra.mxu0 0.0
    %3816 = vmatprep.subr.mxu0 0.0
    %3817 = vmatpush1.msra.mxu0 0.0
    %3818 = vmatprep.subr.mxu0 0.0
    %3819 = vmatpush1.msra.mxu0 0.0
    %3820 = vmatprep.subr.mxu0 0.0
    %3821 = vmatpush1.msra.mxu0 0.0
    %3822 = vmatprep.subr.mxu0 0.0
    %3823 = vmatpush1.msra.mxu0 0.0
    %3824 = vmatprep.subr.mxu0 0.0
    %3825 = vmatpush1.msra.mxu0 0.0
    %3826 = vmatprep.subr.mxu0 0.0
    %3827 = vmatpush1.msra.mxu0 0.0
    %3828 = vmatprep.subr.mxu0 0.0
    %3829 = vmatpush1.msra.mxu0 0.0
    %3830 = vmatprep.subr.mxu0 0.0
    %3831 = vmatpush1.msra.mxu0 0.0
    %3832 = vmatprep.subr.mxu0 0.0
    %3833 = vmatpush1.msra.mxu0 0.0
    %3834 = vmatprep.subr.mxu0 0.0
    %3835 = vmatpush1.msra.mxu0 0.0
    %3836 = vmatprep.subr.mxu0 0.0
    %3837 = vmatpush1.msra.mxu0 0.0
    %3838 = vmatprep.subr.mxu0 0.0
    %3839 = vmatpush1.msra.mxu0 0.0
    %3840 = vmatprep.subr.mxu0 0.0
    %3841 = vmatpush1.msra.mxu0 0.0
    %3842 = vmatprep.subr.mxu0 0.0
    %3843 = vmatpush1.msra.mxu0 0.0
    %3844 = vmatprep.subr.mxu0 0.0
    %3845 = vmatpush1.msra.mxu0 0.0
    %3846 = vmatprep.subr.mxu0 0.0
    %3847 = vmatpush1.msra.mxu0 0.0
    %3848 = vmatprep.subr.mxu0 0.0
    %3849 = vmatpush1.msra.mxu0 0.0
    %3850 = vmatprep.mubr.f32.mxu0 0.0
    %3851 = vmatmul.mubr.f32.gmra.mrb[0].mxu0 %v3784
    %v3852 = vpop.f32.mrb[0].mxu0
    %v3853 = vadd.f32 0.0, %v3852
    %v3854 = vpop.f32.mrb[0].mxu0
    %3855 = vdwg.mxu0
    %s3856 = scalar_lea.vmem %s12, 192
    %v3857 = vld [vmem:[%s3856] sm:$0xff]
    %v3858 = vld [vmem:[%s3856 + $0x8] sm:$0xff]
    %v3859 = vld [vmem:[%s3856 + $0x10] sm:$0xff]
    %v3860 = vld [vmem:[%s3856 + $0x18] sm:$0xff]
    %v3861 = vld [vmem:[%s3856 + $0x20] sm:$0xff]
    %v3862 = vld [vmem:[%s3856 + $0x28] sm:$0xff]
    %v3863 = vld [vmem:[%s3856 + $0x30] sm:$0xff]
    %v3864 = vld [vmem:[%s3856 + $0x38] sm:$0xff]
    %v3866 = vsel %vm177, %v3853, 0
    %3868 = vmatprep.subr.mxu0 0.0
    %3869 = vmatpush1.msra.mxu0 %v3857
    %3870 = vmatprep.subr.mxu0 0.0
    %3871 = vmatpush1.msra.mxu0 %v3858
    %3872 = vmatprep.subr.mxu0 0.0
    %3873 = vmatpush1.msra.mxu0 %v3859
    %3874 = vmatprep.subr.mxu0 0.0
    %3875 = vmatpush1.msra.mxu0 %v3860
    %3876 = vmatprep.subr.mxu0 0.0
    %3877 = vmatpush1.msra.mxu0 %v3861
    %3878 = vmatprep.subr.mxu0 0.0
    %3879 = vmatpush1.msra.mxu0 %v3862
    %3880 = vmatprep.subr.mxu0 0.0
    %3881 = vmatpush1.msra.mxu0 %v3863
    %3882 = vmatprep.subr.mxu0 0.0
    %3883 = vmatpush1.msra.mxu0 %v3864
    %3884 = vmatprep.subr.mxu0 0.0
    %3885 = vmatpush1.msra.mxu0 0.0
    %3886 = vmatprep.subr.mxu0 0.0
    %3887 = vmatpush1.msra.mxu0 0.0
    %3888 = vmatprep.subr.mxu0 0.0
    %3889 = vmatpush1.msra.mxu0 0.0
    %3890 = vmatprep.subr.mxu0 0.0
    %3891 = vmatpush1.msra.mxu0 0.0
    %3892 = vmatprep.subr.mxu0 0.0
    %3893 = vmatpush1.msra.mxu0 0.0
    %3894 = vmatprep.subr.mxu0 0.0
    %3895 = vmatpush1.msra.mxu0 0.0
    %3896 = vmatprep.subr.mxu0 0.0
    %3897 = vmatpush1.msra.mxu0 0.0
    %3898 = vmatprep.subr.mxu0 0.0
    %3899 = vmatpush1.msra.mxu0 0.0
    %3900 = vmatprep.subr.mxu0 0.0
    %3901 = vmatpush1.msra.mxu0 0.0
    %3902 = vmatprep.subr.mxu0 0.0
    %3903 = vmatpush1.msra.mxu0 0.0
    %3904 = vmatprep.subr.mxu0 0.0
    %3905 = vmatpush1.msra.mxu0 0.0
    %3906 = vmatprep.subr.mxu0 0.0
    %3907 = vmatpush1.msra.mxu0 0.0
    %3908 = vmatprep.subr.mxu0 0.0
    %3909 = vmatpush1.msra.mxu0 0.0
    %3910 = vmatprep.subr.mxu0 0.0
    %3911 = vmatpush1.msra.mxu0 0.0
    %3912 = vmatprep.subr.mxu0 0.0
    %3913 = vmatpush1.msra.mxu0 0.0
    %3914 = vmatprep.subr.mxu0 0.0
    %3915 = vmatpush1.msra.mxu0 0.0
    %3916 = vmatprep.subr.mxu0 0.0
    %3917 = vmatpush1.msra.mxu0 0.0
    %3918 = vmatprep.subr.mxu0 0.0
    %3919 = vmatpush1.msra.mxu0 0.0
    %3920 = vmatprep.subr.mxu0 0.0
    %3921 = vmatpush1.msra.mxu0 0.0
    %3922 = vmatprep.subr.mxu0 0.0
    %3923 = vmatpush1.msra.mxu0 0.0
    %3924 = vmatprep.subr.mxu0 0.0
    %3925 = vmatpush1.msra.mxu0 0.0
    %3926 = vmatprep.subr.mxu0 0.0
    %3927 = vmatpush1.msra.mxu0 0.0
    %3928 = vmatprep.subr.mxu0 0.0
    %3929 = vmatpush1.msra.mxu0 0.0
    %3930 = vmatprep.subr.mxu0 0.0
    %3931 = vmatpush1.msra.mxu0 0.0
    %3932 = vmatprep.mubr.f32.mxu0 0.0
    %3933 = vmatmul.mubr.f32.gmra.mrb[0].mxu0 %v3866
    %v3934 = vpop.f32.mrb[0].mxu0
    %v3935 = vadd.f32 0.0, %v3934
    %v3936 = vpop.f32.mrb[0].mxu0
    %3937 = vdwg.mxu0
    %v3938 = vadd.f32 %v3780, %v3935
    %v3939 = vld [vmem:[%s13] sm:$0x1]
    %v3941 = vlaneseq
    %v3942 = vshrl.u32 %v3941, 7
    %v3943 = vsub.s32 0, %v3942
    %v3944 = vrot.slane %v3939, %v3943
    %v3946 = vadd.f32 %v3938, %v3944
    %v3947 = vmax.f32 %v3946, 0.0
    %v3948 = vld [vmem:[%s14] sm:$0xff]
    %v3949 = vld [vmem:[%s14 + $0x8] sm:$0xff]
    %v3950 = vld [vmem:[%s14 + $0x10] sm:$0xff]
    %v3951 = vld [vmem:[%s14 + $0x18] sm:$0xff]
    %v3952 = vld [vmem:[%s15] sm:$0x1]
    %v3954 = vlaneseq
    %v3955 = vshrl.u32 %v3954, 7
    %v3956 = vsub.s32 0, %v3955
    %v3957 = vrot.slane %v3952, %v3956
    %v3960 = vsel %vm62, %v3947, 0
    %3962 = vmatprep.subr.mxu0 0.0
    %3963 = vmatpush1.msra.mxu0 %v3948
    %3964 = vmatprep.subr.mxu0 0.0
    %3965 = vmatpush1.msra.mxu0 %v3949
    %3966 = vmatprep.subr.mxu0 0.0
    %3967 = vmatpush1.msra.mxu0 %v3950
    %3968 = vmatprep.subr.mxu0 0.0
    %3969 = vmatpush1.msra.mxu0 %v3951
    %3970 = vmatprep.subr.mxu0 0.0
    %3971 = vmatpush1.msra.mxu0 0.0
    %3972 = vmatprep.subr.mxu0 0.0
    %3973 = vmatpush1.msra.mxu0 0.0
    %3974 = vmatprep.subr.mxu0 0.0
    %3975 = vmatpush1.msra.mxu0 0.0
    %3976 = vmatprep.subr.mxu0 0.0
    %3977 = vmatpush1.msra.mxu0 0.0
    %3978 = vmatprep.subr.mxu0 0.0
    %3979 = vmatpush1.msra.mxu0 0.0
    %3980 = vmatprep.subr.mxu0 0.0
    %3981 = vmatpush1.msra.mxu0 0.0
    %3982 = vmatprep.subr.mxu0 0.0
    %3983 = vmatpush1.msra.mxu0 0.0
    %3984 = vmatprep.subr.mxu0 0.0
    %3985 = vmatpush1.msra.mxu0 0.0
    %3986 = vmatprep.subr.mxu0 0.0
    %3987 = vmatpush1.msra.mxu0 0.0
    %3988 = vmatprep.subr.mxu0 0.0
    %3989 = vmatpush1.msra.mxu0 0.0
    %3990 = vmatprep.subr.mxu0 0.0
    %3991 = vmatpush1.msra.mxu0 0.0
    %3992 = vmatprep.subr.mxu0 0.0
    %3993 = vmatpush1.msra.mxu0 0.0
    %3994 = vmatprep.subr.mxu0 0.0
    %3995 = vmatpush1.msra.mxu0 0.0
    %3996 = vmatprep.subr.mxu0 0.0
    %3997 = vmatpush1.msra.mxu0 0.0
    %3998 = vmatprep.subr.mxu0 0.0
    %3999 = vmatpush1.msra.mxu0 0.0
    %4000 = vmatprep.subr.mxu0 0.0
    %4001 = vmatpush1.msra.mxu0 0.0
    %4002 = vmatprep.subr.mxu0 0.0
    %4003 = vmatpush1.msra.mxu0 0.0
    %4004 = vmatprep.subr.mxu0 0.0
    %4005 = vmatpush1.msra.mxu0 0.0
    %4006 = vmatprep.subr.mxu0 0.0
    %4007 = vmatpush1.msra.mxu0 0.0
    %4008 = vmatprep.subr.mxu0 0.0
    %4009 = vmatpush1.msra.mxu0 0.0
    %4010 = vmatprep.subr.mxu0 0.0
    %4011 = vmatpush1.msra.mxu0 0.0
    %4012 = vmatprep.subr.mxu0 0.0
    %4013 = vmatpush1.msra.mxu0 0.0
    %4014 = vmatprep.subr.mxu0 0.0
    %4015 = vmatpush1.msra.mxu0 0.0
    %4016 = vmatprep.subr.mxu0 0.0
    %4017 = vmatpush1.msra.mxu0 0.0
    %4018 = vmatprep.subr.mxu0 0.0
    %4019 = vmatpush1.msra.mxu0 0.0
    %4020 = vmatprep.subr.mxu0 0.0
    %4021 = vmatpush1.msra.mxu0 0.0
    %4022 = vmatprep.subr.mxu0 0.0
    %4023 = vmatpush1.msra.mxu0 0.0
    %4024 = vmatprep.subr.mxu0 0.0
    %4025 = vmatpush1.msra.mxu0 0.0
    %4026 = vmatprep.mubr.f32.mxu0 0.0
    %4027 = vmatmul.mubr.f32.gmra.mrb[0].mxu0 %v3960
    %v4028 = vpop.f32.mrb[0].mxu0
    %v4029 = vadd.f32 %v3957, %v4028
    %v4030 = vpop.f32.mrb[0].mxu0
    %4031 = vdwg.mxu0
    %vm4032 = vcmask 74752
    %4033 = vst.msk [vmem:[#allocation2] sm:$0x3] %vm4032, %v4029
    // Predicated region
    $region66: #{vgg_compressed_forward.1} parent=1 // pred_check
      _
    $region67: #{vgg_compressed_forward.1} parent=1 // pred_check_branch
      %4035 = sbr.rel (0) target = $region69
    $region68: #{vgg_compressed_forward.1} parent=1 // pred_region
      %s4037 = ssub.s32 32, 32
      %4038 = vsyncadd [#allocation3], %s4037
      %s4040 = sshll.u32 [#allocation2], 4
      %s4041 = int_to_ptr.vmem [resolvable:$true] %s4040
      %4043 = dma.vmem_to_hbm [thread:$0]  %s4041, 32, %s16, [#allocation3]
    $region69: #{vgg_compressed_forward.1} parent=1 // pred_fallthru
      _
    // Predicated region
    $region70: #{vgg_compressed_forward.1} parent=1 // pred_check
      _
    $region71: #{vgg_compressed_forward.1} parent=1 // pred_check_branch
      %4045 = sbr.rel (0) target = $region73
    $region72: #{vgg_compressed_forward.1} parent=1 // pred_region
      %4046 = dma.done [#allocation3], 32
    $region73: #{vgg_compressed_forward.1} parent=1 // pred_fallthru
      _
    %4047 = vsyncpa [#allocation3], 1

</llo_original>
